<compile_context>
chip_gen: v6e
topology: v6e:2x2x1
jax: 0.10.0
libtpu: 0.0.40
codegen_flags: <defaults>
</compile_context>

<pallas_src>
import jax
import jax.numpy as jnp
from jax import lax
from jax.experimental import pallas as pl
from jax.experimental.pallas import tpu as pltpu


def _round_up(x, m):
    return ((x + m - 1) // m) * m


def _pre_encoder_kernel(cat_idx_ref, emb_ref, num_ref, num_w_ref, num_b_ref,
                        cat_out_ref, num_out_ref):
    """Encode one batch tile of categorical + numerical columns.

    cat_idx_ref : [TN, C_cat]    int32    categorical indices (per-tile)
    emb_ref     : [C_cat, V, D]  float32  stacked embedding tables (resident)
    num_ref     : [TN, C_num]    float32  numerical values (per-tile)
    num_w_ref   : [C_num, D]     float32  per-column affine weights (resident)
    num_b_ref   : [C_num, D]     float32  per-column affine biases  (resident)
    cat_out_ref : [TN, CAT_PAD]  float32  lane-padded categorical slab (128-mult)
    num_out_ref : [TN, NUM_PAD]  float32  lane-padded numerical slab   (128-mult)
    """
    tn, c_cat = cat_idx_ref.shape
    vocab, d = emb_ref.shape[1], emb_ref.shape[2]
    c_num = num_ref.shape[1]
    cat_pad = cat_out_ref.shape[1]
    num_pad = num_out_ref.shape[1]
    w_dtype = emb_ref.dtype

    # --- Categorical: per-column one-hot matmul (no C_cat^2 blowup). -------
    # One-hot compare is only V lanes wide; each column is one small MXU push
    # [TN, V] @ [V, D].  Results are assembled into a single lane-dense slab
    # and written with ONE unmasked full-block store.
    vocab_iota = lax.broadcasted_iota(jnp.int32, (tn, vocab), 1)  # hoisted
    cat_parts = []
    for c in range(c_cat):                                   # small & static
        onehot_c = (vocab_iota == cat_idx_ref[:, c:c + 1]).astype(w_dtype)
        cat_parts.append(
            jnp.dot(onehot_c, emb_ref[c], preferred_element_type=jnp.float32))
    if cat_pad > c_cat * d:
        cat_parts.append(jnp.zeros((tn, cat_pad - c_cat * d), jnp.float32))
    cat_out = (cat_parts[0] if len(cat_parts) == 1
               else jnp.concatenate(cat_parts, axis=1))
    cat_out_ref[...] = cat_out.astype(cat_out_ref.dtype)

    # --- Numerical: per-column broadcast affine on the VPU (no matmul, no
    #     C_num^2 block-structured weight).  Single unmasked store. ----------
    num_parts = []
    for c in range(c_num):
        num_parts.append(num_ref[:, c:c + 1] * num_w_ref[c:c + 1, :]
                         + num_b_ref[c:c + 1, :])
    if num_pad > c_num * d:
        num_parts.append(jnp.zeros((tn, num_pad - c_num * d), jnp.float32))
    num_out = (num_parts[0] if len(num_parts) == 1
               else jnp.concatenate(num_parts, axis=1))
    num_out_ref[...] = num_out.astype(num_out_ref.dtype)


def pre_encoder_forward(cat_idx, emb_table, num_feat, num_w, num_b,
                        *, tile_n=512):
    """cat_idx [N,C_cat] i32, emb_table [C_cat,V,D], num_feat [N,C_num],
    num_w/num_b [C_num,D]  ->  [N, C_cat+C_num, D] f32."""
    n, c_cat = cat_idx.shape
    c_num = num_feat.shape[1]
    _, vocab, d = emb_table.shape
    cat_width, num_width = c_cat * d, c_num * d
    cat_pad = _round_up(cat_width, 128)     # lane-dense output sections
    num_pad = _round_up(num_width, 128)

    # Row tile: large by default (HBM roofline, fills the 256-wide MXU on
    # v6e/v7x), but capped so the grid has >= 2 steps when the batch allows —
    # both v7x TensorCores get work under dimension_semantics=("parallel",).
    tile_n = _round_up(max(int(tile_n), 8), 8)
    tn = max(8, min(tile_n, _round_up(max(n // 2, 1), 8)))
    n_pad = _round_up(n, tn)
    if n_pad != n:
        # Padded rows reuse category index 0 (must be a valid vocab entry);
        # their outputs are sliced off below.
        cat_idx = jnp.pad(cat_idx, ((0, n_pad - n), (0, 0)))
        num_feat = jnp.pad(num_feat, ((0, n_pad - n), (0, 0)))

    # Rough per-step VMEM footprint (vreg-padded tiles, double-buffered per-tile
    # inputs/outputs + resident weights) -> scoped VMEM limit with headroom,
    # clamped to the v7x physical 64 MiB.
    def _pb(shape, itemsize=4):
        lead = 1
        for s in shape[:-2]:
            lead *= s
        r = shape[-2] if len(shape) >= 2 else 1
        c = shape[-1]
        return lead * _round_up(r, 8) * _round_up(c, 128) * itemsize

    est = (2 * (_pb((tn, c_cat)) + _pb((tn, c_num))
                + _pb((tn, cat_pad)) + _pb((tn, num_pad)))
           + 2 * (_pb((c_cat, vocab, d)) + 2 * _pb((c_num, d))))
    vmem_limit = int(min(max(2 * est, 32 * 1024 * 1024), 64 * 1024 * 1024))

    grid = (n_pad // tn,)

    def _resident(shape, single_buffer):
        # Constant index_map -> the block is never re-fetched; Buffered(1)
        # additionally halves its VMEM allocation (no double buffer).
        if single_buffer:
            return pl.BlockSpec(shape, lambda i: (0,) * len(shape),
                                pipeline_mode=pl.Buffered(1))
        return pl.BlockSpec(shape, lambda i: (0,) * len(shape))

    def _run(single_buffer_weights):
        out = pl.pallas_call(
            _pre_encoder_kernel,
            out_shape=(jax.ShapeDtypeStruct((n_pad, cat_pad), jnp.float32),
                       jax.ShapeDtypeStruct((n_pad, num_pad), jnp.float32)),
            grid_spec=pltpu.PrefetchScalarGridSpec(
                num_scalar_prefetch=0,
                grid=grid,
                in_specs=[
                    pl.BlockSpec((tn, c_cat), lambda i: (i, 0)),       # per-tile
                    _resident((c_cat, vocab, d), single_buffer_weights),
                    pl.BlockSpec((tn, c_num), lambda i: (i, 0)),       # per-tile
                    _resident((c_num, d), single_buffer_weights),
                    _resident((c_num, d), single_buffer_weights),
                ],
                out_specs=[
                    pl.BlockSpec((tn, cat_pad), lambda i: (i, 0)),
                    pl.BlockSpec((tn, num_pad), lambda i: (i, 0)),
                ],
            ),
            compiler_params=pltpu.CompilerParams(
                dimension_semantics=("parallel",),   # rows across TCs (v7x)
                vmem_limit_bytes=vmem_limit,
            ),
        )(cat_idx, emb_table, num_feat, num_w, num_b)
        return jax.block_until_ready(out)

    if hasattr(pl, "Buffered"):
        try:
            cat2d, num2d = _run(True)
        except Exception:
            cat2d, num2d = _run(False)   # fall back to default double-buffering
    else:
        cat2d, num2d = _run(False)

    cat_emb = cat2d[:n, :cat_width].reshape(n, c_cat, d)
    num_emb = num2d[:n, :num_width].reshape(n, c_num, d)
    return jnp.concatenate([cat_emb, num_emb], axis=1)


def pre_encoder_reference(cat_idx, emb_table, num_feat, num_w, num_b):
    # Pure-JAX reference mirroring the PyTorch forward.
    cat_emb = jnp.stack(
        [emb_table[c][cat_idx[:, c]] for c in range(cat_idx.shape[1])], axis=1
    )  # [N, C_cat, D]
    num_emb = num_feat[:, :, None] * num_w[None, :, :] + num_b[None, :, :]
    return jnp.concatenate([cat_emb, num_emb], axis=1)


if __name__ == "__main__":
    # Small synthetic "table": 3 categorical columns (vocab 16), 4 numerical
    # columns, batch 256 (2 grid tiles), out_dim 32.
    N, C_CAT, VOCAB, C_NUM, D = 256, 3, 16, 4, 32

    key = jax.random.PRNGKey(0)
    k_idx, k_emb, k_num, k_w, k_b = jax.random.split(key, 5)

    cat_idx = jax.random.randint(k_idx, (N, C_CAT), 0, VOCAB, dtype=jnp.int32)
    emb_table = jax.random.normal(k_emb, (C_CAT, VOCAB, D), dtype=jnp.float32)
    num_feat = jax.random.normal(k_num, (N, C_NUM), dtype=jnp.float32)
    num_w = jax.random.normal(k_w, (C_NUM, D), dtype=jnp.float32)
    num_b = jax.random.normal(k_b, (C_NUM, D), dtype=jnp.float32)

    out = pre_encoder_forward(cat_idx, emb_table, num_feat, num_w, num_b)
    out = jax.block_until_ready(out)

    ref = pre_encoder_reference(cat_idx, emb_table, num_feat, num_w, num_b)
    assert out.shape == (N, C_CAT + C_NUM, D), out.shape
    assert jnp.allclose(out, ref, atol=1e-5, rtol=1e-5), "mismatch vs reference"

    print("KERNEL_OK")
</pallas_src>

<mosaic_0001>
module attributes {stable_mosaic.version = 11 : i64} {
  func.func @_pre_encoder_kernel(%arg0: i32, %arg1: memref<128x3xi32, #tpu.memory_space<vmem>>, %arg2: memref<3x16x32xf32, #tpu.memory_space<vmem>>, %arg3: memref<128x4xf32, #tpu.memory_space<vmem>>, %arg4: memref<4x32xf32, #tpu.memory_space<vmem>>, %arg5: memref<4x32xf32, #tpu.memory_space<vmem>>, %arg6: memref<128x128xf32, #tpu.memory_space<vmem>>, %arg7: memref<128x128xf32, #tpu.memory_space<vmem>>) attributes {dimension_semantics = [#tpu.dimension_semantics<parallel>], iteration_bounds = array<i64: 2>, scalar_prefetch = 0 : i64, scratch_operands = 0 : i64, tpu.core_type = #tpu.core_type<tc>, window_params = [{transform_indices = @transform_0, window_bounds = array<i64: 128, 3>}, {pipeline_mode = #tpu.pipeline_mode<synchronous>, transform_indices = @transform_1, window_bounds = array<i64: 3, 16, 32>}, {transform_indices = @transform_2, window_bounds = array<i64: 128, 4>}, {pipeline_mode = #tpu.pipeline_mode<synchronous>, transform_indices = @transform_3, window_bounds = array<i64: 4, 32>}, {pipeline_mode = #tpu.pipeline_mode<synchronous>, transform_indices = @transform_4, window_bounds = array<i64: 4, 32>}, {transform_indices = @transform_5, window_bounds = array<i64: 128, 128>}, {transform_indices = @transform_6, window_bounds = array<i64: 128, 128>}]} {
    %0 = tpu.iota {dimensions = array<i32: 1>} : vector<128x16xi32>
    %c0 = arith.constant 0 : index
    %c0_0 = arith.constant 0 : index
    %1 = vector.load %arg1[%c0, %c0_0] : memref<128x3xi32, #tpu.memory_space<vmem>>, vector<128x1xi32>
    %2 = vector.broadcast %1 : vector<128x1xi32> to vector<128x16xi32>
    %3 = arith.cmpi eq, %0, %2 : vector<128x16xi32>
    %4 = arith.extui %3 : vector<128x16xi1> to vector<128x16xi32>
    %5 = arith.sitofp %4 : vector<128x16xi32> to vector<128x16xf32>
    %c0_1 = arith.constant 0 : index
    %c0_2 = arith.constant 0 : index
    %c0_3 = arith.constant 0 : index
    %6 = vector.load %arg2[%c0_1, %c0_2, %c0_3] : memref<3x16x32xf32, #tpu.memory_space<vmem>>, vector<1x16x32xf32>
    %7 = vector.shape_cast %6 : vector<1x16x32xf32> to vector<16x32xf32>
    %cst = arith.constant dense<0.000000e+00> : vector<128x32xf32>
    %8 = tpu.matmul %5, %7, %cst {dimension_numbers = #tpu.dot_dimension_numbers<[1], [0], [0], [1], [0, 0, 1, 1], [], []>} : vector<128x16xf32>, vector<16x32xf32>, vector<128x32xf32> -> vector<128x32xf32>
    %c0_4 = arith.constant 0 : index
    %c1 = arith.constant 1 : index
    %9 = vector.load %arg1[%c0_4, %c1] : memref<128x3xi32, #tpu.memory_space<vmem>>, vector<128x1xi32>
    %10 = vector.broadcast %9 : vector<128x1xi32> to vector<128x16xi32>
    %11 = arith.cmpi eq, %0, %10 : vector<128x16xi32>
    %12 = arith.extui %11 : vector<128x16xi1> to vector<128x16xi32>
    %13 = arith.sitofp %12 : vector<128x16xi32> to vector<128x16xf32>
    %c1_5 = arith.constant 1 : index
    %c0_6 = arith.constant 0 : index
    %c0_7 = arith.constant 0 : index
    %14 = vector.load %arg2[%c1_5, %c0_6, %c0_7] : memref<3x16x32xf32, #tpu.memory_space<vmem>>, vector<1x16x32xf32>
    %15 = vector.shape_cast %14 : vector<1x16x32xf32> to vector<16x32xf32>
    %cst_8 = arith.constant dense<0.000000e+00> : vector<128x32xf32>
    %16 = tpu.matmul %13, %15, %cst_8 {dimension_numbers = #tpu.dot_dimension_numbers<[1], [0], [0], [1], [0, 0, 1, 1], [], []>} : vector<128x16xf32>, vector<16x32xf32>, vector<128x32xf32> -> vector<128x32xf32>
    %c0_9 = arith.constant 0 : index
    %c2 = arith.constant 2 : index
    %17 = vector.load %arg1[%c0_9, %c2] : memref<128x3xi32, #tpu.memory_space<vmem>>, vector<128x1xi32>
    %18 = vector.broadcast %17 : vector<128x1xi32> to vector<128x16xi32>
    %19 = arith.cmpi eq, %0, %18 : vector<128x16xi32>
    %20 = arith.extui %19 : vector<128x16xi1> to vector<128x16xi32>
    %21 = arith.sitofp %20 : vector<128x16xi32> to vector<128x16xf32>
    %c2_10 = arith.constant 2 : index
    %c0_11 = arith.constant 0 : index
    %c0_12 = arith.constant 0 : index
    %22 = vector.load %arg2[%c2_10, %c0_11, %c0_12] : memref<3x16x32xf32, #tpu.memory_space<vmem>>, vector<1x16x32xf32>
    %23 = vector.shape_cast %22 : vector<1x16x32xf32> to vector<16x32xf32>
    %cst_13 = arith.constant dense<0.000000e+00> : vector<128x32xf32>
    %24 = tpu.matmul %21, %23, %cst_13 {dimension_numbers = #tpu.dot_dimension_numbers<[1], [0], [0], [1], [0, 0, 1, 1], [], []>} : vector<128x16xf32>, vector<16x32xf32>, vector<128x32xf32> -> vector<128x32xf32>
    %cst_14 = arith.constant 0.000000e+00 : f32
    %25 = vector.broadcast %cst_14 : f32 to vector<128x32xf32>
    %26 = tpu.concatenate %8, %16, %24, %25 in 1 : vector<128x32xf32>, vector<128x32xf32>, vector<128x32xf32>, vector<128x32xf32> -> vector<128x128xf32>
    %c0_15 = arith.constant 0 : index
    %c0_16 = arith.constant 0 : index
    %27 = vector.load %arg6[%c0_15, %c0_16] : memref<128x128xf32, #tpu.memory_space<vmem>>, vector<128x128xf32>
    tpu.vector_store %arg6[%c0_15, %c0_16], %26 {strides = array<i32>} : memref<128x128xf32, #tpu.memory_space<vmem>>, vector<128x128xf32>,
    %c0_17 = arith.constant 0 : index
    %c0_18 = arith.constant 0 : index
    %28 = vector.load %arg3[%c0_17, %c0_18] : memref<128x4xf32, #tpu.memory_space<vmem>>, vector<128x1xf32>
    %c0_19 = arith.constant 0 : index
    %c0_20 = arith.constant 0 : index
    %29 = vector.load %arg4[%c0_19, %c0_20] : memref<4x32xf32, #tpu.memory_space<vmem>>, vector<1x32xf32>
    %30 = vector.broadcast %28 : vector<128x1xf32> to vector<128x32xf32>
    %31 = vector.broadcast %29 : vector<1x32xf32> to vector<128x32xf32>
    %32 = arith.mulf %30, %31 : vector<128x32xf32>
    %c0_21 = arith.constant 0 : index
    %c0_22 = arith.constant 0 : index
    %33 = vector.load %arg5[%c0_21, %c0_22] : memref<4x32xf32, #tpu.memory_space<vmem>>, vector<1x32xf32>
    %34 = vector.broadcast %33 : vector<1x32xf32> to vector<128x32xf32>
    %35 = arith.addf %32, %34 : vector<128x32xf32>
    %c0_23 = arith.constant 0 : index
    %c1_24 = arith.constant 1 : index
    %36 = vector.load %arg3[%c0_23, %c1_24] : memref<128x4xf32, #tpu.memory_space<vmem>>, vector<128x1xf32>
    %c1_25 = arith.constant 1 : index
    %c0_26 = arith.constant 0 : index
    %37 = vector.load %arg4[%c1_25, %c0_26] : memref<4x32xf32, #tpu.memory_space<vmem>>, vector<1x32xf32>
    %38 = vector.broadcast %36 : vector<128x1xf32> to vector<128x32xf32>
    %39 = vector.broadcast %37 : vector<1x32xf32> to vector<128x32xf32>
    %40 = arith.mulf %38, %39 : vector<128x32xf32>
    %c1_27 = arith.constant 1 : index
    %c0_28 = arith.constant 0 : index
    %41 = vector.load %arg5[%c1_27, %c0_28] : memref<4x32xf32, #tpu.memory_space<vmem>>, vector<1x32xf32>
    %42 = vector.broadcast %41 : vector<1x32xf32> to vector<128x32xf32>
    %43 = arith.addf %40, %42 : vector<128x32xf32>
    %c0_29 = arith.constant 0 : index
    %c2_30 = arith.constant 2 : index
    %44 = vector.load %arg3[%c0_29, %c2_30] : memref<128x4xf32, #tpu.memory_space<vmem>>, vector<128x1xf32>
    %c2_31 = arith.constant 2 : index
    %c0_32 = arith.constant 0 : index
    %45 = vector.load %arg4[%c2_31, %c0_32] : memref<4x32xf32, #tpu.memory_space<vmem>>, vector<1x32xf32>
    %46 = vector.broadcast %44 : vector<128x1xf32> to vector<128x32xf32>
    %47 = vector.broadcast %45 : vector<1x32xf32> to vector<128x32xf32>
    %48 = arith.mulf %46, %47 : vector<128x32xf32>
    %c2_33 = arith.constant 2 : index
    %c0_34 = arith.constant 0 : index
    %49 = vector.load %arg5[%c2_33, %c0_34] : memref<4x32xf32, #tpu.memory_space<vmem>>, vector<1x32xf32>
    %50 = vector.broadcast %49 : vector<1x32xf32> to vector<128x32xf32>
    %51 = arith.addf %48, %50 : vector<128x32xf32>
    %c0_35 = arith.constant 0 : index
    %c3 = arith.constant 3 : index
    %52 = vector.load %arg3[%c0_35, %c3] : memref<128x4xf32, #tpu.memory_space<vmem>>, vector<128x1xf32>
    %c3_36 = arith.constant 3 : index
    %c0_37 = arith.constant 0 : index
    %53 = vector.load %arg4[%c3_36, %c0_37] : memref<4x32xf32, #tpu.memory_space<vmem>>, vector<1x32xf32>
    %54 = vector.broadcast %52 : vector<128x1xf32> to vector<128x32xf32>
    %55 = vector.broadcast %53 : vector<1x32xf32> to vector<128x32xf32>
    %56 = arith.mulf %54, %55 : vector<128x32xf32>
    %c3_38 = arith.constant 3 : index
    %c0_39 = arith.constant 0 : index
    %57 = vector.load %arg5[%c3_38, %c0_39] : memref<4x32xf32, #tpu.memory_space<vmem>>, vector<1x32xf32>
    %58 = vector.broadcast %57 : vector<1x32xf32> to vector<128x32xf32>
    %59 = arith.addf %56, %58 : vector<128x32xf32>
    %60 = tpu.concatenate %35, %43, %51, %59 in 1 : vector<128x32xf32>, vector<128x32xf32>, vector<128x32xf32>, vector<128x32xf32> -> vector<128x128xf32>
    %c0_40 = arith.constant 0 : index
    %c0_41 = arith.constant 0 : index
    %61 = vector.load %arg7[%c0_40, %c0_41] : memref<128x128xf32, #tpu.memory_space<vmem>>, vector<128x128xf32>
    tpu.vector_store %arg7[%c0_40, %c0_41], %60 {strides = array<i32>} : memref<128x128xf32, #tpu.memory_space<vmem>>, vector<128x128xf32>,
    return
  }
  func.func @transform_0(%arg0: i32) -> (i32, i32) {
    %c0_i32 = arith.constant 0 : i32
    %c0_i32_0 = arith.constant 0 : i32
    return %arg0, %c0_i32 : i32, i32
  }
  func.func @transform_1(%arg0: i32) -> (i32, i32, i32) {
    %c0_i32 = arith.constant 0 : i32
    %c0_i32_0 = arith.constant 0 : i32
    %c0_i32_1 = arith.constant 0 : i32
    %c0_i32_2 = arith.constant 0 : i32
    return %c0_i32, %c0_i32_0, %c0_i32_1 : i32, i32, i32
  }
  func.func @transform_2(%arg0: i32) -> (i32, i32) {
    %c0_i32 = arith.constant 0 : i32
    %c0_i32_0 = arith.constant 0 : i32
    return %arg0, %c0_i32 : i32, i32
  }
  func.func @transform_3(%arg0: i32) -> (i32, i32) {
    %c0_i32 = arith.constant 0 : i32
    %c0_i32_0 = arith.constant 0 : i32
    %c0_i32_1 = arith.constant 0 : i32
    return %c0_i32, %c0_i32_0 : i32, i32
  }
  func.func @transform_4(%arg0: i32) -> (i32, i32) {
    %c0_i32 = arith.constant 0 : i32
    %c0_i32_0 = arith.constant 0 : i32
    %c0_i32_1 = arith.constant 0 : i32
    return %c0_i32, %c0_i32_0 : i32, i32
  }
  func.func @transform_5(%arg0: i32) -> (i32, i32) {
    %c0_i32 = arith.constant 0 : i32
    %c0_i32_0 = arith.constant 0 : i32
    return %arg0, %c0_i32 : i32, i32
  }
  func.func @transform_6(%arg0: i32) -> (i32, i32) {
    %c0_i32 = arith.constant 0 : i32
    %c0_i32_0 = arith.constant 0 : i32
    return %arg0, %c0_i32 : i32, i32
  }
}

module attributes {stable_mosaic.version = 11 : i64} {
  func.func @_pre_encoder_kernel(%arg0: i32, %arg1: memref<128x3xi32, #tpu.memory_space<vmem>>, %arg2: memref<3x16x32xf32, #tpu.memory_space<vmem>>, %arg3: memref<128x4xf32, #tpu.memory_space<vmem>>, %arg4: memref<4x32xf32, #tpu.memory_space<vmem>>, %arg5: memref<4x32xf32, #tpu.memory_space<vmem>>, %arg6: memref<128x128xf32, #tpu.memory_space<vmem>>, %arg7: memref<128x128xf32, #tpu.memory_space<vmem>>) attributes {dimension_semantics = [#tpu.dimension_semantics<parallel>], iteration_bounds = array<i64: 2>, scalar_prefetch = 0 : i64, scratch_operands = 0 : i64, tpu.core_type = #tpu.core_type<tc>, window_params = [{transform_indices = @transform_0, window_bounds = array<i64: 128, 3>}, {pipeline_mode = #tpu.pipeline_mode<synchronous>, transform_indices = @transform_1, window_bounds = array<i64: 3, 16, 32>}, {transform_indices = @transform_2, window_bounds = array<i64: 128, 4>}, {pipeline_mode = #tpu.pipeline_mode<synchronous>, transform_indices = @transform_3, window_bounds = array<i64: 4, 32>}, {pipeline_mode = #tpu.pipeline_mode<synchronous>, transform_indices = @transform_4, window_bounds = array<i64: 4, 32>}, {transform_indices = @transform_5, window_bounds = array<i64: 128, 128>}, {transform_indices = @transform_6, window_bounds = array<i64: 128, 128>}]} {
    %0 = tpu.iota {dimensions = array<i32: 1>} : vector<128x16xi32>
    %c0 = arith.constant 0 : index
    %c0_0 = arith.constant 0 : index
    %1 = vector.load %arg1[%c0, %c0_0] : memref<128x3xi32, #tpu.memory_space<vmem>>, vector<128x1xi32>
    %2 = vector.broadcast %1 : vector<128x1xi32> to vector<128x16xi32>
    %3 = arith.cmpi eq, %0, %2 : vector<128x16xi32>
    %4 = arith.extui %3 : vector<128x16xi1> to vector<128x16xi32>
    %5 = arith.sitofp %4 : vector<128x16xi32> to vector<128x16xf32>
    %c0_1 = arith.constant 0 : index
    %c0_2 = arith.constant 0 : index
    %c0_3 = arith.constant 0 : index
    %6 = vector.load %arg2[%c0_1, %c0_2, %c0_3] : memref<3x16x32xf32, #tpu.memory_space<vmem>>, vector<1x16x32xf32>
    %7 = vector.shape_cast %6 : vector<1x16x32xf32> to vector<16x32xf32>
    %cst = arith.constant dense<0.000000e+00> : vector<128x32xf32>
    %8 = tpu.matmul %5, %7, %cst {dimension_numbers = #tpu.dot_dimension_numbers<[1], [0], [0], [1], [0, 0, 1, 1], [], []>} : vector<128x16xf32>, vector<16x32xf32>, vector<128x32xf32> -> vector<128x32xf32>
    %c0_4 = arith.constant 0 : index
    %c1 = arith.constant 1 : index
    %9 = vector.load %arg1[%c0_4, %c1] : memref<128x3xi32, #tpu.memory_space<vmem>>, vector<128x1xi32>
    %10 = vector.broadcast %9 : vector<128x1xi32> to vector<128x16xi32>
    %11 = arith.cmpi eq, %0, %10 : vector<128x16xi32>
    %12 = arith.extui %11 : vector<128x16xi1> to vector<128x16xi32>
    %13 = arith.sitofp %12 : vector<128x16xi32> to vector<128x16xf32>
    %c1_5 = arith.constant 1 : index
    %c0_6 = arith.constant 0 : index
    %c0_7 = arith.constant 0 : index
    %14 = vector.load %arg2[%c1_5, %c0_6, %c0_7] : memref<3x16x32xf32, #tpu.memory_space<vmem>>, vector<1x16x32xf32>
    %15 = vector.shape_cast %14 : vector<1x16x32xf32> to vector<16x32xf32>
    %cst_8 = arith.constant dense<0.000000e+00> : vector<128x32xf32>
    %16 = tpu.matmul %13, %15, %cst_8 {dimension_numbers = #tpu.dot_dimension_numbers<[1], [0], [0], [1], [0, 0, 1, 1], [], []>} : vector<128x16xf32>, vector<16x32xf32>, vector<128x32xf32> -> vector<128x32xf32>
    %c0_9 = arith.constant 0 : index
    %c2 = arith.constant 2 : index
    %17 = vector.load %arg1[%c0_9, %c2] : memref<128x3xi32, #tpu.memory_space<vmem>>, vector<128x1xi32>
    %18 = vector.broadcast %17 : vector<128x1xi32> to vector<128x16xi32>
    %19 = arith.cmpi eq, %0, %18 : vector<128x16xi32>
    %20 = arith.extui %19 : vector<128x16xi1> to vector<128x16xi32>
    %21 = arith.sitofp %20 : vector<128x16xi32> to vector<128x16xf32>
    %c2_10 = arith.constant 2 : index
    %c0_11 = arith.constant 0 : index
    %c0_12 = arith.constant 0 : index
    %22 = vector.load %arg2[%c2_10, %c0_11, %c0_12] : memref<3x16x32xf32, #tpu.memory_space<vmem>>, vector<1x16x32xf32>
    %23 = vector.shape_cast %22 : vector<1x16x32xf32> to vector<16x32xf32>
    %cst_13 = arith.constant dense<0.000000e+00> : vector<128x32xf32>
    %24 = tpu.matmul %21, %23, %cst_13 {dimension_numbers = #tpu.dot_dimension_numbers<[1], [0], [0], [1], [0, 0, 1, 1], [], []>} : vector<128x16xf32>, vector<16x32xf32>, vector<128x32xf32> -> vector<128x32xf32>
    %cst_14 = arith.constant 0.000000e+00 : f32
    %25 = vector.broadcast %cst_14 : f32 to vector<128x32xf32>
    %26 = tpu.concatenate %8, %16, %24, %25 in 1 : vector<128x32xf32>, vector<128x32xf32>, vector<128x32xf32>, vector<128x32xf32> -> vector<128x128xf32>
    %c0_15 = arith.constant 0 : index
    %c0_16 = arith.constant 0 : index
    %27 = vector.load %arg6[%c0_15, %c0_16] : memref<128x128xf32, #tpu.memory_space<vmem>>, vector<128x128xf32>
    tpu.vector_store %arg6[%c0_15, %c0_16], %26 {strides = array<i32>} : memref<128x128xf32, #tpu.memory_space<vmem>>, vector<128x128xf32>,
    %c0_17 = arith.constant 0 : index
    %c0_18 = arith.constant 0 : index
    %28 = vector.load %arg3[%c0_17, %c0_18] : memref<128x4xf32, #tpu.memory_space<vmem>>, vector<128x1xf32>
    %c0_19 = arith.constant 0 : index
    %c0_20 = arith.constant 0 : index
    %29 = vector.load %arg4[%c0_19, %c0_20] : memref<4x32xf32, #tpu.memory_space<vmem>>, vector<1x32xf32>
    %30 = vector.broadcast %28 : vector<128x1xf32> to vector<128x32xf32>
    %31 = vector.broadcast %29 : vector<1x32xf32> to vector<128x32xf32>
    %32 = arith.mulf %30, %31 : vector<128x32xf32>
    %c0_21 = arith.constant 0 : index
    %c0_22 = arith.constant 0 : index
    %33 = vector.load %arg5[%c0_21, %c0_22] : memref<4x32xf32, #tpu.memory_space<vmem>>, vector<1x32xf32>
    %34 = vector.broadcast %33 : vector<1x32xf32> to vector<128x32xf32>
    %35 = arith.addf %32, %34 : vector<128x32xf32>
    %c0_23 = arith.constant 0 : index
    %c1_24 = arith.constant 1 : index
    %36 = vector.load %arg3[%c0_23, %c1_24] : memref<128x4xf32, #tpu.memory_space<vmem>>, vector<128x1xf32>
    %c1_25 = arith.constant 1 : index
    %c0_26 = arith.constant 0 : index
    %37 = vector.load %arg4[%c1_25, %c0_26] : memref<4x32xf32, #tpu.memory_space<vmem>>, vector<1x32xf32>
    %38 = vector.broadcast %36 : vector<128x1xf32> to vector<128x32xf32>
    %39 = vector.broadcast %37 : vector<1x32xf32> to vector<128x32xf32>
    %40 = arith.mulf %38, %39 : vector<128x32xf32>
    %c1_27 = arith.constant 1 : index
    %c0_28 = arith.constant 0 : index
    %41 = vector.load %arg5[%c1_27, %c0_28] : memref<4x32xf32, #tpu.memory_space<vmem>>, vector<1x32xf32>
    %42 = vector.broadcast %41 : vector<1x32xf32> to vector<128x32xf32>
    %43 = arith.addf %40, %42 : vector<128x32xf32>
    %c0_29 = arith.constant 0 : index
    %c2_30 = arith.constant 2 : index
    %44 = vector.load %arg3[%c0_29, %c2_30] : memref<128x4xf32, #tpu.memory_space<vmem>>, vector<128x1xf32>
    %c2_31 = arith.constant 2 : index
    %c0_32 = arith.constant 0 : index
    %45 = vector.load %arg4[%c2_31, %c0_32] : memref<4x32xf32, #tpu.memory_space<vmem>>, vector<1x32xf32>
    %46 = vector.broadcast %44 : vector<128x1xf32> to vector<128x32xf32>
    %47 = vector.broadcast %45 : vector<1x32xf32> to vector<128x32xf32>
    %48 = arith.mulf %46, %47 : vector<128x32xf32>
    %c2_33 = arith.constant 2 : index
    %c0_34 = arith.constant 0 : index
    %49 = vector.load %arg5[%c2_33, %c0_34] : memref<4x32xf32, #tpu.memory_space<vmem>>, vector<1x32xf32>
    %50 = vector.broadcast %49 : vector<1x32xf32> to vector<128x32xf32>
    %51 = arith.addf %48, %50 : vector<128x32xf32>
    %c0_35 = arith.constant 0 : index
    %c3 = arith.constant 3 : index
    %52 = vector.load %arg3[%c0_35, %c3] : memref<128x4xf32, #tpu.memory_space<vmem>>, vector<128x1xf32>
    %c3_36 = arith.constant 3 : index
    %c0_37 = arith.constant 0 : index
    %53 = vector.load %arg4[%c3_36, %c0_37] : memref<4x32xf32, #tpu.memory_space<vmem>>, vector<1x32xf32>
    %54 = vector.broadcast %52 : vector<128x1xf32> to vector<128x32xf32>
    %55 = vector.broadcast %53 : vector<1x32xf32> to vector<128x32xf32>
    %56 = arith.mulf %54, %55 : vector<128x32xf32>
    %c3_38 = arith.constant 3 : index
    %c0_39 = arith.constant 0 : index
    %57 = vector.load %arg5[%c3_38, %c0_39] : memref<4x32xf32, #tpu.memory_space<vmem>>, vector<1x32xf32>
    %58 = vector.broadcast %57 : vector<1x32xf32> to vector<128x32xf32>
    %59 = arith.addf %56, %58 : vector<128x32xf32>
    %60 = tpu.concatenate %35, %43, %51, %59 in 1 : vector<128x32xf32>, vector<128x32xf32>, vector<128x32xf32>, vector<128x32xf32> -> vector<128x128xf32>
    %c0_40 = arith.constant 0 : index
    %c0_41 = arith.constant 0 : index
    %61 = vector.load %arg7[%c0_40, %c0_41] : memref<128x128xf32, #tpu.memory_space<vmem>>, vector<128x128xf32>
    tpu.vector_store %arg7[%c0_40, %c0_41], %60 {strides = array<i32>} : memref<128x128xf32, #tpu.memory_space<vmem>>, vector<128x128xf32>,
    return
  }
  func.func @transform_0(%arg0: i32) -> (i32, i32) {
    %c0_i32 = arith.constant 0 : i32
    %c0_i32_0 = arith.constant 0 : i32
    return %arg0, %c0_i32 : i32, i32
  }
  func.func @transform_1(%arg0: i32) -> (i32, i32, i32) {
    %c0_i32 = arith.constant 0 : i32
    %c0_i32_0 = arith.constant 0 : i32
    %c0_i32_1 = arith.constant 0 : i32
    %c0_i32_2 = arith.constant 0 : i32
    return %c0_i32, %c0_i32_0, %c0_i32_1 : i32, i32, i32
  }
  func.func @transform_2(%arg0: i32) -> (i32, i32) {
    %c0_i32 = arith.constant 0 : i32
    %c0_i32_0 = arith.constant 0 : i32
    return %arg0, %c0_i32 : i32, i32
  }
  func.func @transform_3(%arg0: i32) -> (i32, i32) {
    %c0_i32 = arith.constant 0 : i32
    %c0_i32_0 = arith.constant 0 : i32
    %c0_i32_1 = arith.constant 0 : i32
    return %c0_i32, %c0_i32_0 : i32, i32
  }
  func.func @transform_4(%arg0: i32) -> (i32, i32) {
    %c0_i32 = arith.constant 0 : i32
    %c0_i32_0 = arith.constant 0 : i32
    %c0_i32_1 = arith.constant 0 : i32
    return %c0_i32, %c0_i32_0 : i32, i32
  }
  func.func @transform_5(%arg0: i32) -> (i32, i32) {
    %c0_i32 = arith.constant 0 : i32
    %c0_i32_0 = arith.constant 0 : i32
    return %arg0, %c0_i32 : i32, i32
  }
  func.func @transform_6(%arg0: i32) -> (i32, i32) {
    %c0_i32 = arith.constant 0 : i32
    %c0_i32_0 = arith.constant 0 : i32
    return %arg0, %c0_i32 : i32, i32
  }
}

</mosaic_0001>

<llo_original>
// kernel: tpu_custom_call.1
$region0: #{tpu_custom_call.1}
  #allocation0 [shape = 'u32[]', space=smem, size = 0x4, offset = 0x4, fixed_abs, tag = 'smem constant byte address 0x4 - core index']
  #allocation1 [shape = 'u32[144,128]{1,0:T(1,128)}', space=vmem, size = 0x12000, scoped, tag = 'internal scratch']
  %s0 = inlined_call_operand.vmem [shape: s32[256,3], index: 0, kind: input, shape index: {}]
  %s1 = inlined_call_operand.vmem [shape: f32[3,16,32], index: 1, kind: input, shape index: {}]
  %s2 = inlined_call_operand.vmem [shape: f32[256,4], index: 2, kind: input, shape index: {}]
  %s3 = inlined_call_operand.vmem [shape: f32[4,32], index: 3, kind: input, shape index: {}]
  %s4 = inlined_call_operand.vmem [shape: f32[4,32], index: 4, kind: input, shape index: {}]
  %s5 = inlined_call_operand.hbm [shape: f32[256,128], index: 5, kind: output, shape index: {0}]
  %s6 = inlined_call_operand.hbm [shape: f32[256,128], index: 6, kind: output, shape index: {1}]
  %7 = xla_tuple %s5, %s6
  %s8 = sld [smem:[#allocation0]]
  $region61: #{tpu_custom_call.1} parent=0
    _
  %s10 = ssub.s32 1, %s8
  %s11 = scalar_select 0, %s10, %s8
  $region1: #{tpu_custom_call.1} parent=0
    #allocation2 [shape = 'u8[131072]{0}', space=vmem, size = 0x20000, scoped, tag = 'output window, operand 0']
    #allocation3 [shape = 's32[2]{0}', space=sflag, size = 0x8, scoped, tag = 'scoped memory for tpu_custom_call.1']
    #allocation4 [shape = 'u8[131072]{0}', space=vmem, size = 0x20000, scoped, tag = 'output window, operand 1']
    #allocation5 [shape = 's32[2]{0}', space=sflag, size = 0x8, scoped, tag = 'scoped memory for tpu_custom_call.1']
    %12 = vsyncpa [#allocation3], 0
    %s13 = scalar_lea.sflag [#allocation3], 1
    %14 = vsyncpa %s13, 0
    %15 = vsyncpa [#allocation5], 0
    %s16 = scalar_lea.sflag [#allocation5], 1
    %17 = vsyncpa %s16, 0
    loop: start=0, step=1, limit=4
    $region2: #{tpu_custom_call.1} parent=1 // loop_pre_header
      _
    $region3: #{tpu_custom_call.1} parent=1 // loop_header
      %s19 = sphi 0, %s23
      %p20 = scmp.ge.s32.totalorder %s19, 4
      %s29 = sphi 0, %s31
      %s32 = sphi 0, %s29
      %s33 = sphi 0, %s32
      %s49 = sphi 0, %s33
      %s53 = sphi 0, %s53
      %s55 = sphi 0, %s53
      %s56 = sphi 0, %s55
      %s70 = sphi 0, %s56
      %s76 = sphi 0, %s78
      %s79 = sphi 0, %s76
      %s80 = sphi 0, %s79
      %s96 = sphi 0, %s80
      %s100 = sphi 0, %s100
      %s102 = sphi 0, %s100
      %s103 = sphi 0, %s102
      %s117 = sphi 0, %s103
      %s121 = sphi 0, %s121
      %s123 = sphi 0, %s121
      %s124 = sphi 0, %s123
      %s138 = sphi 0, %s124
      %s144 = sphi 0, %s146
      %s147 = sphi 0, %s144
      %s148 = sphi 0, %s147
      %s164 = sphi 0, %s148
      %s170 = sphi 0, %s172
      %s173 = sphi 0, %s170
      %s174 = sphi 0, %s173
      %s190 = sphi 0, %s174
    $region4: #{tpu_custom_call.1} parent=1 // loop_header_branch
      %22 = sbr.rel (%p20) target = $region8
    $region5: #{tpu_custom_call.1} parent=1 // loop_body
      %s24 = ssub.s32 %s19, 1
      %s25 = ssub.s32 %s19, 2
      %s26 = sadd.s32 %s19, 1
      %s27 = ssub.s32 %s19, %s26
      %p28 = scmp.eq.s32.totalorder %s27, 0
      %s30 = sadd.s32 %s29, 1
      %s31 = scalar_select %p28, %s29, %s30
      %p34 = pneg %p28
      %p35 = scmp.eq.s32.totalorder %s19, 1
      %p36 = por %p34, %p35
      %p37 = scmp.ne.s32.totalorder %s29, %s32
      %p38 = scmp.eq.s32.totalorder %s19, 0
      %p39 = por %p37, %p38
      %p40 = scmp.ne.s32.totalorder %s29, %s32
      %p41 = scmp.eq.s32.totalorder %s24, 1
      %p42 = por %p40, %p41
      %p43 = scmp.ne.s32.totalorder %s32, %s33
      %p44 = scmp.eq.s32.totalorder %s24, 0
      %p45 = por %p43, %p44
      %p46 = scmp.ne.s32.totalorder %s32, %s33
      %p47 = scmp.eq.s32.totalorder %s25, 1
      %p48 = por %p46, %p47
      %p50 = scmp.ne.s32.totalorder %s33, %s49
      %p51 = scmp.eq.s32.totalorder %s25, 0
      %p52 = por %p50, %p51
      %s54 = sadd.s32 %s53, 1
      %p57 = scmp.eq.s32.totalorder %s19, 1
      %p58 = scmp.ne.s32.totalorder %s53, %s55
      %p59 = scmp.eq.s32.totalorder %s19, 0
      %p60 = por %p58, %p59
      %p61 = scmp.ne.s32.totalorder %s53, %s55
      %p62 = scmp.eq.s32.totalorder %s24, 1
      %p63 = por %p61, %p62
      %p64 = scmp.ne.s32.totalorder %s55, %s56
      %p65 = scmp.eq.s32.totalorder %s24, 0
      %p66 = por %p64, %p65
      %p67 = scmp.ne.s32.totalorder %s55, %s56
      %p68 = scmp.eq.s32.totalorder %s25, 1
      %p69 = por %p67, %p68
      %p71 = scmp.ne.s32.totalorder %s56, %s70
      %p72 = scmp.eq.s32.totalorder %s25, 0
      %p73 = por %p71, %p72
      %s74 = ssub.s32 %s19, %s26
      %p75 = scmp.eq.s32.totalorder %s74, 0
      %s77 = sadd.s32 %s76, 1
      %s78 = scalar_select %p75, %s76, %s77
      %p81 = pneg %p75
      %p82 = scmp.eq.s32.totalorder %s19, 1
      %p83 = por %p81, %p82
      %p84 = scmp.ne.s32.totalorder %s76, %s79
      %p85 = scmp.eq.s32.totalorder %s19, 0
      %p86 = por %p84, %p85
      %p87 = scmp.ne.s32.totalorder %s76, %s79
      %p88 = scmp.eq.s32.totalorder %s24, 1
      %p89 = por %p87, %p88
      %p90 = scmp.ne.s32.totalorder %s79, %s80
      %p91 = scmp.eq.s32.totalorder %s24, 0
      %p92 = por %p90, %p91
      %p93 = scmp.ne.s32.totalorder %s79, %s80
      %p94 = scmp.eq.s32.totalorder %s25, 1
      %p95 = por %p93, %p94
      %p97 = scmp.ne.s32.totalorder %s80, %s96
      %p98 = scmp.eq.s32.totalorder %s25, 0
      %p99 = por %p97, %p98
      %s101 = sadd.s32 %s100, 1
      %p104 = scmp.eq.s32.totalorder %s19, 1
      %p105 = scmp.ne.s32.totalorder %s100, %s102
      %p106 = scmp.eq.s32.totalorder %s19, 0
      %p107 = por %p105, %p106
      %p108 = scmp.ne.s32.totalorder %s100, %s102
      %p109 = scmp.eq.s32.totalorder %s24, 1
      %p110 = por %p108, %p109
      %p111 = scmp.ne.s32.totalorder %s102, %s103
      %p112 = scmp.eq.s32.totalorder %s24, 0
      %p113 = por %p111, %p112
      %p114 = scmp.ne.s32.totalorder %s102, %s103
      %p115 = scmp.eq.s32.totalorder %s25, 1
      %p116 = por %p114, %p115
      %p118 = scmp.ne.s32.totalorder %s103, %s117
      %p119 = scmp.eq.s32.totalorder %s25, 0
      %p120 = por %p118, %p119
      %s122 = sadd.s32 %s121, 1
      %p125 = scmp.eq.s32.totalorder %s19, 1
      %p126 = scmp.ne.s32.totalorder %s121, %s123
      %p127 = scmp.eq.s32.totalorder %s19, 0
      %p128 = por %p126, %p127
      %p129 = scmp.ne.s32.totalorder %s121, %s123
      %p130 = scmp.eq.s32.totalorder %s24, 1
      %p131 = por %p129, %p130
      %p132 = scmp.ne.s32.totalorder %s123, %s124
      %p133 = scmp.eq.s32.totalorder %s24, 0
      %p134 = por %p132, %p133
      %p135 = scmp.ne.s32.totalorder %s123, %s124
      %p136 = scmp.eq.s32.totalorder %s25, 1
      %p137 = por %p135, %p136
      %p139 = scmp.ne.s32.totalorder %s124, %s138
      %p140 = scmp.eq.s32.totalorder %s25, 0
      %p141 = por %p139, %p140
      %s142 = ssub.s32 %s19, %s26
      %p143 = scmp.eq.s32.totalorder %s142, 0
      %s145 = sadd.s32 %s144, 1
      %s146 = scalar_select %p143, %s144, %s145
      %p149 = pneg %p143
      %p150 = scmp.eq.s32.totalorder %s19, 1
      %p151 = por %p149, %p150
      %p152 = scmp.ne.s32.totalorder %s144, %s147
      %p153 = scmp.eq.s32.totalorder %s19, 0
      %p154 = por %p152, %p153
      %p155 = scmp.ne.s32.totalorder %s144, %s147
      %p156 = scmp.eq.s32.totalorder %s24, 1
      %p157 = por %p155, %p156
      %p158 = scmp.ne.s32.totalorder %s147, %s148
      %p159 = scmp.eq.s32.totalorder %s24, 0
      %p160 = por %p158, %p159
      %p161 = scmp.ne.s32.totalorder %s147, %s148
      %p162 = scmp.eq.s32.totalorder %s25, 1
      %p163 = por %p161, %p162
      %p165 = scmp.ne.s32.totalorder %s148, %s164
      %p166 = scmp.eq.s32.totalorder %s25, 0
      %p167 = por %p165, %p166
      %s168 = ssub.s32 %s19, %s26
      %p169 = scmp.eq.s32.totalorder %s168, 0
      %s171 = sadd.s32 %s170, 1
      %s172 = scalar_select %p169, %s170, %s171
      %p175 = pneg %p169
      %p176 = scmp.eq.s32.totalorder %s19, 1
      %p177 = por %p175, %p176
      %p178 = scmp.ne.s32.totalorder %s170, %s173
      %p179 = scmp.eq.s32.totalorder %s19, 0
      %p180 = por %p178, %p179
      %p181 = scmp.ne.s32.totalorder %s170, %s173
      %p182 = scmp.eq.s32.totalorder %s24, 1
      %p183 = por %p181, %p182
      %p184 = scmp.ne.s32.totalorder %s173, %s174
      %p185 = scmp.eq.s32.totalorder %s24, 0
      %p186 = por %p184, %p185
      %p187 = scmp.ne.s32.totalorder %s173, %s174
      %p188 = scmp.eq.s32.totalorder %s25, 1
      %p189 = por %p187, %p188
      %p191 = scmp.ne.s32.totalorder %s174, %s190
      %p192 = scmp.eq.s32.totalorder %s25, 0
      %p193 = por %p191, %p192
      %p194 = scmp.le.s32.totalorder 1, %s19
      %p195 = scmp.lt.s32.totalorder %s19, 3
      %p196 = pnand %p194, %p195
      %p197 = pneg %p196
      // Predicated region
      $region9: #{tpu_custom_call.1} parent=5 // pred_check
        _
      $region10: #{tpu_custom_call.1} parent=5 // pred_check_branch
        %199 = sbr.rel (%p196) target = $region12
      $region11: #{tpu_custom_call.1} parent=5 // pred_region
        %s200 = ssub.s32 %s19, 1
        // Predicated region
        $region13: #{tpu_custom_call.1} parent=11 // pred_check
          %p201 = pneg %p66
        $region14: #{tpu_custom_call.1} parent=11 // pred_check_branch
          %203 = sbr.rel (%p201) target = $region16
        $region15: #{tpu_custom_call.1} parent=11 // pred_region
          _
        $region16: #{tpu_custom_call.1} parent=11 // pred_fallthru
          _
        // Predicated region
        $region17: #{tpu_custom_call.1} parent=11 // pred_check
          %p204 = pneg %p113
        $region18: #{tpu_custom_call.1} parent=11 // pred_check_branch
          %206 = sbr.rel (%p204) target = $region20
        $region19: #{tpu_custom_call.1} parent=11 // pred_region
          _
        $region20: #{tpu_custom_call.1} parent=11 // pred_fallthru
          _
        // Predicated region
        $region21: #{tpu_custom_call.1} parent=11 // pred_check
          %p207 = pneg %p134
        $region22: #{tpu_custom_call.1} parent=11 // pred_check_branch
          %209 = sbr.rel (%p207) target = $region24
        $region23: #{tpu_custom_call.1} parent=11 // pred_region
          _
        $region24: #{tpu_custom_call.1} parent=11 // pred_fallthru
          _
      $region12: #{tpu_custom_call.1} parent=5 // pred_fallthru
        _
      %p210 = scmp.lt.s32.totalorder %s19, 2
      // Predicated region
      $region25: #{tpu_custom_call.1} parent=5 // pred_check
        %p211 = pneg %p210
      $region26: #{tpu_custom_call.1} parent=5 // pred_check_branch
        %213 = sbr.rel (%p211) target = $region28
      $region27: #{tpu_custom_call.1} parent=5 // pred_region
        // Predicated region
        $region29: #{tpu_custom_call.1} parent=27 // pred_check
          %p214 = pneg %p39
        $region30: #{tpu_custom_call.1} parent=27 // pred_check_branch
          %216 = sbr.rel (%p214) target = $region32
        $region31: #{tpu_custom_call.1} parent=27 // pred_region
          %s217 = smul.u32 16, %s19
          %p218 = scmp.lt.s32.totalorder %s217, 31
          %s219 = scalar_select %p218, %s217, 31
          %s220 = smul.addr %s219, 8
          %s221 = scalar_lea.vmem %s0, %s220
          %s222 = smul.u32 16, %s19
        $region32: #{tpu_custom_call.1} parent=27 // pred_fallthru
          _
        // Predicated region
        $region33: #{tpu_custom_call.1} parent=27 // pred_check
          %p223 = pneg %p86
        $region34: #{tpu_custom_call.1} parent=27 // pred_check_branch
          %225 = sbr.rel (%p223) target = $region36
        $region35: #{tpu_custom_call.1} parent=27 // pred_region
          %s226 = smul.u32 16, %s19
          %p227 = scmp.lt.s32.totalorder %s226, 31
          %s228 = scalar_select %p227, %s226, 31
          %s229 = smul.addr %s228, 8
          %s230 = scalar_lea.vmem %s2, %s229
          %s231 = smul.u32 16, %s19
        $region36: #{tpu_custom_call.1} parent=27 // pred_fallthru
          _
      $region28: #{tpu_custom_call.1} parent=5 // pred_fallthru
        _
      %p232 = scmp.le.s32.totalorder 1, %s19
      %p233 = scmp.lt.s32.totalorder %s19, 3
      %p234 = pnand %p232, %p233
      %p235 = pneg %p234
      // Predicated region
      $region37: #{tpu_custom_call.1} parent=5 // pred_check
        _
      $region38: #{tpu_custom_call.1} parent=5 // pred_check_branch
        %237 = sbr.rel (%p234) target = $region40
      $region39: #{tpu_custom_call.1} parent=5 // pred_region
        %s238 = ssub.s32 %s19, 1
        %s239 = smul.u32 16, %s24
        %p240 = scmp.lt.s32.totalorder %s239, 31
        %s241 = scalar_select %p240, %s239, 31
        %s242 = smul.addr %s241, 8
        %s243 = scalar_lea.vmem %s0, %s242
        %p244 = pneg %p45
        %p245 = pneg %p42
        %p246 = pneg %p66
        %p247 = pneg %p63
        %s248 = smul.u32 16, %s24
        %p249 = scmp.lt.s32.totalorder %s248, 31
        %s250 = scalar_select %p249, %s248, 31
        %s251 = smul.addr %s250, 8
        %s252 = scalar_lea.vmem %s2, %s251
        %p253 = pneg %p92
        %p254 = pneg %p89
        %p255 = pneg %p113
        %p256 = pneg %p110
        %p257 = pneg %p134
        %p258 = pneg %p131
        %p259 = pneg %p160
        %p260 = pneg %p157
        %s261 = sand.u32 %s147, 1
        %s262 = scalar_lea.sflag [#allocation3], %s261
        %s263 = sand.u32 %s147, 1
        %s264 = smul.addr %s263, 128
        %s265 = scalar_lea.vmem [#allocation2], %s264
        %p266 = pneg %p186
        %p267 = pneg %p183
        %s268 = sand.u32 %s173, 1
        %s269 = scalar_lea.sflag [#allocation5], %s268
        %s270 = sand.u32 %s173, 1
        %s271 = smul.addr %s270, 128
        %s272 = scalar_lea.vmem [#allocation4], %s271
        %s273 = smul.u32 16, %s24
        %p274 = scmp.lt.s32.totalorder %s273, 31
        %s275 = scalar_select %p274, %s273, 31
        %s276 = smul.addr %s275, 8
        %s277 = scalar_lea.vmem %s0, %s276
        %s278 = smul.u32 16, %s24
        %s279 = smul.u32 16, %s24
        %p280 = scmp.lt.s32.totalorder %s279, 31
        %s281 = scalar_select %p280, %s279, 31
        %s282 = smul.addr %s281, 8
        %s283 = scalar_lea.vmem %s2, %s282
        %s284 = smul.u32 16, %s24
        %s285 = smul.u32 16, %s24
        %s286 = smul.u32 16, %s24
        %v287 = vlaneseq
        %v288 = vand.u32 %v287, 127
        %v289 = vld [vmem:[%s277] sm:$0xff]
        %v290 = vld [vmem:[%s277 + $0x8] sm:$0xff]
        %v291 = vld [vmem:[%s277 + $0x10] sm:$0xff]
        %v292 = vld [vmem:[%s277 + $0x18] sm:$0xff]
        %v293 = vld [vmem:[%s277 + $0x20] sm:$0xff]
        %v294 = vld [vmem:[%s277 + $0x28] sm:$0xff]
        %v295 = vld [vmem:[%s277 + $0x30] sm:$0xff]
        %v296 = vld [vmem:[%s277 + $0x38] sm:$0xff]
        %v297 = vld [vmem:[%s277 + $0x40] sm:$0xff]
        %v298 = vld [vmem:[%s277 + $0x48] sm:$0xff]
        %v299 = vld [vmem:[%s277 + $0x50] sm:$0xff]
        %v300 = vld [vmem:[%s277 + $0x58] sm:$0xff]
        %v301 = vld [vmem:[%s277 + $0x60] sm:$0xff]
        %v302 = vld [vmem:[%s277 + $0x68] sm:$0xff]
        %v303 = vld [vmem:[%s277 + $0x70] sm:$0xff]
        %v304 = vld [vmem:[%s277 + $0x78] sm:$0xff]
        %305 = vset.pattern.permute.xlu0 0
        %306 = vperm.xlu0 %305, %v289
        %v307 = vpop.permute.xlu0 %306
        %308 = vset.pattern.permute.xlu0 0
        %309 = vperm.xlu0 %308, %v290
        %v310 = vpop.permute.xlu0 %309
        %311 = vset.pattern.permute.xlu0 0
        %312 = vperm.xlu0 %311, %v291
        %v313 = vpop.permute.xlu0 %312
        %314 = vset.pattern.permute.xlu0 0
        %315 = vperm.xlu0 %314, %v292
        %v316 = vpop.permute.xlu0 %315
        %317 = vset.pattern.permute.xlu0 0
        %318 = vperm.xlu0 %317, %v293
        %v319 = vpop.permute.xlu0 %318
        %320 = vset.pattern.permute.xlu0 0
        %321 = vperm.xlu0 %320, %v294
        %v322 = vpop.permute.xlu0 %321
        %323 = vset.pattern.permute.xlu0 0
        %324 = vperm.xlu0 %323, %v295
        %v325 = vpop.permute.xlu0 %324
        %326 = vset.pattern.permute.xlu0 0
        %327 = vperm.xlu0 %326, %v296
        %v328 = vpop.permute.xlu0 %327
        %329 = vset.pattern.permute.xlu0 0
        %330 = vperm.xlu0 %329, %v297
        %v331 = vpop.permute.xlu0 %330
        %332 = vset.pattern.permute.xlu0 0
        %333 = vperm.xlu0 %332, %v298
        %v334 = vpop.permute.xlu0 %333
        %335 = vset.pattern.permute.xlu0 0
        %336 = vperm.xlu0 %335, %v299
        %v337 = vpop.permute.xlu0 %336
        %338 = vset.pattern.permute.xlu0 0
        %339 = vperm.xlu0 %338, %v300
        %v340 = vpop.permute.xlu0 %339
        %341 = vset.pattern.permute.xlu0 0
        %342 = vperm.xlu0 %341, %v301
        %v343 = vpop.permute.xlu0 %342
        %344 = vset.pattern.permute.xlu0 0
        %345 = vperm.xlu0 %344, %v302
        %v346 = vpop.permute.xlu0 %345
        %347 = vset.pattern.permute.xlu0 0
        %348 = vperm.xlu0 %347, %v303
        %v349 = vpop.permute.xlu0 %348
        %350 = vset.pattern.permute.xlu0 0
        %351 = vperm.xlu0 %350, %v304
        %v352 = vpop.permute.xlu0 %351
        %vm353 = vcmp.eq.s32.totalorder %v288, %v307
        %vm354 = vcmp.eq.s32.totalorder %v288, %v310
        %vm355 = vcmp.eq.s32.totalorder %v288, %v313
        %vm356 = vcmp.eq.s32.totalorder %v288, %v316
        %vm357 = vcmp.eq.s32.totalorder %v288, %v319
        %vm358 = vcmp.eq.s32.totalorder %v288, %v322
        %vm359 = vcmp.eq.s32.totalorder %v288, %v325
        %vm360 = vcmp.eq.s32.totalorder %v288, %v328
        %vm361 = vcmp.eq.s32.totalorder %v288, %v331
        %vm362 = vcmp.eq.s32.totalorder %v288, %v334
        %vm363 = vcmp.eq.s32.totalorder %v288, %v337
        %vm364 = vcmp.eq.s32.totalorder %v288, %v340
        %vm365 = vcmp.eq.s32.totalorder %v288, %v343
        %vm366 = vcmp.eq.s32.totalorder %v288, %v346
        %vm367 = vcmp.eq.s32.totalorder %v288, %v349
        %vm368 = vcmp.eq.s32.totalorder %v288, %v352
        %v369 = vsel %vm353, 1, 0
        %v370 = vsel %vm354, 1, 0
        %v371 = vsel %vm355, 1, 0
        %v372 = vsel %vm356, 1, 0
        %v373 = vsel %vm357, 1, 0
        %v374 = vsel %vm358, 1, 0
        %v375 = vsel %vm359, 1, 0
        %v376 = vsel %vm360, 1, 0
        %v377 = vsel %vm361, 1, 0
        %v378 = vsel %vm362, 1, 0
        %v379 = vsel %vm363, 1, 0
        %v380 = vsel %vm364, 1, 0
        %v381 = vsel %vm365, 1, 0
        %v382 = vsel %vm366, 1, 0
        %v383 = vsel %vm367, 1, 0
        %v384 = vsel %vm368, 1, 0
        %v385 = vcvt.s32.f32 %v369
        %v386 = vcvt.s32.f32 %v370
        %v387 = vcvt.s32.f32 %v371
        %v388 = vcvt.s32.f32 %v372
        %v389 = vcvt.s32.f32 %v373
        %v390 = vcvt.s32.f32 %v374
        %v391 = vcvt.s32.f32 %v375
        %v392 = vcvt.s32.f32 %v376
        %v393 = vcvt.s32.f32 %v377
        %v394 = vcvt.s32.f32 %v378
        %v395 = vcvt.s32.f32 %v379
        %v396 = vcvt.s32.f32 %v380
        %v397 = vcvt.s32.f32 %v381
        %v398 = vcvt.s32.f32 %v382
        %v399 = vcvt.s32.f32 %v383
        %v400 = vcvt.s32.f32 %v384
        %v401 = vld [vmem:[%s1] sm:$0xff]
        %v402 = vld [vmem:[%s1 + $0x8] sm:$0xff]
        %vm403 = vcmask 130048
        %v405 = vsel %vm403, %v385, 0
        %v408 = vsel %vm403, %v386, 0
        %v411 = vsel %vm403, %v387, 0
        %v414 = vsel %vm403, %v388, 0
        %v417 = vsel %vm403, %v389, 0
        %v420 = vsel %vm403, %v390, 0
        %v423 = vsel %vm403, %v391, 0
        %v426 = vsel %vm403, %v392, 0
        %v429 = vsel %vm403, %v393, 0
        %v432 = vsel %vm403, %v394, 0
        %v435 = vsel %vm403, %v395, 0
        %v438 = vsel %vm403, %v396, 0
        %v441 = vsel %vm403, %v397, 0
        %v444 = vsel %vm403, %v398, 0
        %v447 = vsel %vm403, %v399, 0
        %v450 = vsel %vm403, %v400, 0
        %452 = vmatprep.subr.mxu0 0.0
        %453 = vmatpush1.msra.mxu0 0.0
        %454 = vmatprep.subr.mxu0 0.0
        %455 = vmatpush1.msra.mxu0 0.0
        %456 = vmatprep.subr.mxu0 0.0
        %457 = vmatpush1.msra.mxu0 0.0
        %458 = vmatprep.subr.mxu0 0.0
        %459 = vmatpush1.msra.mxu0 0.0
        %460 = vmatprep.subr.mxu0 0.0
        %461 = vmatpush1.msra.mxu0 0.0
        %462 = vmatprep.subr.mxu0 0.0
        %463 = vmatpush1.msra.mxu0 0.0
        %464 = vmatprep.subr.mxu0 0.0
        %465 = vmatpush1.msra.mxu0 0.0
        %466 = vmatprep.subr.mxu0 0.0
        %467 = vmatpush1.msra.mxu0 0.0
        %468 = vmatprep.subr.mxu0 0.0
        %469 = vmatpush1.msra.mxu0 0.0
        %470 = vmatprep.subr.mxu0 0.0
        %471 = vmatpush1.msra.mxu0 0.0
        %472 = vmatprep.subr.mxu0 0.0
        %473 = vmatpush1.msra.mxu0 0.0
        %474 = vmatprep.subr.mxu0 0.0
        %475 = vmatpush1.msra.mxu0 0.0
        %476 = vmatprep.subr.mxu0 0.0
        %477 = vmatpush1.msra.mxu0 0.0
        %478 = vmatprep.subr.mxu0 0.0
        %479 = vmatpush1.msra.mxu0 0.0
        %480 = vmatprep.subr.mxu0 0.0
        %481 = vmatpush1.msra.mxu0 %v402
        %482 = vmatprep.subr.mxu0 0.0
        %483 = vmatpush1.msra.mxu0 %v401
        %484 = vmatprep.subr.mxu0 0.0
        %485 = vmatpush2.msra.mxu0 0.0
        %486 = vmatprep.subr.mxu0 0.0
        %487 = vmatpush2.msra.mxu0 0.0
        %488 = vmatprep.subr.mxu0 0.0
        %489 = vmatpush2.msra.mxu0 0.0
        %490 = vmatprep.subr.mxu0 0.0
        %491 = vmatpush2.msra.mxu0 0.0
        %492 = vmatprep.subr.mxu0 0.0
        %493 = vmatpush2.msra.mxu0 0.0
        %494 = vmatprep.subr.mxu0 0.0
        %495 = vmatpush2.msra.mxu0 0.0
        %496 = vmatprep.subr.mxu0 0.0
        %497 = vmatpush2.msra.mxu0 0.0
        %498 = vmatprep.subr.mxu0 0.0
        %499 = vmatpush2.msra.mxu0 0.0
        %500 = vmatprep.subr.mxu0 0.0
        %501 = vmatpush2.msra.mxu0 0.0
        %502 = vmatprep.subr.mxu0 0.0
        %503 = vmatpush2.msra.mxu0 0.0
        %504 = vmatprep.subr.mxu0 0.0
        %505 = vmatpush2.msra.mxu0 0.0
        %506 = vmatprep.subr.mxu0 0.0
        %507 = vmatpush2.msra.mxu0 0.0
        %508 = vmatprep.subr.mxu0 0.0
        %509 = vmatpush2.msra.mxu0 0.0
        %510 = vmatprep.subr.mxu0 0.0
        %511 = vmatpush2.msra.mxu0 0.0
        %512 = vmatprep.subr.mxu0 0.0
        %513 = vmatpush2.msra.mxu0 0.0
        %514 = vmatprep.subr.mxu0 0.0
        %515 = vmatpush2.msra.mxu0 0.0
        %516 = vmatprep.mubr.f32.mxu0 0.0
        %517 = vmatmul.mubr.f32.gmra.mxu0 %v405
        %v518 = vpop.f32.mrf.mxu0
        %v519 = vadd.f32 0.0, %v518
        %v520 = vpop.f32.mrf.mxu0
        %521 = vmatprep.mubr.f32.mxu0 0.0
        %522 = vmatmul.mubr.f32.gmra.mxu0 %v408
        %v523 = vpop.f32.mrf.mxu0
        %v524 = vadd.f32 0.0, %v523
        %v525 = vpop.f32.mrf.mxu0
        %526 = vmatprep.mubr.f32.mxu0 0.0
        %527 = vmatmul.mubr.f32.gmra.mxu0 %v411
        %v528 = vpop.f32.mrf.mxu0
        %v529 = vadd.f32 0.0, %v528
        %v530 = vpop.f32.mrf.mxu0
        %531 = vmatprep.mubr.f32.mxu0 0.0
        %532 = vmatmul.mubr.f32.gmra.mxu0 %v414
        %v533 = vpop.f32.mrf.mxu0
        %v534 = vadd.f32 0.0, %v533
        %v535 = vpop.f32.mrf.mxu0
        %536 = vmatprep.mubr.f32.mxu0 0.0
        %537 = vmatmul.mubr.f32.gmra.mxu0 %v417
        %v538 = vpop.f32.mrf.mxu0
        %v539 = vadd.f32 0.0, %v538
        %v540 = vpop.f32.mrf.mxu0
        %541 = vmatprep.mubr.f32.mxu0 0.0
        %542 = vmatmul.mubr.f32.gmra.mxu0 %v420
        %v543 = vpop.f32.mrf.mxu0
        %v544 = vadd.f32 0.0, %v543
        %v545 = vpop.f32.mrf.mxu0
        %546 = vmatprep.mubr.f32.mxu0 0.0
        %547 = vmatmul.mubr.f32.gmra.mxu0 %v423
        %v548 = vpop.f32.mrf.mxu0
        %v549 = vadd.f32 0.0, %v548
        %v550 = vpop.f32.mrf.mxu0
        %551 = vmatprep.mubr.f32.mxu0 0.0
        %552 = vmatmul.mubr.f32.gmra.mxu0 %v426
        %v553 = vpop.f32.mrf.mxu0
        %v554 = vadd.f32 0.0, %v553
        %v555 = vpop.f32.mrf.mxu0
        %556 = vmatprep.mubr.f32.mxu0 0.0
        %557 = vmatmul.mubr.f32.gmra.mxu0 %v429
        %v558 = vpop.f32.mrf.mxu0
        %v559 = vadd.f32 0.0, %v558
        %v560 = vpop.f32.mrf.mxu0
        %561 = vmatprep.mubr.f32.mxu0 0.0
        %562 = vmatmul.mubr.f32.gmra.mxu0 %v432
        %v563 = vpop.f32.mrf.mxu0
        %v564 = vadd.f32 0.0, %v563
        %v565 = vpop.f32.mrf.mxu0
        %566 = vmatprep.mubr.f32.mxu0 0.0
        %567 = vmatmul.mubr.f32.gmra.mxu0 %v435
        %v568 = vpop.f32.mrf.mxu0
        %v569 = vadd.f32 0.0, %v568
        %v570 = vpop.f32.mrf.mxu0
        %571 = vmatprep.mubr.f32.mxu0 0.0
        %572 = vmatmul.mubr.f32.gmra.mxu0 %v438
        %v573 = vpop.f32.mrf.mxu0
        %v574 = vadd.f32 0.0, %v573
        %v575 = vpop.f32.mrf.mxu0
        %576 = vmatprep.mubr.f32.mxu0 0.0
        %577 = vmatmul.mubr.f32.gmra.mxu0 %v441
        %v578 = vpop.f32.mrf.mxu0
        %v579 = vadd.f32 0.0, %v578
        %v580 = vpop.f32.mrf.mxu0
        %581 = vmatprep.mubr.f32.mxu0 0.0
        %582 = vmatmul.mubr.f32.gmra.mxu0 %v444
        %v583 = vpop.f32.mrf.mxu0
        %v584 = vadd.f32 0.0, %v583
        %v585 = vpop.f32.mrf.mxu0
        %586 = vmatprep.mubr.f32.mxu0 0.0
        %587 = vmatmul.mubr.f32.gmra.mxu0 %v447
        %v588 = vpop.f32.mrf.mxu0
        %v589 = vadd.f32 0.0, %v588
        %v590 = vpop.f32.mrf.mxu0
        %591 = vmatprep.mubr.f32.mxu0 0.0
        %592 = vmatmul.mubr.f32.gmra.mxu0 %v450
        %v593 = vpop.f32.mrf.mxu0
        %v594 = vadd.f32 0.0, %v593
        %v595 = vpop.f32.mrf.mxu0
        %596 = vdwg.mxu0
        %597 = vset.pattern.permute.xlu0 1
        %598 = vperm.xlu0 %597, %v289
        %v599 = vpop.permute.xlu0 %598
        %600 = vset.pattern.permute.xlu0 1
        %601 = vperm.xlu0 %600, %v290
        %v602 = vpop.permute.xlu0 %601
        %603 = vset.pattern.permute.xlu0 1
        %604 = vperm.xlu0 %603, %v291
        %v605 = vpop.permute.xlu0 %604
        %606 = vset.pattern.permute.xlu0 1
        %607 = vperm.xlu0 %606, %v292
        %v608 = vpop.permute.xlu0 %607
        %609 = vset.pattern.permute.xlu0 1
        %610 = vperm.xlu0 %609, %v293
        %v611 = vpop.permute.xlu0 %610
        %612 = vset.pattern.permute.xlu0 1
        %613 = vperm.xlu0 %612, %v294
        %v614 = vpop.permute.xlu0 %613
        %615 = vset.pattern.permute.xlu0 1
        %616 = vperm.xlu0 %615, %v295
        %v617 = vpop.permute.xlu0 %616
        %618 = vset.pattern.permute.xlu0 1
        %619 = vperm.xlu0 %618, %v296
        %v620 = vpop.permute.xlu0 %619
        %621 = vset.pattern.permute.xlu0 1
        %622 = vperm.xlu0 %621, %v297
        %v623 = vpop.permute.xlu0 %622
        %624 = vset.pattern.permute.xlu0 1
        %625 = vperm.xlu0 %624, %v298
        %v626 = vpop.permute.xlu0 %625
        %627 = vset.pattern.permute.xlu0 1
        %628 = vperm.xlu0 %627, %v299
        %v629 = vpop.permute.xlu0 %628
        %630 = vset.pattern.permute.xlu0 1
        %631 = vperm.xlu0 %630, %v300
        %v632 = vpop.permute.xlu0 %631
        %633 = vset.pattern.permute.xlu0 1
        %634 = vperm.xlu0 %633, %v301
        %v635 = vpop.permute.xlu0 %634
        %636 = vset.pattern.permute.xlu0 1
        %637 = vperm.xlu0 %636, %v302
        %v638 = vpop.permute.xlu0 %637
        %639 = vset.pattern.permute.xlu0 1
        %640 = vperm.xlu0 %639, %v303
        %v641 = vpop.permute.xlu0 %640
        %642 = vset.pattern.permute.xlu0 1
        %643 = vperm.xlu0 %642, %v304
        %v644 = vpop.permute.xlu0 %643
        %vm645 = vcmp.eq.s32.totalorder %v288, %v599
        %vm646 = vcmp.eq.s32.totalorder %v288, %v602
        %vm647 = vcmp.eq.s32.totalorder %v288, %v605
        %vm648 = vcmp.eq.s32.totalorder %v288, %v608
        %vm649 = vcmp.eq.s32.totalorder %v288, %v611
        %vm650 = vcmp.eq.s32.totalorder %v288, %v614
        %vm651 = vcmp.eq.s32.totalorder %v288, %v617
        %vm652 = vcmp.eq.s32.totalorder %v288, %v620
        %vm653 = vcmp.eq.s32.totalorder %v288, %v623
        %vm654 = vcmp.eq.s32.totalorder %v288, %v626
        %vm655 = vcmp.eq.s32.totalorder %v288, %v629
        %vm656 = vcmp.eq.s32.totalorder %v288, %v632
        %vm657 = vcmp.eq.s32.totalorder %v288, %v635
        %vm658 = vcmp.eq.s32.totalorder %v288, %v638
        %vm659 = vcmp.eq.s32.totalorder %v288, %v641
        %vm660 = vcmp.eq.s32.totalorder %v288, %v644
        %v661 = vsel %vm645, 1, 0
        %v662 = vsel %vm646, 1, 0
        %v663 = vsel %vm647, 1, 0
        %v664 = vsel %vm648, 1, 0
        %v665 = vsel %vm649, 1, 0
        %v666 = vsel %vm650, 1, 0
        %v667 = vsel %vm651, 1, 0
        %v668 = vsel %vm652, 1, 0
        %v669 = vsel %vm653, 1, 0
        %v670 = vsel %vm654, 1, 0
        %v671 = vsel %vm655, 1, 0
        %v672 = vsel %vm656, 1, 0
        %v673 = vsel %vm657, 1, 0
        %v674 = vsel %vm658, 1, 0
        %v675 = vsel %vm659, 1, 0
        %v676 = vsel %vm660, 1, 0
        %v677 = vcvt.s32.f32 %v661
        %v678 = vcvt.s32.f32 %v662
        %v679 = vcvt.s32.f32 %v663
        %v680 = vcvt.s32.f32 %v664
        %v681 = vcvt.s32.f32 %v665
        %v682 = vcvt.s32.f32 %v666
        %v683 = vcvt.s32.f32 %v667
        %v684 = vcvt.s32.f32 %v668
        %v685 = vcvt.s32.f32 %v669
        %v686 = vcvt.s32.f32 %v670
        %v687 = vcvt.s32.f32 %v671
        %v688 = vcvt.s32.f32 %v672
        %v689 = vcvt.s32.f32 %v673
        %v690 = vcvt.s32.f32 %v674
        %v691 = vcvt.s32.f32 %v675
        %v692 = vcvt.s32.f32 %v676
        %s693 = scalar_lea.vmem %s1, 16
        %v694 = vld [vmem:[%s693] sm:$0xff]
        %v695 = vld [vmem:[%s693 + $0x8] sm:$0xff]
        %v697 = vsel %vm403, %v677, 0
        %v700 = vsel %vm403, %v678, 0
        %v703 = vsel %vm403, %v679, 0
        %v706 = vsel %vm403, %v680, 0
        %v709 = vsel %vm403, %v681, 0
        %v712 = vsel %vm403, %v682, 0
        %v715 = vsel %vm403, %v683, 0
        %v718 = vsel %vm403, %v684, 0
        %v721 = vsel %vm403, %v685, 0
        %v724 = vsel %vm403, %v686, 0
        %v727 = vsel %vm403, %v687, 0
        %v730 = vsel %vm403, %v688, 0
        %v733 = vsel %vm403, %v689, 0
        %v736 = vsel %vm403, %v690, 0
        %v739 = vsel %vm403, %v691, 0
        %v742 = vsel %vm403, %v692, 0
        %744 = vmatprep.subr.mxu0 0.0
        %745 = vmatpush1.msra.mxu0 0.0
        %746 = vmatprep.subr.mxu0 0.0
        %747 = vmatpush1.msra.mxu0 0.0
        %748 = vmatprep.subr.mxu0 0.0
        %749 = vmatpush1.msra.mxu0 0.0
        %750 = vmatprep.subr.mxu0 0.0
        %751 = vmatpush1.msra.mxu0 0.0
        %752 = vmatprep.subr.mxu0 0.0
        %753 = vmatpush1.msra.mxu0 0.0
        %754 = vmatprep.subr.mxu0 0.0
        %755 = vmatpush1.msra.mxu0 0.0
        %756 = vmatprep.subr.mxu0 0.0
        %757 = vmatpush1.msra.mxu0 0.0
        %758 = vmatprep.subr.mxu0 0.0
        %759 = vmatpush1.msra.mxu0 0.0
        %760 = vmatprep.subr.mxu0 0.0
        %761 = vmatpush1.msra.mxu0 0.0
        %762 = vmatprep.subr.mxu0 0.0
        %763 = vmatpush1.msra.mxu0 0.0
        %764 = vmatprep.subr.mxu0 0.0
        %765 = vmatpush1.msra.mxu0 0.0
        %766 = vmatprep.subr.mxu0 0.0
        %767 = vmatpush1.msra.mxu0 0.0
        %768 = vmatprep.subr.mxu0 0.0
        %769 = vmatpush1.msra.mxu0 0.0
        %770 = vmatprep.subr.mxu0 0.0
        %771 = vmatpush1.msra.mxu0 0.0
        %772 = vmatprep.subr.mxu0 0.0
        %773 = vmatpush1.msra.mxu0 %v695
        %774 = vmatprep.subr.mxu0 0.0
        %775 = vmatpush1.msra.mxu0 %v694
        %776 = vmatprep.subr.mxu0 0.0
        %777 = vmatpush2.msra.mxu0 0.0
        %778 = vmatprep.subr.mxu0 0.0
        %779 = vmatpush2.msra.mxu0 0.0
        %780 = vmatprep.subr.mxu0 0.0
        %781 = vmatpush2.msra.mxu0 0.0
        %782 = vmatprep.subr.mxu0 0.0
        %783 = vmatpush2.msra.mxu0 0.0
        %784 = vmatprep.subr.mxu0 0.0
        %785 = vmatpush2.msra.mxu0 0.0
        %786 = vmatprep.subr.mxu0 0.0
        %787 = vmatpush2.msra.mxu0 0.0
        %788 = vmatprep.subr.mxu0 0.0
        %789 = vmatpush2.msra.mxu0 0.0
        %790 = vmatprep.subr.mxu0 0.0
        %791 = vmatpush2.msra.mxu0 0.0
        %792 = vmatprep.subr.mxu0 0.0
        %793 = vmatpush2.msra.mxu0 0.0
        %794 = vmatprep.subr.mxu0 0.0
        %795 = vmatpush2.msra.mxu0 0.0
        %796 = vmatprep.subr.mxu0 0.0
        %797 = vmatpush2.msra.mxu0 0.0
        %798 = vmatprep.subr.mxu0 0.0
        %799 = vmatpush2.msra.mxu0 0.0
        %800 = vmatprep.subr.mxu0 0.0
        %801 = vmatpush2.msra.mxu0 0.0
        %802 = vmatprep.subr.mxu0 0.0
        %803 = vmatpush2.msra.mxu0 0.0
        %804 = vmatprep.subr.mxu0 0.0
        %805 = vmatpush2.msra.mxu0 0.0
        %806 = vmatprep.subr.mxu0 0.0
        %807 = vmatpush2.msra.mxu0 0.0
        %808 = vmatprep.mubr.f32.mxu0 0.0
        %809 = vmatmul.mubr.f32.gmra.mxu0 %v697
        %v810 = vpop.f32.mrf.mxu0
        %v811 = vadd.f32 0.0, %v810
        %v812 = vpop.f32.mrf.mxu0
        %813 = vmatprep.mubr.f32.mxu0 0.0
        %814 = vmatmul.mubr.f32.gmra.mxu0 %v700
        %v815 = vpop.f32.mrf.mxu0
        %v816 = vadd.f32 0.0, %v815
        %v817 = vpop.f32.mrf.mxu0
        %818 = vmatprep.mubr.f32.mxu0 0.0
        %819 = vmatmul.mubr.f32.gmra.mxu0 %v703
        %v820 = vpop.f32.mrf.mxu0
        %v821 = vadd.f32 0.0, %v820
        %v822 = vpop.f32.mrf.mxu0
        %823 = vmatprep.mubr.f32.mxu0 0.0
        %824 = vmatmul.mubr.f32.gmra.mxu0 %v706
        %v825 = vpop.f32.mrf.mxu0
        %v826 = vadd.f32 0.0, %v825
        %v827 = vpop.f32.mrf.mxu0
        %828 = vmatprep.mubr.f32.mxu0 0.0
        %829 = vmatmul.mubr.f32.gmra.mxu0 %v709
        %v830 = vpop.f32.mrf.mxu0
        %v831 = vadd.f32 0.0, %v830
        %v832 = vpop.f32.mrf.mxu0
        %833 = vmatprep.mubr.f32.mxu0 0.0
        %834 = vmatmul.mubr.f32.gmra.mxu0 %v712
        %v835 = vpop.f32.mrf.mxu0
        %v836 = vadd.f32 0.0, %v835
        %v837 = vpop.f32.mrf.mxu0
        %838 = vmatprep.mubr.f32.mxu0 0.0
        %839 = vmatmul.mubr.f32.gmra.mxu0 %v715
        %v840 = vpop.f32.mrf.mxu0
        %v841 = vadd.f32 0.0, %v840
        %v842 = vpop.f32.mrf.mxu0
        %843 = vmatprep.mubr.f32.mxu0 0.0
        %844 = vmatmul.mubr.f32.gmra.mxu0 %v718
        %v845 = vpop.f32.mrf.mxu0
        %v846 = vadd.f32 0.0, %v845
        %v847 = vpop.f32.mrf.mxu0
        %848 = vmatprep.mubr.f32.mxu0 0.0
        %849 = vmatmul.mubr.f32.gmra.mxu0 %v721
        %v850 = vpop.f32.mrf.mxu0
        %v851 = vadd.f32 0.0, %v850
        %v852 = vpop.f32.mrf.mxu0
        %853 = vmatprep.mubr.f32.mxu0 0.0
        %854 = vmatmul.mubr.f32.gmra.mxu0 %v724
        %v855 = vpop.f32.mrf.mxu0
        %v856 = vadd.f32 0.0, %v855
        %v857 = vpop.f32.mrf.mxu0
        %858 = vmatprep.mubr.f32.mxu0 0.0
        %859 = vmatmul.mubr.f32.gmra.mxu0 %v727
        %v860 = vpop.f32.mrf.mxu0
        %v861 = vadd.f32 0.0, %v860
        %v862 = vpop.f32.mrf.mxu0
        %863 = vmatprep.mubr.f32.mxu0 0.0
        %864 = vmatmul.mubr.f32.gmra.mxu0 %v730
        %v865 = vpop.f32.mrf.mxu0
        %v866 = vadd.f32 0.0, %v865
        %v867 = vpop.f32.mrf.mxu0
        %868 = vmatprep.mubr.f32.mxu0 0.0
        %869 = vmatmul.mubr.f32.gmra.mxu0 %v733
        %v870 = vpop.f32.mrf.mxu0
        %v871 = vadd.f32 0.0, %v870
        %v872 = vpop.f32.mrf.mxu0
        %873 = vmatprep.mubr.f32.mxu0 0.0
        %874 = vmatmul.mubr.f32.gmra.mxu0 %v736
        %v875 = vpop.f32.mrf.mxu0
        %v876 = vadd.f32 0.0, %v875
        %v877 = vpop.f32.mrf.mxu0
        %878 = vmatprep.mubr.f32.mxu0 0.0
        %879 = vmatmul.mubr.f32.gmra.mxu0 %v739
        %v880 = vpop.f32.mrf.mxu0
        %v881 = vadd.f32 0.0, %v880
        %v882 = vpop.f32.mrf.mxu0
        %883 = vmatprep.mubr.f32.mxu0 0.0
        %884 = vmatmul.mubr.f32.gmra.mxu0 %v742
        %v885 = vpop.f32.mrf.mxu0
        %v886 = vadd.f32 0.0, %v885
        %v887 = vpop.f32.mrf.mxu0
        %888 = vdwg.mxu0
        %889 = vset.pattern.permute.xlu0 2
        %890 = vperm.xlu0 %889, %v289
        %v891 = vpop.permute.xlu0 %890
        %892 = vset.pattern.permute.xlu0 2
        %893 = vperm.xlu0 %892, %v290
        %v894 = vpop.permute.xlu0 %893
        %895 = vset.pattern.permute.xlu0 2
        %896 = vperm.xlu0 %895, %v291
        %v897 = vpop.permute.xlu0 %896
        %898 = vset.pattern.permute.xlu0 2
        %899 = vperm.xlu0 %898, %v292
        %v900 = vpop.permute.xlu0 %899
        %901 = vset.pattern.permute.xlu0 2
        %902 = vperm.xlu0 %901, %v293
        %v903 = vpop.permute.xlu0 %902
        %904 = vset.pattern.permute.xlu0 2
        %905 = vperm.xlu0 %904, %v294
        %v906 = vpop.permute.xlu0 %905
        %907 = vset.pattern.permute.xlu0 2
        %908 = vperm.xlu0 %907, %v295
        %v909 = vpop.permute.xlu0 %908
        %910 = vset.pattern.permute.xlu0 2
        %911 = vperm.xlu0 %910, %v296
        %v912 = vpop.permute.xlu0 %911
        %913 = vset.pattern.permute.xlu0 2
        %914 = vperm.xlu0 %913, %v297
        %v915 = vpop.permute.xlu0 %914
        %916 = vset.pattern.permute.xlu0 2
        %917 = vperm.xlu0 %916, %v298
        %v918 = vpop.permute.xlu0 %917
        %919 = vset.pattern.permute.xlu0 2
        %920 = vperm.xlu0 %919, %v299
        %v921 = vpop.permute.xlu0 %920
        %922 = vset.pattern.permute.xlu0 2
        %923 = vperm.xlu0 %922, %v300
        %v924 = vpop.permute.xlu0 %923
        %925 = vset.pattern.permute.xlu0 2
        %926 = vperm.xlu0 %925, %v301
        %v927 = vpop.permute.xlu0 %926
        %928 = vset.pattern.permute.xlu0 2
        %929 = vperm.xlu0 %928, %v302
        %v930 = vpop.permute.xlu0 %929
        %931 = vset.pattern.permute.xlu0 2
        %932 = vperm.xlu0 %931, %v303
        %v933 = vpop.permute.xlu0 %932
        %934 = vset.pattern.permute.xlu0 2
        %935 = vperm.xlu0 %934, %v304
        %v936 = vpop.permute.xlu0 %935
        %vm937 = vcmp.eq.s32.totalorder %v288, %v891
        %vm938 = vcmp.eq.s32.totalorder %v288, %v894
        %vm939 = vcmp.eq.s32.totalorder %v288, %v897
        %vm940 = vcmp.eq.s32.totalorder %v288, %v900
        %vm941 = vcmp.eq.s32.totalorder %v288, %v903
        %vm942 = vcmp.eq.s32.totalorder %v288, %v906
        %vm943 = vcmp.eq.s32.totalorder %v288, %v909
        %vm944 = vcmp.eq.s32.totalorder %v288, %v912
        %vm945 = vcmp.eq.s32.totalorder %v288, %v915
        %vm946 = vcmp.eq.s32.totalorder %v288, %v918
        %vm947 = vcmp.eq.s32.totalorder %v288, %v921
        %vm948 = vcmp.eq.s32.totalorder %v288, %v924
        %vm949 = vcmp.eq.s32.totalorder %v288, %v927
        %vm950 = vcmp.eq.s32.totalorder %v288, %v930
        %vm951 = vcmp.eq.s32.totalorder %v288, %v933
        %vm952 = vcmp.eq.s32.totalorder %v288, %v936
        %v953 = vsel %vm937, 1, 0
        %v954 = vsel %vm938, 1, 0
        %v955 = vsel %vm939, 1, 0
        %v956 = vsel %vm940, 1, 0
        %v957 = vsel %vm941, 1, 0
        %v958 = vsel %vm942, 1, 0
        %v959 = vsel %vm943, 1, 0
        %v960 = vsel %vm944, 1, 0
        %v961 = vsel %vm945, 1, 0
        %v962 = vsel %vm946, 1, 0
        %v963 = vsel %vm947, 1, 0
        %v964 = vsel %vm948, 1, 0
        %v965 = vsel %vm949, 1, 0
        %v966 = vsel %vm950, 1, 0
        %v967 = vsel %vm951, 1, 0
        %v968 = vsel %vm952, 1, 0
        %v969 = vcvt.s32.f32 %v953
        %v970 = vcvt.s32.f32 %v954
        %v971 = vcvt.s32.f32 %v955
        %v972 = vcvt.s32.f32 %v956
        %v973 = vcvt.s32.f32 %v957
        %v974 = vcvt.s32.f32 %v958
        %v975 = vcvt.s32.f32 %v959
        %v976 = vcvt.s32.f32 %v960
        %v977 = vcvt.s32.f32 %v961
        %v978 = vcvt.s32.f32 %v962
        %v979 = vcvt.s32.f32 %v963
        %v980 = vcvt.s32.f32 %v964
        %v981 = vcvt.s32.f32 %v965
        %v982 = vcvt.s32.f32 %v966
        %v983 = vcvt.s32.f32 %v967
        %v984 = vcvt.s32.f32 %v968
        %s985 = scalar_lea.vmem %s1, 32
        %v986 = vld [vmem:[%s985] sm:$0xff]
        %v987 = vld [vmem:[%s985 + $0x8] sm:$0xff]
        %v989 = vsel %vm403, %v969, 0
        %v992 = vsel %vm403, %v970, 0
        %v995 = vsel %vm403, %v971, 0
        %v998 = vsel %vm403, %v972, 0
        %v1001 = vsel %vm403, %v973, 0
        %v1004 = vsel %vm403, %v974, 0
        %v1007 = vsel %vm403, %v975, 0
        %v1010 = vsel %vm403, %v976, 0
        %v1013 = vsel %vm403, %v977, 0
        %v1016 = vsel %vm403, %v978, 0
        %v1019 = vsel %vm403, %v979, 0
        %v1022 = vsel %vm403, %v980, 0
        %v1025 = vsel %vm403, %v981, 0
        %v1028 = vsel %vm403, %v982, 0
        %v1031 = vsel %vm403, %v983, 0
        %v1034 = vsel %vm403, %v984, 0
        %1036 = vmatprep.subr.mxu0 0.0
        %1037 = vmatpush1.msra.mxu0 0.0
        %1038 = vmatprep.subr.mxu0 0.0
        %1039 = vmatpush1.msra.mxu0 0.0
        %1040 = vmatprep.subr.mxu0 0.0
        %1041 = vmatpush1.msra.mxu0 0.0
        %1042 = vmatprep.subr.mxu0 0.0
        %1043 = vmatpush1.msra.mxu0 0.0
        %1044 = vmatprep.subr.mxu0 0.0
        %1045 = vmatpush1.msra.mxu0 0.0
        %1046 = vmatprep.subr.mxu0 0.0
        %1047 = vmatpush1.msra.mxu0 0.0
        %1048 = vmatprep.subr.mxu0 0.0
        %1049 = vmatpush1.msra.mxu0 0.0
        %1050 = vmatprep.subr.mxu0 0.0
        %1051 = vmatpush1.msra.mxu0 0.0
        %1052 = vmatprep.subr.mxu0 0.0
        %1053 = vmatpush1.msra.mxu0 0.0
        %1054 = vmatprep.subr.mxu0 0.0
        %1055 = vmatpush1.msra.mxu0 0.0
        %1056 = vmatprep.subr.mxu0 0.0
        %1057 = vmatpush1.msra.mxu0 0.0
        %1058 = vmatprep.subr.mxu0 0.0
        %1059 = vmatpush1.msra.mxu0 0.0
        %1060 = vmatprep.subr.mxu0 0.0
        %1061 = vmatpush1.msra.mxu0 0.0
        %1062 = vmatprep.subr.mxu0 0.0
        %1063 = vmatpush1.msra.mxu0 0.0
        %1064 = vmatprep.subr.mxu0 0.0
        %1065 = vmatpush1.msra.mxu0 %v987
        %1066 = vmatprep.subr.mxu0 0.0
        %1067 = vmatpush1.msra.mxu0 %v986
        %1068 = vmatprep.subr.mxu0 0.0
        %1069 = vmatpush2.msra.mxu0 0.0
        %1070 = vmatprep.subr.mxu0 0.0
        %1071 = vmatpush2.msra.mxu0 0.0
        %1072 = vmatprep.subr.mxu0 0.0
        %1073 = vmatpush2.msra.mxu0 0.0
        %1074 = vmatprep.subr.mxu0 0.0
        %1075 = vmatpush2.msra.mxu0 0.0
        %1076 = vmatprep.subr.mxu0 0.0
        %1077 = vmatpush2.msra.mxu0 0.0
        %1078 = vmatprep.subr.mxu0 0.0
        %1079 = vmatpush2.msra.mxu0 0.0
        %1080 = vmatprep.subr.mxu0 0.0
        %1081 = vmatpush2.msra.mxu0 0.0
        %1082 = vmatprep.subr.mxu0 0.0
        %1083 = vmatpush2.msra.mxu0 0.0
        %1084 = vmatprep.subr.mxu0 0.0
        %1085 = vmatpush2.msra.mxu0 0.0
        %1086 = vmatprep.subr.mxu0 0.0
        %1087 = vmatpush2.msra.mxu0 0.0
        %1088 = vmatprep.subr.mxu0 0.0
        %1089 = vmatpush2.msra.mxu0 0.0
        %1090 = vmatprep.subr.mxu0 0.0
        %1091 = vmatpush2.msra.mxu0 0.0
        %1092 = vmatprep.subr.mxu0 0.0
        %1093 = vmatpush2.msra.mxu0 0.0
        %1094 = vmatprep.subr.mxu0 0.0
        %1095 = vmatpush2.msra.mxu0 0.0
        %1096 = vmatprep.subr.mxu0 0.0
        %1097 = vmatpush2.msra.mxu0 0.0
        %1098 = vmatprep.subr.mxu0 0.0
        %1099 = vmatpush2.msra.mxu0 0.0
        %1100 = vmatprep.mubr.f32.mxu0 0.0
        %1101 = vmatmul.mubr.f32.gmra.mxu0 %v989
        %v1102 = vpop.f32.mrf.mxu0
        %v1103 = vadd.f32 0.0, %v1102
        %v1104 = vpop.f32.mrf.mxu0
        %1105 = vmatprep.mubr.f32.mxu0 0.0
        %1106 = vmatmul.mubr.f32.gmra.mxu0 %v992
        %v1107 = vpop.f32.mrf.mxu0
        %v1108 = vadd.f32 0.0, %v1107
        %v1109 = vpop.f32.mrf.mxu0
        %1110 = vmatprep.mubr.f32.mxu0 0.0
        %1111 = vmatmul.mubr.f32.gmra.mxu0 %v995
        %v1112 = vpop.f32.mrf.mxu0
        %v1113 = vadd.f32 0.0, %v1112
        %v1114 = vpop.f32.mrf.mxu0
        %1115 = vmatprep.mubr.f32.mxu0 0.0
        %1116 = vmatmul.mubr.f32.gmra.mxu0 %v998
        %v1117 = vpop.f32.mrf.mxu0
        %v1118 = vadd.f32 0.0, %v1117
        %v1119 = vpop.f32.mrf.mxu0
        %1120 = vmatprep.mubr.f32.mxu0 0.0
        %1121 = vmatmul.mubr.f32.gmra.mxu0 %v1001
        %v1122 = vpop.f32.mrf.mxu0
        %v1123 = vadd.f32 0.0, %v1122
        %v1124 = vpop.f32.mrf.mxu0
        %1125 = vmatprep.mubr.f32.mxu0 0.0
        %1126 = vmatmul.mubr.f32.gmra.mxu0 %v1004
        %v1127 = vpop.f32.mrf.mxu0
        %v1128 = vadd.f32 0.0, %v1127
        %v1129 = vpop.f32.mrf.mxu0
        %1130 = vmatprep.mubr.f32.mxu0 0.0
        %1131 = vmatmul.mubr.f32.gmra.mxu0 %v1007
        %v1132 = vpop.f32.mrf.mxu0
        %v1133 = vadd.f32 0.0, %v1132
        %v1134 = vpop.f32.mrf.mxu0
        %1135 = vmatprep.mubr.f32.mxu0 0.0
        %1136 = vmatmul.mubr.f32.gmra.mxu0 %v1010
        %v1137 = vpop.f32.mrf.mxu0
        %v1138 = vadd.f32 0.0, %v1137
        %v1139 = vpop.f32.mrf.mxu0
        %1140 = vmatprep.mubr.f32.mxu0 0.0
        %1141 = vmatmul.mubr.f32.gmra.mxu0 %v1013
        %v1142 = vpop.f32.mrf.mxu0
        %v1143 = vadd.f32 0.0, %v1142
        %v1144 = vpop.f32.mrf.mxu0
        %1145 = vmatprep.mubr.f32.mxu0 0.0
        %1146 = vmatmul.mubr.f32.gmra.mxu0 %v1016
        %v1147 = vpop.f32.mrf.mxu0
        %v1148 = vadd.f32 0.0, %v1147
        %v1149 = vpop.f32.mrf.mxu0
        %1150 = vmatprep.mubr.f32.mxu0 0.0
        %1151 = vmatmul.mubr.f32.gmra.mxu0 %v1019
        %v1152 = vpop.f32.mrf.mxu0
        %v1153 = vadd.f32 0.0, %v1152
        %v1154 = vpop.f32.mrf.mxu0
        %1155 = vmatprep.mubr.f32.mxu0 0.0
        %1156 = vmatmul.mubr.f32.gmra.mxu0 %v1022
        %v1157 = vpop.f32.mrf.mxu0
        %v1158 = vadd.f32 0.0, %v1157
        %v1159 = vpop.f32.mrf.mxu0
        %1160 = vmatprep.mubr.f32.mxu0 0.0
        %1161 = vmatmul.mubr.f32.gmra.mxu0 %v1025
        %v1162 = vpop.f32.mrf.mxu0
        %v1163 = vadd.f32 0.0, %v1162
        %v1164 = vpop.f32.mrf.mxu0
        %1165 = vmatprep.mubr.f32.mxu0 0.0
        %1166 = vmatmul.mubr.f32.gmra.mxu0 %v1028
        %v1167 = vpop.f32.mrf.mxu0
        %v1168 = vadd.f32 0.0, %v1167
        %v1169 = vpop.f32.mrf.mxu0
        %1170 = vmatprep.mubr.f32.mxu0 0.0
        %1171 = vmatmul.mubr.f32.gmra.mxu0 %v1031
        %v1172 = vpop.f32.mrf.mxu0
        %v1173 = vadd.f32 0.0, %v1172
        %v1174 = vpop.f32.mrf.mxu0
        %1175 = vmatprep.mubr.f32.mxu0 0.0
        %1176 = vmatmul.mubr.f32.gmra.mxu0 %v1034
        %v1177 = vpop.f32.mrf.mxu0
        %v1178 = vadd.f32 0.0, %v1177
        %v1179 = vpop.f32.mrf.mxu0
        %1180 = vdwg.mxu0
        %1197 = vrot.lane.b32.xlu0 %v811, 32
        %v1198 = vpop.permute.xlu0 %1197
        %1199 = vrot.lane.b32.xlu0 %v816, 32
        %v1200 = vpop.permute.xlu0 %1199
        %1201 = vrot.lane.b32.xlu0 %v821, 32
        %v1202 = vpop.permute.xlu0 %1201
        %1203 = vrot.lane.b32.xlu0 %v826, 32
        %v1204 = vpop.permute.xlu0 %1203
        %1205 = vrot.lane.b32.xlu0 %v831, 32
        %v1206 = vpop.permute.xlu0 %1205
        %1207 = vrot.lane.b32.xlu0 %v836, 32
        %v1208 = vpop.permute.xlu0 %1207
        %1209 = vrot.lane.b32.xlu0 %v841, 32
        %v1210 = vpop.permute.xlu0 %1209
        %1211 = vrot.lane.b32.xlu0 %v846, 32
        %v1212 = vpop.permute.xlu0 %1211
        %1213 = vrot.lane.b32.xlu0 %v851, 32
        %v1214 = vpop.permute.xlu0 %1213
        %1215 = vrot.lane.b32.xlu0 %v856, 32
        %v1216 = vpop.permute.xlu0 %1215
        %1217 = vrot.lane.b32.xlu0 %v861, 32
        %v1218 = vpop.permute.xlu0 %1217
        %1219 = vrot.lane.b32.xlu0 %v866, 32
        %v1220 = vpop.permute.xlu0 %1219
        %1221 = vrot.lane.b32.xlu0 %v871, 32
        %v1222 = vpop.permute.xlu0 %1221
        %1223 = vrot.lane.b32.xlu0 %v876, 32
        %v1224 = vpop.permute.xlu0 %1223
        %1225 = vrot.lane.b32.xlu0 %v881, 32
        %v1226 = vpop.permute.xlu0 %1225
        %1227 = vrot.lane.b32.xlu0 %v886, 32
        %v1228 = vpop.permute.xlu0 %1227
        %1261 = vrot.lane.b32.xlu0 %v1103, 64
        %v1262 = vpop.permute.xlu0 %1261
        %1263 = vrot.lane.b32.xlu0 %v1108, 64
        %v1264 = vpop.permute.xlu0 %1263
        %1265 = vrot.lane.b32.xlu0 %v1113, 64
        %v1266 = vpop.permute.xlu0 %1265
        %1267 = vrot.lane.b32.xlu0 %v1118, 64
        %v1268 = vpop.permute.xlu0 %1267
        %1269 = vrot.lane.b32.xlu0 %v1123, 64
        %v1270 = vpop.permute.xlu0 %1269
        %1271 = vrot.lane.b32.xlu0 %v1128, 64
        %v1272 = vpop.permute.xlu0 %1271
        %1273 = vrot.lane.b32.xlu0 %v1133, 64
        %v1274 = vpop.permute.xlu0 %1273
        %1275 = vrot.lane.b32.xlu0 %v1138, 64
        %v1276 = vpop.permute.xlu0 %1275
        %1277 = vrot.lane.b32.xlu0 %v1143, 64
        %v1278 = vpop.permute.xlu0 %1277
        %1279 = vrot.lane.b32.xlu0 %v1148, 64
        %v1280 = vpop.permute.xlu0 %1279
        %1281 = vrot.lane.b32.xlu0 %v1153, 64
        %v1282 = vpop.permute.xlu0 %1281
        %1283 = vrot.lane.b32.xlu0 %v1158, 64
        %v1284 = vpop.permute.xlu0 %1283
        %1285 = vrot.lane.b32.xlu0 %v1163, 64
        %v1286 = vpop.permute.xlu0 %1285
        %1287 = vrot.lane.b32.xlu0 %v1168, 64
        %v1288 = vpop.permute.xlu0 %1287
        %1289 = vrot.lane.b32.xlu0 %v1173, 64
        %v1290 = vpop.permute.xlu0 %1289
        %1291 = vrot.lane.b32.xlu0 %v1178, 64
        %v1292 = vpop.permute.xlu0 %1291
        %vm1309 = vcmask 261120
        %v1310 = vsel %vm1309, %v519, %v1198
        %v1311 = vsel %vm1309, %v524, %v1200
        %v1312 = vsel %vm1309, %v529, %v1202
        %v1313 = vsel %vm1309, %v534, %v1204
        %v1314 = vsel %vm1309, %v539, %v1206
        %v1315 = vsel %vm1309, %v544, %v1208
        %v1316 = vsel %vm1309, %v549, %v1210
        %v1317 = vsel %vm1309, %v554, %v1212
        %v1318 = vsel %vm1309, %v559, %v1214
        %v1319 = vsel %vm1309, %v564, %v1216
        %v1320 = vsel %vm1309, %v569, %v1218
        %v1321 = vsel %vm1309, %v574, %v1220
        %v1322 = vsel %vm1309, %v579, %v1222
        %v1323 = vsel %vm1309, %v584, %v1224
        %v1324 = vsel %vm1309, %v589, %v1226
        %v1325 = vsel %vm1309, %v594, %v1228
        %vm1326 = vcmask 523264
        %v1327 = vsel %vm1326, %v1310, %v1262
        %v1328 = vsel %vm1326, %v1311, %v1264
        %v1329 = vsel %vm1326, %v1312, %v1266
        %v1330 = vsel %vm1326, %v1313, %v1268
        %v1331 = vsel %vm1326, %v1314, %v1270
        %v1332 = vsel %vm1326, %v1315, %v1272
        %v1333 = vsel %vm1326, %v1316, %v1274
        %v1334 = vsel %vm1326, %v1317, %v1276
        %v1335 = vsel %vm1326, %v1318, %v1278
        %v1336 = vsel %vm1326, %v1319, %v1280
        %v1337 = vsel %vm1326, %v1320, %v1282
        %v1338 = vsel %vm1326, %v1321, %v1284
        %v1339 = vsel %vm1326, %v1322, %v1286
        %v1340 = vsel %vm1326, %v1323, %v1288
        %v1341 = vsel %vm1326, %v1324, %v1290
        %v1342 = vsel %vm1326, %v1325, %v1292
        %vm1343 = vcmask 785408
        %v1344 = vsel %vm1343, %v1327, 0.0
        %v1345 = vsel %vm1343, %v1328, 0.0
        %v1346 = vsel %vm1343, %v1329, 0.0
        %v1347 = vsel %vm1343, %v1330, 0.0
        %v1348 = vsel %vm1343, %v1331, 0.0
        %v1349 = vsel %vm1343, %v1332, 0.0
        %v1350 = vsel %vm1343, %v1333, 0.0
        %v1351 = vsel %vm1343, %v1334, 0.0
        %v1352 = vsel %vm1343, %v1335, 0.0
        %v1353 = vsel %vm1343, %v1336, 0.0
        %v1354 = vsel %vm1343, %v1337, 0.0
        %v1355 = vsel %vm1343, %v1338, 0.0
        %v1356 = vsel %vm1343, %v1339, 0.0
        %v1357 = vsel %vm1343, %v1340, 0.0
        %v1358 = vsel %vm1343, %v1341, 0.0
        %v1359 = vsel %vm1343, %v1342, 0.0
        %1360 = vst [vmem:[%s265] sm:$0xff] %v1344
        %1361 = vst [vmem:[%s265 + $0x8] sm:$0xff] %v1345
        %1362 = vst [vmem:[%s265 + $0x10] sm:$0xff] %v1346
        %1363 = vst [vmem:[%s265 + $0x18] sm:$0xff] %v1347
        %1364 = vst [vmem:[%s265 + $0x20] sm:$0xff] %v1348
        %1365 = vst [vmem:[%s265 + $0x28] sm:$0xff] %v1349
        %1366 = vst [vmem:[%s265 + $0x30] sm:$0xff] %v1350
        %1367 = vst [vmem:[%s265 + $0x38] sm:$0xff] %v1351
        %1368 = vst [vmem:[%s265 + $0x40] sm:$0xff] %v1352
        %1369 = vst [vmem:[%s265 + $0x48] sm:$0xff] %v1353
        %1370 = vst [vmem:[%s265 + $0x50] sm:$0xff] %v1354
        %1371 = vst [vmem:[%s265 + $0x58] sm:$0xff] %v1355
        %1372 = vst [vmem:[%s265 + $0x60] sm:$0xff] %v1356
        %1373 = vst [vmem:[%s265 + $0x68] sm:$0xff] %v1357
        %1374 = vst [vmem:[%s265 + $0x70] sm:$0xff] %v1358
        %1375 = vst [vmem:[%s265 + $0x78] sm:$0xff] %v1359
        %v1376 = vld [vmem:[%s283] sm:$0xff]
        %v1377 = vld [vmem:[%s283 + $0x8] sm:$0xff]
        %v1378 = vld [vmem:[%s283 + $0x10] sm:$0xff]
        %v1379 = vld [vmem:[%s283 + $0x18] sm:$0xff]
        %v1380 = vld [vmem:[%s283 + $0x20] sm:$0xff]
        %v1381 = vld [vmem:[%s283 + $0x28] sm:$0xff]
        %v1382 = vld [vmem:[%s283 + $0x30] sm:$0xff]
        %v1383 = vld [vmem:[%s283 + $0x38] sm:$0xff]
        %v1384 = vld [vmem:[%s283 + $0x40] sm:$0xff]
        %v1385 = vld [vmem:[%s283 + $0x48] sm:$0xff]
        %v1386 = vld [vmem:[%s283 + $0x50] sm:$0xff]
        %v1387 = vld [vmem:[%s283 + $0x58] sm:$0xff]
        %v1388 = vld [vmem:[%s283 + $0x60] sm:$0xff]
        %v1389 = vld [vmem:[%s283 + $0x68] sm:$0xff]
        %v1390 = vld [vmem:[%s283 + $0x70] sm:$0xff]
        %v1391 = vld [vmem:[%s283 + $0x78] sm:$0xff]
        %v1392 = vld [vmem:[%s3] sm:$0x1]
        %1394 = vset.pattern.permute.xlu0 0
        %1395 = vperm.xlu0 %1394, %v1376
        %v1396 = vpop.permute.xlu0 %1395
        %1399 = vset.pattern.permute.xlu0 0
        %1400 = vperm.xlu0 %1399, %v1377
        %v1401 = vpop.permute.xlu0 %1400
        %1404 = vset.pattern.permute.xlu0 0
        %1405 = vperm.xlu0 %1404, %v1378
        %v1406 = vpop.permute.xlu0 %1405
        %1409 = vset.pattern.permute.xlu0 0
        %1410 = vperm.xlu0 %1409, %v1379
        %v1411 = vpop.permute.xlu0 %1410
        %1414 = vset.pattern.permute.xlu0 0
        %1415 = vperm.xlu0 %1414, %v1380
        %v1416 = vpop.permute.xlu0 %1415
        %1419 = vset.pattern.permute.xlu0 0
        %1420 = vperm.xlu0 %1419, %v1381
        %v1421 = vpop.permute.xlu0 %1420
        %1424 = vset.pattern.permute.xlu0 0
        %1425 = vperm.xlu0 %1424, %v1382
        %v1426 = vpop.permute.xlu0 %1425
        %1429 = vset.pattern.permute.xlu0 0
        %1430 = vperm.xlu0 %1429, %v1383
        %v1431 = vpop.permute.xlu0 %1430
        %1434 = vset.pattern.permute.xlu0 0
        %1435 = vperm.xlu0 %1434, %v1384
        %v1436 = vpop.permute.xlu0 %1435
        %1439 = vset.pattern.permute.xlu0 0
        %1440 = vperm.xlu0 %1439, %v1385
        %v1441 = vpop.permute.xlu0 %1440
        %1444 = vset.pattern.permute.xlu0 0
        %1445 = vperm.xlu0 %1444, %v1386
        %v1446 = vpop.permute.xlu0 %1445
        %1449 = vset.pattern.permute.xlu0 0
        %1450 = vperm.xlu0 %1449, %v1387
        %v1451 = vpop.permute.xlu0 %1450
        %1454 = vset.pattern.permute.xlu0 0
        %1455 = vperm.xlu0 %1454, %v1388
        %v1456 = vpop.permute.xlu0 %1455
        %1459 = vset.pattern.permute.xlu0 0
        %1460 = vperm.xlu0 %1459, %v1389
        %v1461 = vpop.permute.xlu0 %1460
        %1464 = vset.pattern.permute.xlu0 0
        %1465 = vperm.xlu0 %1464, %v1390
        %v1466 = vpop.permute.xlu0 %1465
        %1469 = vset.pattern.permute.xlu0 0
        %1470 = vperm.xlu0 %1469, %v1391
        %v1471 = vpop.permute.xlu0 %1470
        %v1473 = vlaneseq
        %v1474 = vshrl.u32 %v1473, 7
        %v1475 = vsub.s32 0, %v1474
        %v1476 = vrot.slane %v1392, %v1475
        %v1477 = vmul.f32 %v1396, %v1476
        %v1478 = vmul.f32 %v1401, %v1476
        %v1479 = vmul.f32 %v1406, %v1476
        %v1480 = vmul.f32 %v1411, %v1476
        %v1481 = vmul.f32 %v1416, %v1476
        %v1482 = vmul.f32 %v1421, %v1476
        %v1483 = vmul.f32 %v1426, %v1476
        %v1484 = vmul.f32 %v1431, %v1476
        %v1485 = vmul.f32 %v1436, %v1476
        %v1486 = vmul.f32 %v1441, %v1476
        %v1487 = vmul.f32 %v1446, %v1476
        %v1488 = vmul.f32 %v1451, %v1476
        %v1489 = vmul.f32 %v1456, %v1476
        %v1490 = vmul.f32 %v1461, %v1476
        %v1491 = vmul.f32 %v1466, %v1476
        %v1492 = vmul.f32 %v1471, %v1476
        %v1493 = vld [vmem:[%s4] sm:$0x1]
        %v1494 = vlaneseq
        %v1495 = vshrl.u32 %v1494, 7
        %v1496 = vsub.s32 0, %v1495
        %v1497 = vrot.slane %v1493, %v1496
        %v1498 = vadd.f32 %v1477, %v1497
        %v1499 = vadd.f32 %v1478, %v1497
        %v1500 = vadd.f32 %v1479, %v1497
        %v1501 = vadd.f32 %v1480, %v1497
        %v1502 = vadd.f32 %v1481, %v1497
        %v1503 = vadd.f32 %v1482, %v1497
        %v1504 = vadd.f32 %v1483, %v1497
        %v1505 = vadd.f32 %v1484, %v1497
        %v1506 = vadd.f32 %v1485, %v1497
        %v1507 = vadd.f32 %v1486, %v1497
        %v1508 = vadd.f32 %v1487, %v1497
        %v1509 = vadd.f32 %v1488, %v1497
        %v1510 = vadd.f32 %v1489, %v1497
        %v1511 = vadd.f32 %v1490, %v1497
        %v1512 = vadd.f32 %v1491, %v1497
        %v1513 = vadd.f32 %v1492, %v1497
        %v1514 = vld [vmem:[%s3 + $0x1] sm:$0x1]
        %1515 = vset.pattern.permute.xlu0 1
        %1516 = vperm.xlu0 %1515, %v1376
        %v1517 = vpop.permute.xlu0 %1516
        %1519 = vset.pattern.permute.xlu0 1
        %1520 = vperm.xlu0 %1519, %v1377
        %v1521 = vpop.permute.xlu0 %1520
        %1523 = vset.pattern.permute.xlu0 1
        %1524 = vperm.xlu0 %1523, %v1378
        %v1525 = vpop.permute.xlu0 %1524
        %1527 = vset.pattern.permute.xlu0 1
        %1528 = vperm.xlu0 %1527, %v1379
        %v1529 = vpop.permute.xlu0 %1528
        %1531 = vset.pattern.permute.xlu0 1
        %1532 = vperm.xlu0 %1531, %v1380
        %v1533 = vpop.permute.xlu0 %1532
        %1535 = vset.pattern.permute.xlu0 1
        %1536 = vperm.xlu0 %1535, %v1381
        %v1537 = vpop.permute.xlu0 %1536
        %1539 = vset.pattern.permute.xlu0 1
        %1540 = vperm.xlu0 %1539, %v1382
        %v1541 = vpop.permute.xlu0 %1540
        %1543 = vset.pattern.permute.xlu0 1
        %1544 = vperm.xlu0 %1543, %v1383
        %v1545 = vpop.permute.xlu0 %1544
        %1547 = vset.pattern.permute.xlu0 1
        %1548 = vperm.xlu0 %1547, %v1384
        %v1549 = vpop.permute.xlu0 %1548
        %1551 = vset.pattern.permute.xlu0 1
        %1552 = vperm.xlu0 %1551, %v1385
        %v1553 = vpop.permute.xlu0 %1552
        %1555 = vset.pattern.permute.xlu0 1
        %1556 = vperm.xlu0 %1555, %v1386
        %v1557 = vpop.permute.xlu0 %1556
        %1559 = vset.pattern.permute.xlu0 1
        %1560 = vperm.xlu0 %1559, %v1387
        %v1561 = vpop.permute.xlu0 %1560
        %1563 = vset.pattern.permute.xlu0 1
        %1564 = vperm.xlu0 %1563, %v1388
        %v1565 = vpop.permute.xlu0 %1564
        %1567 = vset.pattern.permute.xlu0 1
        %1568 = vperm.xlu0 %1567, %v1389
        %v1569 = vpop.permute.xlu0 %1568
        %1571 = vset.pattern.permute.xlu0 1
        %1572 = vperm.xlu0 %1571, %v1390
        %v1573 = vpop.permute.xlu0 %1572
        %1575 = vset.pattern.permute.xlu0 1
        %1576 = vperm.xlu0 %1575, %v1391
        %v1577 = vpop.permute.xlu0 %1576
        %v1579 = vlaneseq
        %v1580 = vshrl.u32 %v1579, 7
        %v1581 = vsub.s32 0, %v1580
        %v1582 = vrot.slane %v1514, %v1581
        %v1583 = vmul.f32 %v1517, %v1582
        %v1584 = vmul.f32 %v1521, %v1582
        %v1585 = vmul.f32 %v1525, %v1582
        %v1586 = vmul.f32 %v1529, %v1582
        %v1587 = vmul.f32 %v1533, %v1582
        %v1588 = vmul.f32 %v1537, %v1582
        %v1589 = vmul.f32 %v1541, %v1582
        %v1590 = vmul.f32 %v1545, %v1582
        %v1591 = vmul.f32 %v1549, %v1582
        %v1592 = vmul.f32 %v1553, %v1582
        %v1593 = vmul.f32 %v1557, %v1582
        %v1594 = vmul.f32 %v1561, %v1582
        %v1595 = vmul.f32 %v1565, %v1582
        %v1596 = vmul.f32 %v1569, %v1582
        %v1597 = vmul.f32 %v1573, %v1582
        %v1598 = vmul.f32 %v1577, %v1582
        %v1599 = vld [vmem:[%s4 + $0x1] sm:$0x1]
        %v1600 = vlaneseq
        %v1601 = vshrl.u32 %v1600, 7
        %v1602 = vsub.s32 0, %v1601
        %v1603 = vrot.slane %v1599, %v1602
        %v1604 = vadd.f32 %v1583, %v1603
        %v1605 = vadd.f32 %v1584, %v1603
        %v1606 = vadd.f32 %v1585, %v1603
        %v1607 = vadd.f32 %v1586, %v1603
        %v1608 = vadd.f32 %v1587, %v1603
        %v1609 = vadd.f32 %v1588, %v1603
        %v1610 = vadd.f32 %v1589, %v1603
        %v1611 = vadd.f32 %v1590, %v1603
        %v1612 = vadd.f32 %v1591, %v1603
        %v1613 = vadd.f32 %v1592, %v1603
        %v1614 = vadd.f32 %v1593, %v1603
        %v1615 = vadd.f32 %v1594, %v1603
        %v1616 = vadd.f32 %v1595, %v1603
        %v1617 = vadd.f32 %v1596, %v1603
        %v1618 = vadd.f32 %v1597, %v1603
        %v1619 = vadd.f32 %v1598, %v1603
        %v1620 = vld [vmem:[%s3 + $0x2] sm:$0x1]
        %1621 = vset.pattern.permute.xlu0 2
        %1622 = vperm.xlu0 %1621, %v1376
        %v1623 = vpop.permute.xlu0 %1622
        %1625 = vset.pattern.permute.xlu0 2
        %1626 = vperm.xlu0 %1625, %v1377
        %v1627 = vpop.permute.xlu0 %1626
        %1629 = vset.pattern.permute.xlu0 2
        %1630 = vperm.xlu0 %1629, %v1378
        %v1631 = vpop.permute.xlu0 %1630
        %1633 = vset.pattern.permute.xlu0 2
        %1634 = vperm.xlu0 %1633, %v1379
        %v1635 = vpop.permute.xlu0 %1634
        %1637 = vset.pattern.permute.xlu0 2
        %1638 = vperm.xlu0 %1637, %v1380
        %v1639 = vpop.permute.xlu0 %1638
        %1641 = vset.pattern.permute.xlu0 2
        %1642 = vperm.xlu0 %1641, %v1381
        %v1643 = vpop.permute.xlu0 %1642
        %1645 = vset.pattern.permute.xlu0 2
        %1646 = vperm.xlu0 %1645, %v1382
        %v1647 = vpop.permute.xlu0 %1646
        %1649 = vset.pattern.permute.xlu0 2
        %1650 = vperm.xlu0 %1649, %v1383
        %v1651 = vpop.permute.xlu0 %1650
        %1653 = vset.pattern.permute.xlu0 2
        %1654 = vperm.xlu0 %1653, %v1384
        %v1655 = vpop.permute.xlu0 %1654
        %1657 = vset.pattern.permute.xlu0 2
        %1658 = vperm.xlu0 %1657, %v1385
        %v1659 = vpop.permute.xlu0 %1658
        %1661 = vset.pattern.permute.xlu0 2
        %1662 = vperm.xlu0 %1661, %v1386
        %v1663 = vpop.permute.xlu0 %1662
        %1665 = vset.pattern.permute.xlu0 2
        %1666 = vperm.xlu0 %1665, %v1387
        %v1667 = vpop.permute.xlu0 %1666
        %1669 = vset.pattern.permute.xlu0 2
        %1670 = vperm.xlu0 %1669, %v1388
        %v1671 = vpop.permute.xlu0 %1670
        %1673 = vset.pattern.permute.xlu0 2
        %1674 = vperm.xlu0 %1673, %v1389
        %v1675 = vpop.permute.xlu0 %1674
        %1677 = vset.pattern.permute.xlu0 2
        %1678 = vperm.xlu0 %1677, %v1390
        %v1679 = vpop.permute.xlu0 %1678
        %1681 = vset.pattern.permute.xlu0 2
        %1682 = vperm.xlu0 %1681, %v1391
        %v1683 = vpop.permute.xlu0 %1682
        %v1685 = vlaneseq
        %v1686 = vshrl.u32 %v1685, 7
        %v1687 = vsub.s32 0, %v1686
        %v1688 = vrot.slane %v1620, %v1687
        %v1689 = vmul.f32 %v1623, %v1688
        %v1690 = vmul.f32 %v1627, %v1688
        %v1691 = vmul.f32 %v1631, %v1688
        %v1692 = vmul.f32 %v1635, %v1688
        %v1693 = vmul.f32 %v1639, %v1688
        %v1694 = vmul.f32 %v1643, %v1688
        %v1695 = vmul.f32 %v1647, %v1688
        %v1696 = vmul.f32 %v1651, %v1688
        %v1697 = vmul.f32 %v1655, %v1688
        %v1698 = vmul.f32 %v1659, %v1688
        %v1699 = vmul.f32 %v1663, %v1688
        %v1700 = vmul.f32 %v1667, %v1688
        %v1701 = vmul.f32 %v1671, %v1688
        %v1702 = vmul.f32 %v1675, %v1688
        %v1703 = vmul.f32 %v1679, %v1688
        %v1704 = vmul.f32 %v1683, %v1688
        %v1705 = vld [vmem:[%s4 + $0x2] sm:$0x1]
        %v1706 = vlaneseq
        %v1707 = vshrl.u32 %v1706, 7
        %v1708 = vsub.s32 0, %v1707
        %v1709 = vrot.slane %v1705, %v1708
        %v1710 = vadd.f32 %v1689, %v1709
        %v1711 = vadd.f32 %v1690, %v1709
        %v1712 = vadd.f32 %v1691, %v1709
        %v1713 = vadd.f32 %v1692, %v1709
        %v1714 = vadd.f32 %v1693, %v1709
        %v1715 = vadd.f32 %v1694, %v1709
        %v1716 = vadd.f32 %v1695, %v1709
        %v1717 = vadd.f32 %v1696, %v1709
        %v1718 = vadd.f32 %v1697, %v1709
        %v1719 = vadd.f32 %v1698, %v1709
        %v1720 = vadd.f32 %v1699, %v1709
        %v1721 = vadd.f32 %v1700, %v1709
        %v1722 = vadd.f32 %v1701, %v1709
        %v1723 = vadd.f32 %v1702, %v1709
        %v1724 = vadd.f32 %v1703, %v1709
        %v1725 = vadd.f32 %v1704, %v1709
        %v1726 = vld [vmem:[%s3 + $0x3] sm:$0x1]
        %1727 = vset.pattern.permute.xlu0 3
        %1728 = vperm.xlu0 %1727, %v1376
        %v1729 = vpop.permute.xlu0 %1728
        %1731 = vset.pattern.permute.xlu0 3
        %1732 = vperm.xlu0 %1731, %v1377
        %v1733 = vpop.permute.xlu0 %1732
        %1735 = vset.pattern.permute.xlu0 3
        %1736 = vperm.xlu0 %1735, %v1378
        %v1737 = vpop.permute.xlu0 %1736
        %1739 = vset.pattern.permute.xlu0 3
        %1740 = vperm.xlu0 %1739, %v1379
        %v1741 = vpop.permute.xlu0 %1740
        %1743 = vset.pattern.permute.xlu0 3
        %1744 = vperm.xlu0 %1743, %v1380
        %v1745 = vpop.permute.xlu0 %1744
        %1747 = vset.pattern.permute.xlu0 3
        %1748 = vperm.xlu0 %1747, %v1381
        %v1749 = vpop.permute.xlu0 %1748
        %1751 = vset.pattern.permute.xlu0 3
        %1752 = vperm.xlu0 %1751, %v1382
        %v1753 = vpop.permute.xlu0 %1752
        %1755 = vset.pattern.permute.xlu0 3
        %1756 = vperm.xlu0 %1755, %v1383
        %v1757 = vpop.permute.xlu0 %1756
        %1759 = vset.pattern.permute.xlu0 3
        %1760 = vperm.xlu0 %1759, %v1384
        %v1761 = vpop.permute.xlu0 %1760
        %1763 = vset.pattern.permute.xlu0 3
        %1764 = vperm.xlu0 %1763, %v1385
        %v1765 = vpop.permute.xlu0 %1764
        %1767 = vset.pattern.permute.xlu0 3
        %1768 = vperm.xlu0 %1767, %v1386
        %v1769 = vpop.permute.xlu0 %1768
        %1771 = vset.pattern.permute.xlu0 3
        %1772 = vperm.xlu0 %1771, %v1387
        %v1773 = vpop.permute.xlu0 %1772
        %1775 = vset.pattern.permute.xlu0 3
        %1776 = vperm.xlu0 %1775, %v1388
        %v1777 = vpop.permute.xlu0 %1776
        %1779 = vset.pattern.permute.xlu0 3
        %1780 = vperm.xlu0 %1779, %v1389
        %v1781 = vpop.permute.xlu0 %1780
        %1783 = vset.pattern.permute.xlu0 3
        %1784 = vperm.xlu0 %1783, %v1390
        %v1785 = vpop.permute.xlu0 %1784
        %1787 = vset.pattern.permute.xlu0 3
        %1788 = vperm.xlu0 %1787, %v1391
        %v1789 = vpop.permute.xlu0 %1788
        %v1791 = vlaneseq
        %v1792 = vshrl.u32 %v1791, 7
        %v1793 = vsub.s32 0, %v1792
        %v1794 = vrot.slane %v1726, %v1793
        %v1795 = vmul.f32 %v1729, %v1794
        %v1796 = vmul.f32 %v1733, %v1794
        %v1797 = vmul.f32 %v1737, %v1794
        %v1798 = vmul.f32 %v1741, %v1794
        %v1799 = vmul.f32 %v1745, %v1794
        %v1800 = vmul.f32 %v1749, %v1794
        %v1801 = vmul.f32 %v1753, %v1794
        %v1802 = vmul.f32 %v1757, %v1794
        %v1803 = vmul.f32 %v1761, %v1794
        %v1804 = vmul.f32 %v1765, %v1794
        %v1805 = vmul.f32 %v1769, %v1794
        %v1806 = vmul.f32 %v1773, %v1794
        %v1807 = vmul.f32 %v1777, %v1794
        %v1808 = vmul.f32 %v1781, %v1794
        %v1809 = vmul.f32 %v1785, %v1794
        %v1810 = vmul.f32 %v1789, %v1794
        %v1811 = vld [vmem:[%s4 + $0x3] sm:$0x1]
        %v1812 = vlaneseq
        %v1813 = vshrl.u32 %v1812, 7
        %v1814 = vsub.s32 0, %v1813
        %v1815 = vrot.slane %v1811, %v1814
        %v1816 = vadd.f32 %v1795, %v1815
        %v1817 = vadd.f32 %v1796, %v1815
        %v1818 = vadd.f32 %v1797, %v1815
        %v1819 = vadd.f32 %v1798, %v1815
        %v1820 = vadd.f32 %v1799, %v1815
        %v1821 = vadd.f32 %v1800, %v1815
        %v1822 = vadd.f32 %v1801, %v1815
        %v1823 = vadd.f32 %v1802, %v1815
        %v1824 = vadd.f32 %v1803, %v1815
        %v1825 = vadd.f32 %v1804, %v1815
        %v1826 = vadd.f32 %v1805, %v1815
        %v1827 = vadd.f32 %v1806, %v1815
        %v1828 = vadd.f32 %v1807, %v1815
        %v1829 = vadd.f32 %v1808, %v1815
        %v1830 = vadd.f32 %v1809, %v1815
        %v1831 = vadd.f32 %v1810, %v1815
        %1848 = vrot.lane.b32.xlu0 %v1604, 32
        %v1849 = vpop.permute.xlu0 %1848
        %1850 = vrot.lane.b32.xlu0 %v1605, 32
        %v1851 = vpop.permute.xlu0 %1850
        %1852 = vrot.lane.b32.xlu0 %v1606, 32
        %v1853 = vpop.permute.xlu0 %1852
        %1854 = vrot.lane.b32.xlu0 %v1607, 32
        %v1855 = vpop.permute.xlu0 %1854
        %1856 = vrot.lane.b32.xlu0 %v1608, 32
        %v1857 = vpop.permute.xlu0 %1856
        %1858 = vrot.lane.b32.xlu0 %v1609, 32
        %v1859 = vpop.permute.xlu0 %1858
        %1860 = vrot.lane.b32.xlu0 %v1610, 32
        %v1861 = vpop.permute.xlu0 %1860
        %1862 = vrot.lane.b32.xlu0 %v1611, 32
        %v1863 = vpop.permute.xlu0 %1862
        %1864 = vrot.lane.b32.xlu0 %v1612, 32
        %v1865 = vpop.permute.xlu0 %1864
        %1866 = vrot.lane.b32.xlu0 %v1613, 32
        %v1867 = vpop.permute.xlu0 %1866
        %1868 = vrot.lane.b32.xlu0 %v1614, 32
        %v1869 = vpop.permute.xlu0 %1868
        %1870 = vrot.lane.b32.xlu0 %v1615, 32
        %v1871 = vpop.permute.xlu0 %1870
        %1872 = vrot.lane.b32.xlu0 %v1616, 32
        %v1873 = vpop.permute.xlu0 %1872
        %1874 = vrot.lane.b32.xlu0 %v1617, 32
        %v1875 = vpop.permute.xlu0 %1874
        %1876 = vrot.lane.b32.xlu0 %v1618, 32
        %v1877 = vpop.permute.xlu0 %1876
        %1878 = vrot.lane.b32.xlu0 %v1619, 32
        %v1879 = vpop.permute.xlu0 %1878
        %1912 = vrot.lane.b32.xlu0 %v1710, 64
        %v1913 = vpop.permute.xlu0 %1912
        %1914 = vrot.lane.b32.xlu0 %v1711, 64
        %v1915 = vpop.permute.xlu0 %1914
        %1916 = vrot.lane.b32.xlu0 %v1712, 64
        %v1917 = vpop.permute.xlu0 %1916
        %1918 = vrot.lane.b32.xlu0 %v1713, 64
        %v1919 = vpop.permute.xlu0 %1918
        %1920 = vrot.lane.b32.xlu0 %v1714, 64
        %v1921 = vpop.permute.xlu0 %1920
        %1922 = vrot.lane.b32.xlu0 %v1715, 64
        %v1923 = vpop.permute.xlu0 %1922
        %1924 = vrot.lane.b32.xlu0 %v1716, 64
        %v1925 = vpop.permute.xlu0 %1924
        %1926 = vrot.lane.b32.xlu0 %v1717, 64
        %v1927 = vpop.permute.xlu0 %1926
        %1928 = vrot.lane.b32.xlu0 %v1718, 64
        %v1929 = vpop.permute.xlu0 %1928
        %1930 = vrot.lane.b32.xlu0 %v1719, 64
        %v1931 = vpop.permute.xlu0 %1930
        %1932 = vrot.lane.b32.xlu0 %v1720, 64
        %v1933 = vpop.permute.xlu0 %1932
        %1934 = vrot.lane.b32.xlu0 %v1721, 64
        %v1935 = vpop.permute.xlu0 %1934
        %1936 = vrot.lane.b32.xlu0 %v1722, 64
        %v1937 = vpop.permute.xlu0 %1936
        %1938 = vrot.lane.b32.xlu0 %v1723, 64
        %v1939 = vpop.permute.xlu0 %1938
        %1940 = vrot.lane.b32.xlu0 %v1724, 64
        %v1941 = vpop.permute.xlu0 %1940
        %1942 = vrot.lane.b32.xlu0 %v1725, 64
        %v1943 = vpop.permute.xlu0 %1942
        %1976 = vrot.lane.b32.xlu0 %v1816, 96
        %v1977 = vpop.permute.xlu0 %1976
        %1978 = vrot.lane.b32.xlu0 %v1817, 96
        %v1979 = vpop.permute.xlu0 %1978
        %1980 = vrot.lane.b32.xlu0 %v1818, 96
        %v1981 = vpop.permute.xlu0 %1980
        %1982 = vrot.lane.b32.xlu0 %v1819, 96
        %v1983 = vpop.permute.xlu0 %1982
        %1984 = vrot.lane.b32.xlu0 %v1820, 96
        %v1985 = vpop.permute.xlu0 %1984
        %1986 = vrot.lane.b32.xlu0 %v1821, 96
        %v1987 = vpop.permute.xlu0 %1986
        %1988 = vrot.lane.b32.xlu0 %v1822, 96
        %v1989 = vpop.permute.xlu0 %1988
        %1990 = vrot.lane.b32.xlu0 %v1823, 96
        %v1991 = vpop.permute.xlu0 %1990
        %1992 = vrot.lane.b32.xlu0 %v1824, 96
        %v1993 = vpop.permute.xlu0 %1992
        %1994 = vrot.lane.b32.xlu0 %v1825, 96
        %v1995 = vpop.permute.xlu0 %1994
        %1996 = vrot.lane.b32.xlu0 %v1826, 96
        %v1997 = vpop.permute.xlu0 %1996
        %1998 = vrot.lane.b32.xlu0 %v1827, 96
        %v1999 = vpop.permute.xlu0 %1998
        %2000 = vrot.lane.b32.xlu0 %v1828, 96
        %v2001 = vpop.permute.xlu0 %2000
        %2002 = vrot.lane.b32.xlu0 %v1829, 96
        %v2003 = vpop.permute.xlu0 %2002
        %2004 = vrot.lane.b32.xlu0 %v1830, 96
        %v2005 = vpop.permute.xlu0 %2004
        %2006 = vrot.lane.b32.xlu0 %v1831, 96
        %v2007 = vpop.permute.xlu0 %2006
        %v2024 = vsel %vm1309, %v1498, %v1849
        %v2025 = vsel %vm1309, %v1499, %v1851
        %v2026 = vsel %vm1309, %v1500, %v1853
        %v2027 = vsel %vm1309, %v1501, %v1855
        %v2028 = vsel %vm1309, %v1502, %v1857
        %v2029 = vsel %vm1309, %v1503, %v1859
        %v2030 = vsel %vm1309, %v1504, %v1861
        %v2031 = vsel %vm1309, %v1505, %v1863
        %v2032 = vsel %vm1309, %v1506, %v1865
        %v2033 = vsel %vm1309, %v1507, %v1867
        %v2034 = vsel %vm1309, %v1508, %v1869
        %v2035 = vsel %vm1309, %v1509, %v1871
        %v2036 = vsel %vm1309, %v1510, %v1873
        %v2037 = vsel %vm1309, %v1511, %v1875
        %v2038 = vsel %vm1309, %v1512, %v1877
        %v2039 = vsel %vm1309, %v1513, %v1879
        %v2040 = vsel %vm1326, %v2024, %v1913
        %v2041 = vsel %vm1326, %v2025, %v1915
        %v2042 = vsel %vm1326, %v2026, %v1917
        %v2043 = vsel %vm1326, %v2027, %v1919
        %v2044 = vsel %vm1326, %v2028, %v1921
        %v2045 = vsel %vm1326, %v2029, %v1923
        %v2046 = vsel %vm1326, %v2030, %v1925
        %v2047 = vsel %vm1326, %v2031, %v1927
        %v2048 = vsel %vm1326, %v2032, %v1929
        %v2049 = vsel %vm1326, %v2033, %v1931
        %v2050 = vsel %vm1326, %v2034, %v1933
        %v2051 = vsel %vm1326, %v2035, %v1935
        %v2052 = vsel %vm1326, %v2036, %v1937
        %v2053 = vsel %vm1326, %v2037, %v1939
        %v2054 = vsel %vm1326, %v2038, %v1941
        %v2055 = vsel %vm1326, %v2039, %v1943
        %v2056 = vsel %vm1343, %v2040, %v1977
        %v2057 = vsel %vm1343, %v2041, %v1979
        %v2058 = vsel %vm1343, %v2042, %v1981
        %v2059 = vsel %vm1343, %v2043, %v1983
        %v2060 = vsel %vm1343, %v2044, %v1985
        %v2061 = vsel %vm1343, %v2045, %v1987
        %v2062 = vsel %vm1343, %v2046, %v1989
        %v2063 = vsel %vm1343, %v2047, %v1991
        %v2064 = vsel %vm1343, %v2048, %v1993
        %v2065 = vsel %vm1343, %v2049, %v1995
        %v2066 = vsel %vm1343, %v2050, %v1997
        %v2067 = vsel %vm1343, %v2051, %v1999
        %v2068 = vsel %vm1343, %v2052, %v2001
        %v2069 = vsel %vm1343, %v2053, %v2003
        %v2070 = vsel %vm1343, %v2054, %v2005
        %v2071 = vsel %vm1343, %v2055, %v2007
        %2072 = vst [vmem:[%s272] sm:$0xff] %v2056
        %2073 = vst [vmem:[%s272 + $0x8] sm:$0xff] %v2057
        %2074 = vst [vmem:[%s272 + $0x10] sm:$0xff] %v2058
        %2075 = vst [vmem:[%s272 + $0x18] sm:$0xff] %v2059
        %2076 = vst [vmem:[%s272 + $0x20] sm:$0xff] %v2060
        %2077 = vst [vmem:[%s272 + $0x28] sm:$0xff] %v2061
        %2078 = vst [vmem:[%s272 + $0x30] sm:$0xff] %v2062
        %2079 = vst [vmem:[%s272 + $0x38] sm:$0xff] %v2063
        %2080 = vst [vmem:[%s272 + $0x40] sm:$0xff] %v2064
        %2081 = vst [vmem:[%s272 + $0x48] sm:$0xff] %v2065
        %2082 = vst [vmem:[%s272 + $0x50] sm:$0xff] %v2066
        %2083 = vst [vmem:[%s272 + $0x58] sm:$0xff] %v2067
        %2084 = vst [vmem:[%s272 + $0x60] sm:$0xff] %v2068
        %2085 = vst [vmem:[%s272 + $0x68] sm:$0xff] %v2069
        %2086 = vst [vmem:[%s272 + $0x70] sm:$0xff] %v2070
        %2087 = vst [vmem:[%s272 + $0x78] sm:$0xff] %v2071
        %s2088 = sand.u32 %s147, 1
        %s2089 = scalar_lea.sflag [#allocation3], %s2088
        %s2090 = sand.u32 %s147, 1
        %s2091 = smul.addr %s2090, 128
        %s2092 = scalar_lea.vmem [#allocation2], %s2091
        %s2093 = sand.u32 %s173, 1
        %s2094 = scalar_lea.sflag [#allocation5], %s2093
        %s2095 = sand.u32 %s173, 1
        %s2096 = smul.addr %s2095, 128
        %s2097 = scalar_lea.vmem [#allocation4], %s2096
        // Predicated region
        $region41: #{tpu_custom_call.1} parent=39 // pred_check
          %p2098 = pneg %p157
        $region42: #{tpu_custom_call.1} parent=39 // pred_check_branch
          %2100 = sbr.rel (%p2098) target = $region44
        $region43: #{tpu_custom_call.1} parent=39 // pred_region
          %s2101 = smul.u32 16, %s24
          %s2103 = ssub.s32 2048, 2048
          %2104 = vsyncadd %s2089, %s2103
          %s2105 = smul.addr %s2101, 128
          %s2106 = scalar_lea.hbm %s5, %s2105
          %s2107 = sshll.u32 %s2092, 4
          %s2108 = int_to_ptr.vmem [resolvable:$true] %s2107
          %2113 = dma.vmem_to_hbm [thread:$0]  %s2108, 2048, %s2106, %s2089, 128, 128, 8
        $region44: #{tpu_custom_call.1} parent=39 // pred_fallthru
          _
        // Predicated region
        $region45: #{tpu_custom_call.1} parent=39 // pred_check
          %p2114 = pneg %p183
        $region46: #{tpu_custom_call.1} parent=39 // pred_check_branch
          %2116 = sbr.rel (%p2114) target = $region48
        $region47: #{tpu_custom_call.1} parent=39 // pred_region
          %s2117 = smul.u32 16, %s24
          %s2119 = ssub.s32 2048, 2048
          %2120 = vsyncadd %s2094, %s2119
          %s2121 = smul.addr %s2117, 128
          %s2122 = scalar_lea.hbm %s6, %s2121
          %s2123 = sshll.u32 %s2097, 4
          %s2124 = int_to_ptr.vmem [resolvable:$true] %s2123
          %2129 = dma.vmem_to_hbm [thread:$0]  %s2124, 2048, %s2122, %s2094, 128, 128, 8
        $region48: #{tpu_custom_call.1} parent=39 // pred_fallthru
          _
      $region40: #{tpu_custom_call.1} parent=5 // pred_fallthru
        _
      %p2130 = scmp.le.s32.totalorder 2, %s19
      // Predicated region
      $region49: #{tpu_custom_call.1} parent=5 // pred_check
        %p2131 = pneg %p2130
      $region50: #{tpu_custom_call.1} parent=5 // pred_check_branch
        %2133 = sbr.rel (%p2131) target = $region52
      $region51: #{tpu_custom_call.1} parent=5 // pred_region
        %s2134 = ssub.s32 %s19, 2
        // Predicated region
        $region53: #{tpu_custom_call.1} parent=51 // pred_check
          %p2135 = pneg %p163
        $region54: #{tpu_custom_call.1} parent=51 // pred_check_branch
          %2137 = sbr.rel (%p2135) target = $region56
        $region55: #{tpu_custom_call.1} parent=51 // pred_region
          %s2138 = sand.u32 %s148, 1
          %s2139 = scalar_lea.sflag [#allocation3], %s2138
          %s2140 = sand.u32 %s148, 1
          %s2141 = smul.addr %s2140, 128
          %s2142 = scalar_lea.vmem [#allocation2], %s2141
          %2143 = dma.done %s2139, 2048
        $region56: #{tpu_custom_call.1} parent=51 // pred_fallthru
          _
        // Predicated region
        $region57: #{tpu_custom_call.1} parent=51 // pred_check
          %p2144 = pneg %p189
        $region58: #{tpu_custom_call.1} parent=51 // pred_check_branch
          %2146 = sbr.rel (%p2144) target = $region60
        $region59: #{tpu_custom_call.1} parent=51 // pred_region
          %s2147 = sand.u32 %s174, 1
          %s2148 = scalar_lea.sflag [#allocation5], %s2147
          %s2149 = sand.u32 %s174, 1
          %s2150 = smul.addr %s2149, 128
          %s2151 = scalar_lea.vmem [#allocation4], %s2150
          %2152 = dma.done %s2148, 2048
        $region60: #{tpu_custom_call.1} parent=51 // pred_fallthru
          _
      $region52: #{tpu_custom_call.1} parent=5 // pred_fallthru
        _
    $region6: #{tpu_custom_call.1} parent=1 // loop_footer
      %s23 = sadd.s32 1, %s19
    $region7: #{tpu_custom_call.1} parent=1 // loop_footer_branch
      %18 = sbr.rel target = $region3
    $region8: #{tpu_custom_call.1} parent=1 // loop_exit
      _
    %2153 = vsyncpa [#allocation3], 1
    %s2154 = scalar_lea.sflag [#allocation3], 1
    %2155 = vsyncpa %s2154, 1
    %2156 = vsyncpa [#allocation5], 1
    %s2157 = scalar_lea.sflag [#allocation5], 1
    %2158 = vsyncpa %s2157, 1

// kernel: tpu_custom_call.1
$region0: #{tpu_custom_call.1}
  #allocation0 [shape = 'u32[]', space=smem, size = 0x4, offset = 0x4, fixed_abs, tag = 'smem constant byte address 0x4 - core index']
  #allocation1 [shape = 'u32[144,128]{1,0:T(1,128)}', space=vmem, size = 0x12000, scoped, tag = 'internal scratch']
  %s0 = inlined_call_operand.vmem [shape: s32[256,3], index: 0, kind: input, shape index: {}]
  %s1 = inlined_call_operand.vmem [shape: f32[3,16,32], index: 1, kind: input, shape index: {}]
  %s2 = inlined_call_operand.vmem [shape: f32[256,4], index: 2, kind: input, shape index: {}]
  %s3 = inlined_call_operand.vmem [shape: f32[4,32], index: 3, kind: input, shape index: {}]
  %s4 = inlined_call_operand.vmem [shape: f32[4,32], index: 4, kind: input, shape index: {}]
  %s5 = inlined_call_operand.hbm [shape: f32[256,128], index: 5, kind: output, shape index: {0}]
  %s6 = inlined_call_operand.hbm [shape: f32[256,128], index: 6, kind: output, shape index: {1}]
  %7 = xla_tuple %s5, %s6
  %s8 = sld [smem:[#allocation0]]
  $region61: #{tpu_custom_call.1} parent=0
    _
  %s10 = ssub.s32 1, %s8
  %s11 = scalar_select 0, %s10, %s8
  $region1: #{tpu_custom_call.1} parent=0
    #allocation2 [shape = 'u8[131072]{0}', space=vmem, size = 0x20000, scoped, tag = 'output window, operand 0']
    #allocation3 [shape = 's32[2]{0}', space=sflag, size = 0x8, scoped, tag = 'scoped memory for tpu_custom_call.1']
    #allocation4 [shape = 'u8[131072]{0}', space=vmem, size = 0x20000, scoped, tag = 'output window, operand 1']
    #allocation5 [shape = 's32[2]{0}', space=sflag, size = 0x8, scoped, tag = 'scoped memory for tpu_custom_call.1']
    %12 = vsyncpa [#allocation3], 0
    %s13 = scalar_lea.sflag [#allocation3], 1
    %14 = vsyncpa %s13, 0
    %15 = vsyncpa [#allocation5], 0
    %s16 = scalar_lea.sflag [#allocation5], 1
    %17 = vsyncpa %s16, 0
    loop: start=0, step=1, limit=4
    $region2: #{tpu_custom_call.1} parent=1 // loop_pre_header
      _
    $region3: #{tpu_custom_call.1} parent=1 // loop_header
      %s19 = sphi 0, %s23
      %p20 = scmp.ge.s32.totalorder %s19, 4
      %s29 = sphi 0, %s31
      %s32 = sphi 0, %s29
      %s33 = sphi 0, %s32
      %s49 = sphi 0, %s33
      %s53 = sphi 0, %s53
      %s55 = sphi 0, %s53
      %s56 = sphi 0, %s55
      %s70 = sphi 0, %s56
      %s76 = sphi 0, %s78
      %s79 = sphi 0, %s76
      %s80 = sphi 0, %s79
      %s96 = sphi 0, %s80
      %s100 = sphi 0, %s100
      %s102 = sphi 0, %s100
      %s103 = sphi 0, %s102
      %s117 = sphi 0, %s103
      %s121 = sphi 0, %s121
      %s123 = sphi 0, %s121
      %s124 = sphi 0, %s123
      %s138 = sphi 0, %s124
      %s144 = sphi 0, %s146
      %s147 = sphi 0, %s144
      %s148 = sphi 0, %s147
      %s164 = sphi 0, %s148
      %s170 = sphi 0, %s172
      %s173 = sphi 0, %s170
      %s174 = sphi 0, %s173
      %s190 = sphi 0, %s174
    $region4: #{tpu_custom_call.1} parent=1 // loop_header_branch
      %22 = sbr.rel (%p20) target = $region8
    $region5: #{tpu_custom_call.1} parent=1 // loop_body
      %s24 = ssub.s32 %s19, 1
      %s25 = ssub.s32 %s19, 2
      %s26 = sadd.s32 %s19, 1
      %s27 = ssub.s32 %s19, %s26
      %p28 = scmp.eq.s32.totalorder %s27, 0
      %s30 = sadd.s32 %s29, 1
      %s31 = scalar_select %p28, %s29, %s30
      %p34 = pneg %p28
      %p35 = scmp.eq.s32.totalorder %s19, 1
      %p36 = por %p34, %p35
      %p37 = scmp.ne.s32.totalorder %s29, %s32
      %p38 = scmp.eq.s32.totalorder %s19, 0
      %p39 = por %p37, %p38
      %p40 = scmp.ne.s32.totalorder %s29, %s32
      %p41 = scmp.eq.s32.totalorder %s24, 1
      %p42 = por %p40, %p41
      %p43 = scmp.ne.s32.totalorder %s32, %s33
      %p44 = scmp.eq.s32.totalorder %s24, 0
      %p45 = por %p43, %p44
      %p46 = scmp.ne.s32.totalorder %s32, %s33
      %p47 = scmp.eq.s32.totalorder %s25, 1
      %p48 = por %p46, %p47
      %p50 = scmp.ne.s32.totalorder %s33, %s49
      %p51 = scmp.eq.s32.totalorder %s25, 0
      %p52 = por %p50, %p51
      %s54 = sadd.s32 %s53, 1
      %p57 = scmp.eq.s32.totalorder %s19, 1
      %p58 = scmp.ne.s32.totalorder %s53, %s55
      %p59 = scmp.eq.s32.totalorder %s19, 0
      %p60 = por %p58, %p59
      %p61 = scmp.ne.s32.totalorder %s53, %s55
      %p62 = scmp.eq.s32.totalorder %s24, 1
      %p63 = por %p61, %p62
      %p64 = scmp.ne.s32.totalorder %s55, %s56
      %p65 = scmp.eq.s32.totalorder %s24, 0
      %p66 = por %p64, %p65
      %p67 = scmp.ne.s32.totalorder %s55, %s56
      %p68 = scmp.eq.s32.totalorder %s25, 1
      %p69 = por %p67, %p68
      %p71 = scmp.ne.s32.totalorder %s56, %s70
      %p72 = scmp.eq.s32.totalorder %s25, 0
      %p73 = por %p71, %p72
      %s74 = ssub.s32 %s19, %s26
      %p75 = scmp.eq.s32.totalorder %s74, 0
      %s77 = sadd.s32 %s76, 1
      %s78 = scalar_select %p75, %s76, %s77
      %p81 = pneg %p75
      %p82 = scmp.eq.s32.totalorder %s19, 1
      %p83 = por %p81, %p82
      %p84 = scmp.ne.s32.totalorder %s76, %s79
      %p85 = scmp.eq.s32.totalorder %s19, 0
      %p86 = por %p84, %p85
      %p87 = scmp.ne.s32.totalorder %s76, %s79
      %p88 = scmp.eq.s32.totalorder %s24, 1
      %p89 = por %p87, %p88
      %p90 = scmp.ne.s32.totalorder %s79, %s80
      %p91 = scmp.eq.s32.totalorder %s24, 0
      %p92 = por %p90, %p91
      %p93 = scmp.ne.s32.totalorder %s79, %s80
      %p94 = scmp.eq.s32.totalorder %s25, 1
      %p95 = por %p93, %p94
      %p97 = scmp.ne.s32.totalorder %s80, %s96
      %p98 = scmp.eq.s32.totalorder %s25, 0
      %p99 = por %p97, %p98
      %s101 = sadd.s32 %s100, 1
      %p104 = scmp.eq.s32.totalorder %s19, 1
      %p105 = scmp.ne.s32.totalorder %s100, %s102
      %p106 = scmp.eq.s32.totalorder %s19, 0
      %p107 = por %p105, %p106
      %p108 = scmp.ne.s32.totalorder %s100, %s102
      %p109 = scmp.eq.s32.totalorder %s24, 1
      %p110 = por %p108, %p109
      %p111 = scmp.ne.s32.totalorder %s102, %s103
      %p112 = scmp.eq.s32.totalorder %s24, 0
      %p113 = por %p111, %p112
      %p114 = scmp.ne.s32.totalorder %s102, %s103
      %p115 = scmp.eq.s32.totalorder %s25, 1
      %p116 = por %p114, %p115
      %p118 = scmp.ne.s32.totalorder %s103, %s117
      %p119 = scmp.eq.s32.totalorder %s25, 0
      %p120 = por %p118, %p119
      %s122 = sadd.s32 %s121, 1
      %p125 = scmp.eq.s32.totalorder %s19, 1
      %p126 = scmp.ne.s32.totalorder %s121, %s123
      %p127 = scmp.eq.s32.totalorder %s19, 0
      %p128 = por %p126, %p127
      %p129 = scmp.ne.s32.totalorder %s121, %s123
      %p130 = scmp.eq.s32.totalorder %s24, 1
      %p131 = por %p129, %p130
      %p132 = scmp.ne.s32.totalorder %s123, %s124
      %p133 = scmp.eq.s32.totalorder %s24, 0
      %p134 = por %p132, %p133
      %p135 = scmp.ne.s32.totalorder %s123, %s124
      %p136 = scmp.eq.s32.totalorder %s25, 1
      %p137 = por %p135, %p136
      %p139 = scmp.ne.s32.totalorder %s124, %s138
      %p140 = scmp.eq.s32.totalorder %s25, 0
      %p141 = por %p139, %p140
      %s142 = ssub.s32 %s19, %s26
      %p143 = scmp.eq.s32.totalorder %s142, 0
      %s145 = sadd.s32 %s144, 1
      %s146 = scalar_select %p143, %s144, %s145
      %p149 = pneg %p143
      %p150 = scmp.eq.s32.totalorder %s19, 1
      %p151 = por %p149, %p150
      %p152 = scmp.ne.s32.totalorder %s144, %s147
      %p153 = scmp.eq.s32.totalorder %s19, 0
      %p154 = por %p152, %p153
      %p155 = scmp.ne.s32.totalorder %s144, %s147
      %p156 = scmp.eq.s32.totalorder %s24, 1
      %p157 = por %p155, %p156
      %p158 = scmp.ne.s32.totalorder %s147, %s148
      %p159 = scmp.eq.s32.totalorder %s24, 0
      %p160 = por %p158, %p159
      %p161 = scmp.ne.s32.totalorder %s147, %s148
      %p162 = scmp.eq.s32.totalorder %s25, 1
      %p163 = por %p161, %p162
      %p165 = scmp.ne.s32.totalorder %s148, %s164
      %p166 = scmp.eq.s32.totalorder %s25, 0
      %p167 = por %p165, %p166
      %s168 = ssub.s32 %s19, %s26
      %p169 = scmp.eq.s32.totalorder %s168, 0
      %s171 = sadd.s32 %s170, 1
      %s172 = scalar_select %p169, %s170, %s171
      %p175 = pneg %p169
      %p176 = scmp.eq.s32.totalorder %s19, 1
      %p177 = por %p175, %p176
      %p178 = scmp.ne.s32.totalorder %s170, %s173
      %p179 = scmp.eq.s32.totalorder %s19, 0
      %p180 = por %p178, %p179
      %p181 = scmp.ne.s32.totalorder %s170, %s173
      %p182 = scmp.eq.s32.totalorder %s24, 1
      %p183 = por %p181, %p182
      %p184 = scmp.ne.s32.totalorder %s173, %s174
      %p185 = scmp.eq.s32.totalorder %s24, 0
      %p186 = por %p184, %p185
      %p187 = scmp.ne.s32.totalorder %s173, %s174
      %p188 = scmp.eq.s32.totalorder %s25, 1
      %p189 = por %p187, %p188
      %p191 = scmp.ne.s32.totalorder %s174, %s190
      %p192 = scmp.eq.s32.totalorder %s25, 0
      %p193 = por %p191, %p192
      %p194 = scmp.le.s32.totalorder 1, %s19
      %p195 = scmp.lt.s32.totalorder %s19, 3
      %p196 = pnand %p194, %p195
      %p197 = pneg %p196
      // Predicated region
      $region9: #{tpu_custom_call.1} parent=5 // pred_check
        _
      $region10: #{tpu_custom_call.1} parent=5 // pred_check_branch
        %199 = sbr.rel (%p196) target = $region12
      $region11: #{tpu_custom_call.1} parent=5 // pred_region
        %s200 = ssub.s32 %s19, 1
        // Predicated region
        $region13: #{tpu_custom_call.1} parent=11 // pred_check
          %p201 = pneg %p66
        $region14: #{tpu_custom_call.1} parent=11 // pred_check_branch
          %203 = sbr.rel (%p201) target = $region16
        $region15: #{tpu_custom_call.1} parent=11 // pred_region
          _
        $region16: #{tpu_custom_call.1} parent=11 // pred_fallthru
          _
        // Predicated region
        $region17: #{tpu_custom_call.1} parent=11 // pred_check
          %p204 = pneg %p113
        $region18: #{tpu_custom_call.1} parent=11 // pred_check_branch
          %206 = sbr.rel (%p204) target = $region20
        $region19: #{tpu_custom_call.1} parent=11 // pred_region
          _
        $region20: #{tpu_custom_call.1} parent=11 // pred_fallthru
          _
        // Predicated region
        $region21: #{tpu_custom_call.1} parent=11 // pred_check
          %p207 = pneg %p134
        $region22: #{tpu_custom_call.1} parent=11 // pred_check_branch
          %209 = sbr.rel (%p207) target = $region24
        $region23: #{tpu_custom_call.1} parent=11 // pred_region
          _
        $region24: #{tpu_custom_call.1} parent=11 // pred_fallthru
          _
      $region12: #{tpu_custom_call.1} parent=5 // pred_fallthru
        _
      %p210 = scmp.lt.s32.totalorder %s19, 2
      // Predicated region
      $region25: #{tpu_custom_call.1} parent=5 // pred_check
        %p211 = pneg %p210
      $region26: #{tpu_custom_call.1} parent=5 // pred_check_branch
        %213 = sbr.rel (%p211) target = $region28
      $region27: #{tpu_custom_call.1} parent=5 // pred_region
        // Predicated region
        $region29: #{tpu_custom_call.1} parent=27 // pred_check
          %p214 = pneg %p39
        $region30: #{tpu_custom_call.1} parent=27 // pred_check_branch
          %216 = sbr.rel (%p214) target = $region32
        $region31: #{tpu_custom_call.1} parent=27 // pred_region
          %s217 = smul.u32 16, %s19
          %p218 = scmp.lt.s32.totalorder %s217, 31
          %s219 = scalar_select %p218, %s217, 31
          %s220 = smul.addr %s219, 8
          %s221 = scalar_lea.vmem %s0, %s220
          %s222 = smul.u32 16, %s19
        $region32: #{tpu_custom_call.1} parent=27 // pred_fallthru
          _
        // Predicated region
        $region33: #{tpu_custom_call.1} parent=27 // pred_check
          %p223 = pneg %p86
        $region34: #{tpu_custom_call.1} parent=27 // pred_check_branch
          %225 = sbr.rel (%p223) target = $region36
        $region35: #{tpu_custom_call.1} parent=27 // pred_region
          %s226 = smul.u32 16, %s19
          %p227 = scmp.lt.s32.totalorder %s226, 31
          %s228 = scalar_select %p227, %s226, 31
          %s229 = smul.addr %s228, 8
          %s230 = scalar_lea.vmem %s2, %s229
          %s231 = smul.u32 16, %s19
        $region36: #{tpu_custom_call.1} parent=27 // pred_fallthru
          _
      $region28: #{tpu_custom_call.1} parent=5 // pred_fallthru
        _
      %p232 = scmp.le.s32.totalorder 1, %s19
      %p233 = scmp.lt.s32.totalorder %s19, 3
      %p234 = pnand %p232, %p233
      %p235 = pneg %p234
      // Predicated region
      $region37: #{tpu_custom_call.1} parent=5 // pred_check
        _
      $region38: #{tpu_custom_call.1} parent=5 // pred_check_branch
        %237 = sbr.rel (%p234) target = $region40
      $region39: #{tpu_custom_call.1} parent=5 // pred_region
        %s238 = ssub.s32 %s19, 1
        %s239 = smul.u32 16, %s24
        %p240 = scmp.lt.s32.totalorder %s239, 31
        %s241 = scalar_select %p240, %s239, 31
        %s242 = smul.addr %s241, 8
        %s243 = scalar_lea.vmem %s0, %s242
        %p244 = pneg %p45
        %p245 = pneg %p42
        %p246 = pneg %p66
        %p247 = pneg %p63
        %s248 = smul.u32 16, %s24
        %p249 = scmp.lt.s32.totalorder %s248, 31
        %s250 = scalar_select %p249, %s248, 31
        %s251 = smul.addr %s250, 8
        %s252 = scalar_lea.vmem %s2, %s251
        %p253 = pneg %p92
        %p254 = pneg %p89
        %p255 = pneg %p113
        %p256 = pneg %p110
        %p257 = pneg %p134
        %p258 = pneg %p131
        %p259 = pneg %p160
        %p260 = pneg %p157
        %s261 = sand.u32 %s147, 1
        %s262 = scalar_lea.sflag [#allocation3], %s261
        %s263 = sand.u32 %s147, 1
        %s264 = smul.addr %s263, 128
        %s265 = scalar_lea.vmem [#allocation2], %s264
        %p266 = pneg %p186
        %p267 = pneg %p183
        %s268 = sand.u32 %s173, 1
        %s269 = scalar_lea.sflag [#allocation5], %s268
        %s270 = sand.u32 %s173, 1
        %s271 = smul.addr %s270, 128
        %s272 = scalar_lea.vmem [#allocation4], %s271
        %s273 = smul.u32 16, %s24
        %p274 = scmp.lt.s32.totalorder %s273, 31
        %s275 = scalar_select %p274, %s273, 31
        %s276 = smul.addr %s275, 8
        %s277 = scalar_lea.vmem %s0, %s276
        %s278 = smul.u32 16, %s24
        %s279 = smul.u32 16, %s24
        %p280 = scmp.lt.s32.totalorder %s279, 31
        %s281 = scalar_select %p280, %s279, 31
        %s282 = smul.addr %s281, 8
        %s283 = scalar_lea.vmem %s2, %s282
        %s284 = smul.u32 16, %s24
        %s285 = smul.u32 16, %s24
        %s286 = smul.u32 16, %s24
        %v287 = vlaneseq
        %v288 = vand.u32 %v287, 127
        %v289 = vld [vmem:[%s277] sm:$0xff]
        %v290 = vld [vmem:[%s277 + $0x8] sm:$0xff]
        %v291 = vld [vmem:[%s277 + $0x10] sm:$0xff]
        %v292 = vld [vmem:[%s277 + $0x18] sm:$0xff]
        %v293 = vld [vmem:[%s277 + $0x20] sm:$0xff]
        %v294 = vld [vmem:[%s277 + $0x28] sm:$0xff]
        %v295 = vld [vmem:[%s277 + $0x30] sm:$0xff]
        %v296 = vld [vmem:[%s277 + $0x38] sm:$0xff]
        %v297 = vld [vmem:[%s277 + $0x40] sm:$0xff]
        %v298 = vld [vmem:[%s277 + $0x48] sm:$0xff]
        %v299 = vld [vmem:[%s277 + $0x50] sm:$0xff]
        %v300 = vld [vmem:[%s277 + $0x58] sm:$0xff]
        %v301 = vld [vmem:[%s277 + $0x60] sm:$0xff]
        %v302 = vld [vmem:[%s277 + $0x68] sm:$0xff]
        %v303 = vld [vmem:[%s277 + $0x70] sm:$0xff]
        %v304 = vld [vmem:[%s277 + $0x78] sm:$0xff]
        %305 = vset.pattern.permute.xlu0 0
        %306 = vperm.xlu0 %305, %v289
        %v307 = vpop.permute.xlu0 %306
        %308 = vset.pattern.permute.xlu0 0
        %309 = vperm.xlu0 %308, %v290
        %v310 = vpop.permute.xlu0 %309
        %311 = vset.pattern.permute.xlu0 0
        %312 = vperm.xlu0 %311, %v291
        %v313 = vpop.permute.xlu0 %312
        %314 = vset.pattern.permute.xlu0 0
        %315 = vperm.xlu0 %314, %v292
        %v316 = vpop.permute.xlu0 %315
        %317 = vset.pattern.permute.xlu0 0
        %318 = vperm.xlu0 %317, %v293
        %v319 = vpop.permute.xlu0 %318
        %320 = vset.pattern.permute.xlu0 0
        %321 = vperm.xlu0 %320, %v294
        %v322 = vpop.permute.xlu0 %321
        %323 = vset.pattern.permute.xlu0 0
        %324 = vperm.xlu0 %323, %v295
        %v325 = vpop.permute.xlu0 %324
        %326 = vset.pattern.permute.xlu0 0
        %327 = vperm.xlu0 %326, %v296
        %v328 = vpop.permute.xlu0 %327
        %329 = vset.pattern.permute.xlu0 0
        %330 = vperm.xlu0 %329, %v297
        %v331 = vpop.permute.xlu0 %330
        %332 = vset.pattern.permute.xlu0 0
        %333 = vperm.xlu0 %332, %v298
        %v334 = vpop.permute.xlu0 %333
        %335 = vset.pattern.permute.xlu0 0
        %336 = vperm.xlu0 %335, %v299
        %v337 = vpop.permute.xlu0 %336
        %338 = vset.pattern.permute.xlu0 0
        %339 = vperm.xlu0 %338, %v300
        %v340 = vpop.permute.xlu0 %339
        %341 = vset.pattern.permute.xlu0 0
        %342 = vperm.xlu0 %341, %v301
        %v343 = vpop.permute.xlu0 %342
        %344 = vset.pattern.permute.xlu0 0
        %345 = vperm.xlu0 %344, %v302
        %v346 = vpop.permute.xlu0 %345
        %347 = vset.pattern.permute.xlu0 0
        %348 = vperm.xlu0 %347, %v303
        %v349 = vpop.permute.xlu0 %348
        %350 = vset.pattern.permute.xlu0 0
        %351 = vperm.xlu0 %350, %v304
        %v352 = vpop.permute.xlu0 %351
        %vm353 = vcmp.eq.s32.totalorder %v288, %v307
        %vm354 = vcmp.eq.s32.totalorder %v288, %v310
        %vm355 = vcmp.eq.s32.totalorder %v288, %v313
        %vm356 = vcmp.eq.s32.totalorder %v288, %v316
        %vm357 = vcmp.eq.s32.totalorder %v288, %v319
        %vm358 = vcmp.eq.s32.totalorder %v288, %v322
        %vm359 = vcmp.eq.s32.totalorder %v288, %v325
        %vm360 = vcmp.eq.s32.totalorder %v288, %v328
        %vm361 = vcmp.eq.s32.totalorder %v288, %v331
        %vm362 = vcmp.eq.s32.totalorder %v288, %v334
        %vm363 = vcmp.eq.s32.totalorder %v288, %v337
        %vm364 = vcmp.eq.s32.totalorder %v288, %v340
        %vm365 = vcmp.eq.s32.totalorder %v288, %v343
        %vm366 = vcmp.eq.s32.totalorder %v288, %v346
        %vm367 = vcmp.eq.s32.totalorder %v288, %v349
        %vm368 = vcmp.eq.s32.totalorder %v288, %v352
        %v369 = vsel %vm353, 1, 0
        %v370 = vsel %vm354, 1, 0
        %v371 = vsel %vm355, 1, 0
        %v372 = vsel %vm356, 1, 0
        %v373 = vsel %vm357, 1, 0
        %v374 = vsel %vm358, 1, 0
        %v375 = vsel %vm359, 1, 0
        %v376 = vsel %vm360, 1, 0
        %v377 = vsel %vm361, 1, 0
        %v378 = vsel %vm362, 1, 0
        %v379 = vsel %vm363, 1, 0
        %v380 = vsel %vm364, 1, 0
        %v381 = vsel %vm365, 1, 0
        %v382 = vsel %vm366, 1, 0
        %v383 = vsel %vm367, 1, 0
        %v384 = vsel %vm368, 1, 0
        %v385 = vcvt.s32.f32 %v369
        %v386 = vcvt.s32.f32 %v370
        %v387 = vcvt.s32.f32 %v371
        %v388 = vcvt.s32.f32 %v372
        %v389 = vcvt.s32.f32 %v373
        %v390 = vcvt.s32.f32 %v374
        %v391 = vcvt.s32.f32 %v375
        %v392 = vcvt.s32.f32 %v376
        %v393 = vcvt.s32.f32 %v377
        %v394 = vcvt.s32.f32 %v378
        %v395 = vcvt.s32.f32 %v379
        %v396 = vcvt.s32.f32 %v380
        %v397 = vcvt.s32.f32 %v381
        %v398 = vcvt.s32.f32 %v382
        %v399 = vcvt.s32.f32 %v383
        %v400 = vcvt.s32.f32 %v384
        %v401 = vld [vmem:[%s1] sm:$0xff]
        %v402 = vld [vmem:[%s1 + $0x8] sm:$0xff]
        %vm403 = vcmask 130048
        %v405 = vsel %vm403, %v385, 0
        %v408 = vsel %vm403, %v386, 0
        %v411 = vsel %vm403, %v387, 0
        %v414 = vsel %vm403, %v388, 0
        %v417 = vsel %vm403, %v389, 0
        %v420 = vsel %vm403, %v390, 0
        %v423 = vsel %vm403, %v391, 0
        %v426 = vsel %vm403, %v392, 0
        %v429 = vsel %vm403, %v393, 0
        %v432 = vsel %vm403, %v394, 0
        %v435 = vsel %vm403, %v395, 0
        %v438 = vsel %vm403, %v396, 0
        %v441 = vsel %vm403, %v397, 0
        %v444 = vsel %vm403, %v398, 0
        %v447 = vsel %vm403, %v399, 0
        %v450 = vsel %vm403, %v400, 0
        %452 = vmatprep.subr.mxu0 0.0
        %453 = vmatpush1.msra.mxu0 0.0
        %454 = vmatprep.subr.mxu0 0.0
        %455 = vmatpush1.msra.mxu0 0.0
        %456 = vmatprep.subr.mxu0 0.0
        %457 = vmatpush1.msra.mxu0 0.0
        %458 = vmatprep.subr.mxu0 0.0
        %459 = vmatpush1.msra.mxu0 0.0
        %460 = vmatprep.subr.mxu0 0.0
        %461 = vmatpush1.msra.mxu0 0.0
        %462 = vmatprep.subr.mxu0 0.0
        %463 = vmatpush1.msra.mxu0 0.0
        %464 = vmatprep.subr.mxu0 0.0
        %465 = vmatpush1.msra.mxu0 0.0
        %466 = vmatprep.subr.mxu0 0.0
        %467 = vmatpush1.msra.mxu0 0.0
        %468 = vmatprep.subr.mxu0 0.0
        %469 = vmatpush1.msra.mxu0 0.0
        %470 = vmatprep.subr.mxu0 0.0
        %471 = vmatpush1.msra.mxu0 0.0
        %472 = vmatprep.subr.mxu0 0.0
        %473 = vmatpush1.msra.mxu0 0.0
        %474 = vmatprep.subr.mxu0 0.0
        %475 = vmatpush1.msra.mxu0 0.0
        %476 = vmatprep.subr.mxu0 0.0
        %477 = vmatpush1.msra.mxu0 0.0
        %478 = vmatprep.subr.mxu0 0.0
        %479 = vmatpush1.msra.mxu0 0.0
        %480 = vmatprep.subr.mxu0 0.0
        %481 = vmatpush1.msra.mxu0 %v402
        %482 = vmatprep.subr.mxu0 0.0
        %483 = vmatpush1.msra.mxu0 %v401
        %484 = vmatprep.subr.mxu0 0.0
        %485 = vmatpush2.msra.mxu0 0.0
        %486 = vmatprep.subr.mxu0 0.0
        %487 = vmatpush2.msra.mxu0 0.0
        %488 = vmatprep.subr.mxu0 0.0
        %489 = vmatpush2.msra.mxu0 0.0
        %490 = vmatprep.subr.mxu0 0.0
        %491 = vmatpush2.msra.mxu0 0.0
        %492 = vmatprep.subr.mxu0 0.0
        %493 = vmatpush2.msra.mxu0 0.0
        %494 = vmatprep.subr.mxu0 0.0
        %495 = vmatpush2.msra.mxu0 0.0
        %496 = vmatprep.subr.mxu0 0.0
        %497 = vmatpush2.msra.mxu0 0.0
        %498 = vmatprep.subr.mxu0 0.0
        %499 = vmatpush2.msra.mxu0 0.0
        %500 = vmatprep.subr.mxu0 0.0
        %501 = vmatpush2.msra.mxu0 0.0
        %502 = vmatprep.subr.mxu0 0.0
        %503 = vmatpush2.msra.mxu0 0.0
        %504 = vmatprep.subr.mxu0 0.0
        %505 = vmatpush2.msra.mxu0 0.0
        %506 = vmatprep.subr.mxu0 0.0
        %507 = vmatpush2.msra.mxu0 0.0
        %508 = vmatprep.subr.mxu0 0.0
        %509 = vmatpush2.msra.mxu0 0.0
        %510 = vmatprep.subr.mxu0 0.0
        %511 = vmatpush2.msra.mxu0 0.0
        %512 = vmatprep.subr.mxu0 0.0
        %513 = vmatpush2.msra.mxu0 0.0
        %514 = vmatprep.subr.mxu0 0.0
        %515 = vmatpush2.msra.mxu0 0.0
        %516 = vmatprep.mubr.f32.mxu0 0.0
        %517 = vmatmul.mubr.f32.gmra.mxu0 %v405
        %v518 = vpop.f32.mrf.mxu0
        %v519 = vadd.f32 0.0, %v518
        %v520 = vpop.f32.mrf.mxu0
        %521 = vmatprep.mubr.f32.mxu0 0.0
        %522 = vmatmul.mubr.f32.gmra.mxu0 %v408
        %v523 = vpop.f32.mrf.mxu0
        %v524 = vadd.f32 0.0, %v523
        %v525 = vpop.f32.mrf.mxu0
        %526 = vmatprep.mubr.f32.mxu0 0.0
        %527 = vmatmul.mubr.f32.gmra.mxu0 %v411
        %v528 = vpop.f32.mrf.mxu0
        %v529 = vadd.f32 0.0, %v528
        %v530 = vpop.f32.mrf.mxu0
        %531 = vmatprep.mubr.f32.mxu0 0.0
        %532 = vmatmul.mubr.f32.gmra.mxu0 %v414
        %v533 = vpop.f32.mrf.mxu0
        %v534 = vadd.f32 0.0, %v533
        %v535 = vpop.f32.mrf.mxu0
        %536 = vmatprep.mubr.f32.mxu0 0.0
        %537 = vmatmul.mubr.f32.gmra.mxu0 %v417
        %v538 = vpop.f32.mrf.mxu0
        %v539 = vadd.f32 0.0, %v538
        %v540 = vpop.f32.mrf.mxu0
        %541 = vmatprep.mubr.f32.mxu0 0.0
        %542 = vmatmul.mubr.f32.gmra.mxu0 %v420
        %v543 = vpop.f32.mrf.mxu0
        %v544 = vadd.f32 0.0, %v543
        %v545 = vpop.f32.mrf.mxu0
        %546 = vmatprep.mubr.f32.mxu0 0.0
        %547 = vmatmul.mubr.f32.gmra.mxu0 %v423
        %v548 = vpop.f32.mrf.mxu0
        %v549 = vadd.f32 0.0, %v548
        %v550 = vpop.f32.mrf.mxu0
        %551 = vmatprep.mubr.f32.mxu0 0.0
        %552 = vmatmul.mubr.f32.gmra.mxu0 %v426
        %v553 = vpop.f32.mrf.mxu0
        %v554 = vadd.f32 0.0, %v553
        %v555 = vpop.f32.mrf.mxu0
        %556 = vmatprep.mubr.f32.mxu0 0.0
        %557 = vmatmul.mubr.f32.gmra.mxu0 %v429
        %v558 = vpop.f32.mrf.mxu0
        %v559 = vadd.f32 0.0, %v558
        %v560 = vpop.f32.mrf.mxu0
        %561 = vmatprep.mubr.f32.mxu0 0.0
        %562 = vmatmul.mubr.f32.gmra.mxu0 %v432
        %v563 = vpop.f32.mrf.mxu0
        %v564 = vadd.f32 0.0, %v563
        %v565 = vpop.f32.mrf.mxu0
        %566 = vmatprep.mubr.f32.mxu0 0.0
        %567 = vmatmul.mubr.f32.gmra.mxu0 %v435
        %v568 = vpop.f32.mrf.mxu0
        %v569 = vadd.f32 0.0, %v568
        %v570 = vpop.f32.mrf.mxu0
        %571 = vmatprep.mubr.f32.mxu0 0.0
        %572 = vmatmul.mubr.f32.gmra.mxu0 %v438
        %v573 = vpop.f32.mrf.mxu0
        %v574 = vadd.f32 0.0, %v573
        %v575 = vpop.f32.mrf.mxu0
        %576 = vmatprep.mubr.f32.mxu0 0.0
        %577 = vmatmul.mubr.f32.gmra.mxu0 %v441
        %v578 = vpop.f32.mrf.mxu0
        %v579 = vadd.f32 0.0, %v578
        %v580 = vpop.f32.mrf.mxu0
        %581 = vmatprep.mubr.f32.mxu0 0.0
        %582 = vmatmul.mubr.f32.gmra.mxu0 %v444
        %v583 = vpop.f32.mrf.mxu0
        %v584 = vadd.f32 0.0, %v583
        %v585 = vpop.f32.mrf.mxu0
        %586 = vmatprep.mubr.f32.mxu0 0.0
        %587 = vmatmul.mubr.f32.gmra.mxu0 %v447
        %v588 = vpop.f32.mrf.mxu0
        %v589 = vadd.f32 0.0, %v588
        %v590 = vpop.f32.mrf.mxu0
        %591 = vmatprep.mubr.f32.mxu0 0.0
        %592 = vmatmul.mubr.f32.gmra.mxu0 %v450
        %v593 = vpop.f32.mrf.mxu0
        %v594 = vadd.f32 0.0, %v593
        %v595 = vpop.f32.mrf.mxu0
        %596 = vdwg.mxu0
        %597 = vset.pattern.permute.xlu0 1
        %598 = vperm.xlu0 %597, %v289
        %v599 = vpop.permute.xlu0 %598
        %600 = vset.pattern.permute.xlu0 1
        %601 = vperm.xlu0 %600, %v290
        %v602 = vpop.permute.xlu0 %601
        %603 = vset.pattern.permute.xlu0 1
        %604 = vperm.xlu0 %603, %v291
        %v605 = vpop.permute.xlu0 %604
        %606 = vset.pattern.permute.xlu0 1
        %607 = vperm.xlu0 %606, %v292
        %v608 = vpop.permute.xlu0 %607
        %609 = vset.pattern.permute.xlu0 1
        %610 = vperm.xlu0 %609, %v293
        %v611 = vpop.permute.xlu0 %610
        %612 = vset.pattern.permute.xlu0 1
        %613 = vperm.xlu0 %612, %v294
        %v614 = vpop.permute.xlu0 %613
        %615 = vset.pattern.permute.xlu0 1
        %616 = vperm.xlu0 %615, %v295
        %v617 = vpop.permute.xlu0 %616
        %618 = vset.pattern.permute.xlu0 1
        %619 = vperm.xlu0 %618, %v296
        %v620 = vpop.permute.xlu0 %619
        %621 = vset.pattern.permute.xlu0 1
        %622 = vperm.xlu0 %621, %v297
        %v623 = vpop.permute.xlu0 %622
        %624 = vset.pattern.permute.xlu0 1
        %625 = vperm.xlu0 %624, %v298
        %v626 = vpop.permute.xlu0 %625
        %627 = vset.pattern.permute.xlu0 1
        %628 = vperm.xlu0 %627, %v299
        %v629 = vpop.permute.xlu0 %628
        %630 = vset.pattern.permute.xlu0 1
        %631 = vperm.xlu0 %630, %v300
        %v632 = vpop.permute.xlu0 %631
        %633 = vset.pattern.permute.xlu0 1
        %634 = vperm.xlu0 %633, %v301
        %v635 = vpop.permute.xlu0 %634
        %636 = vset.pattern.permute.xlu0 1
        %637 = vperm.xlu0 %636, %v302
        %v638 = vpop.permute.xlu0 %637
        %639 = vset.pattern.permute.xlu0 1
        %640 = vperm.xlu0 %639, %v303
        %v641 = vpop.permute.xlu0 %640
        %642 = vset.pattern.permute.xlu0 1
        %643 = vperm.xlu0 %642, %v304
        %v644 = vpop.permute.xlu0 %643
        %vm645 = vcmp.eq.s32.totalorder %v288, %v599
        %vm646 = vcmp.eq.s32.totalorder %v288, %v602
        %vm647 = vcmp.eq.s32.totalorder %v288, %v605
        %vm648 = vcmp.eq.s32.totalorder %v288, %v608
        %vm649 = vcmp.eq.s32.totalorder %v288, %v611
        %vm650 = vcmp.eq.s32.totalorder %v288, %v614
        %vm651 = vcmp.eq.s32.totalorder %v288, %v617
        %vm652 = vcmp.eq.s32.totalorder %v288, %v620
        %vm653 = vcmp.eq.s32.totalorder %v288, %v623
        %vm654 = vcmp.eq.s32.totalorder %v288, %v626
        %vm655 = vcmp.eq.s32.totalorder %v288, %v629
        %vm656 = vcmp.eq.s32.totalorder %v288, %v632
        %vm657 = vcmp.eq.s32.totalorder %v288, %v635
        %vm658 = vcmp.eq.s32.totalorder %v288, %v638
        %vm659 = vcmp.eq.s32.totalorder %v288, %v641
        %vm660 = vcmp.eq.s32.totalorder %v288, %v644
        %v661 = vsel %vm645, 1, 0
        %v662 = vsel %vm646, 1, 0
        %v663 = vsel %vm647, 1, 0
        %v664 = vsel %vm648, 1, 0
        %v665 = vsel %vm649, 1, 0
        %v666 = vsel %vm650, 1, 0
        %v667 = vsel %vm651, 1, 0
        %v668 = vsel %vm652, 1, 0
        %v669 = vsel %vm653, 1, 0
        %v670 = vsel %vm654, 1, 0
        %v671 = vsel %vm655, 1, 0
        %v672 = vsel %vm656, 1, 0
        %v673 = vsel %vm657, 1, 0
        %v674 = vsel %vm658, 1, 0
        %v675 = vsel %vm659, 1, 0
        %v676 = vsel %vm660, 1, 0
        %v677 = vcvt.s32.f32 %v661
        %v678 = vcvt.s32.f32 %v662
        %v679 = vcvt.s32.f32 %v663
        %v680 = vcvt.s32.f32 %v664
        %v681 = vcvt.s32.f32 %v665
        %v682 = vcvt.s32.f32 %v666
        %v683 = vcvt.s32.f32 %v667
        %v684 = vcvt.s32.f32 %v668
        %v685 = vcvt.s32.f32 %v669
        %v686 = vcvt.s32.f32 %v670
        %v687 = vcvt.s32.f32 %v671
        %v688 = vcvt.s32.f32 %v672
        %v689 = vcvt.s32.f32 %v673
        %v690 = vcvt.s32.f32 %v674
        %v691 = vcvt.s32.f32 %v675
        %v692 = vcvt.s32.f32 %v676
        %s693 = scalar_lea.vmem %s1, 16
        %v694 = vld [vmem:[%s693] sm:$0xff]
        %v695 = vld [vmem:[%s693 + $0x8] sm:$0xff]
        %v697 = vsel %vm403, %v677, 0
        %v700 = vsel %vm403, %v678, 0
        %v703 = vsel %vm403, %v679, 0
        %v706 = vsel %vm403, %v680, 0
        %v709 = vsel %vm403, %v681, 0
        %v712 = vsel %vm403, %v682, 0
        %v715 = vsel %vm403, %v683, 0
        %v718 = vsel %vm403, %v684, 0
        %v721 = vsel %vm403, %v685, 0
        %v724 = vsel %vm403, %v686, 0
        %v727 = vsel %vm403, %v687, 0
        %v730 = vsel %vm403, %v688, 0
        %v733 = vsel %vm403, %v689, 0
        %v736 = vsel %vm403, %v690, 0
        %v739 = vsel %vm403, %v691, 0
        %v742 = vsel %vm403, %v692, 0
        %744 = vmatprep.subr.mxu0 0.0
        %745 = vmatpush1.msra.mxu0 0.0
        %746 = vmatprep.subr.mxu0 0.0
        %747 = vmatpush1.msra.mxu0 0.0
        %748 = vmatprep.subr.mxu0 0.0
        %749 = vmatpush1.msra.mxu0 0.0
        %750 = vmatprep.subr.mxu0 0.0
        %751 = vmatpush1.msra.mxu0 0.0
        %752 = vmatprep.subr.mxu0 0.0
        %753 = vmatpush1.msra.mxu0 0.0
        %754 = vmatprep.subr.mxu0 0.0
        %755 = vmatpush1.msra.mxu0 0.0
        %756 = vmatprep.subr.mxu0 0.0
        %757 = vmatpush1.msra.mxu0 0.0
        %758 = vmatprep.subr.mxu0 0.0
        %759 = vmatpush1.msra.mxu0 0.0
        %760 = vmatprep.subr.mxu0 0.0
        %761 = vmatpush1.msra.mxu0 0.0
        %762 = vmatprep.subr.mxu0 0.0
        %763 = vmatpush1.msra.mxu0 0.0
        %764 = vmatprep.subr.mxu0 0.0
        %765 = vmatpush1.msra.mxu0 0.0
        %766 = vmatprep.subr.mxu0 0.0
        %767 = vmatpush1.msra.mxu0 0.0
        %768 = vmatprep.subr.mxu0 0.0
        %769 = vmatpush1.msra.mxu0 0.0
        %770 = vmatprep.subr.mxu0 0.0
        %771 = vmatpush1.msra.mxu0 0.0
        %772 = vmatprep.subr.mxu0 0.0
        %773 = vmatpush1.msra.mxu0 %v695
        %774 = vmatprep.subr.mxu0 0.0
        %775 = vmatpush1.msra.mxu0 %v694
        %776 = vmatprep.subr.mxu0 0.0
        %777 = vmatpush2.msra.mxu0 0.0
        %778 = vmatprep.subr.mxu0 0.0
        %779 = vmatpush2.msra.mxu0 0.0
        %780 = vmatprep.subr.mxu0 0.0
        %781 = vmatpush2.msra.mxu0 0.0
        %782 = vmatprep.subr.mxu0 0.0
        %783 = vmatpush2.msra.mxu0 0.0
        %784 = vmatprep.subr.mxu0 0.0
        %785 = vmatpush2.msra.mxu0 0.0
        %786 = vmatprep.subr.mxu0 0.0
        %787 = vmatpush2.msra.mxu0 0.0
        %788 = vmatprep.subr.mxu0 0.0
        %789 = vmatpush2.msra.mxu0 0.0
        %790 = vmatprep.subr.mxu0 0.0
        %791 = vmatpush2.msra.mxu0 0.0
        %792 = vmatprep.subr.mxu0 0.0
        %793 = vmatpush2.msra.mxu0 0.0
        %794 = vmatprep.subr.mxu0 0.0
        %795 = vmatpush2.msra.mxu0 0.0
        %796 = vmatprep.subr.mxu0 0.0
        %797 = vmatpush2.msra.mxu0 0.0
        %798 = vmatprep.subr.mxu0 0.0
        %799 = vmatpush2.msra.mxu0 0.0
        %800 = vmatprep.subr.mxu0 0.0
        %801 = vmatpush2.msra.mxu0 0.0
        %802 = vmatprep.subr.mxu0 0.0
        %803 = vmatpush2.msra.mxu0 0.0
        %804 = vmatprep.subr.mxu0 0.0
        %805 = vmatpush2.msra.mxu0 0.0
        %806 = vmatprep.subr.mxu0 0.0
        %807 = vmatpush2.msra.mxu0 0.0
        %808 = vmatprep.mubr.f32.mxu0 0.0
        %809 = vmatmul.mubr.f32.gmra.mxu0 %v697
        %v810 = vpop.f32.mrf.mxu0
        %v811 = vadd.f32 0.0, %v810
        %v812 = vpop.f32.mrf.mxu0
        %813 = vmatprep.mubr.f32.mxu0 0.0
        %814 = vmatmul.mubr.f32.gmra.mxu0 %v700
        %v815 = vpop.f32.mrf.mxu0
        %v816 = vadd.f32 0.0, %v815
        %v817 = vpop.f32.mrf.mxu0
        %818 = vmatprep.mubr.f32.mxu0 0.0
        %819 = vmatmul.mubr.f32.gmra.mxu0 %v703
        %v820 = vpop.f32.mrf.mxu0
        %v821 = vadd.f32 0.0, %v820
        %v822 = vpop.f32.mrf.mxu0
        %823 = vmatprep.mubr.f32.mxu0 0.0
        %824 = vmatmul.mubr.f32.gmra.mxu0 %v706
        %v825 = vpop.f32.mrf.mxu0
        %v826 = vadd.f32 0.0, %v825
        %v827 = vpop.f32.mrf.mxu0
        %828 = vmatprep.mubr.f32.mxu0 0.0
        %829 = vmatmul.mubr.f32.gmra.mxu0 %v709
        %v830 = vpop.f32.mrf.mxu0
        %v831 = vadd.f32 0.0, %v830
        %v832 = vpop.f32.mrf.mxu0
        %833 = vmatprep.mubr.f32.mxu0 0.0
        %834 = vmatmul.mubr.f32.gmra.mxu0 %v712
        %v835 = vpop.f32.mrf.mxu0
        %v836 = vadd.f32 0.0, %v835
        %v837 = vpop.f32.mrf.mxu0
        %838 = vmatprep.mubr.f32.mxu0 0.0
        %839 = vmatmul.mubr.f32.gmra.mxu0 %v715
        %v840 = vpop.f32.mrf.mxu0
        %v841 = vadd.f32 0.0, %v840
        %v842 = vpop.f32.mrf.mxu0
        %843 = vmatprep.mubr.f32.mxu0 0.0
        %844 = vmatmul.mubr.f32.gmra.mxu0 %v718
        %v845 = vpop.f32.mrf.mxu0
        %v846 = vadd.f32 0.0, %v845
        %v847 = vpop.f32.mrf.mxu0
        %848 = vmatprep.mubr.f32.mxu0 0.0
        %849 = vmatmul.mubr.f32.gmra.mxu0 %v721
        %v850 = vpop.f32.mrf.mxu0
        %v851 = vadd.f32 0.0, %v850
        %v852 = vpop.f32.mrf.mxu0
        %853 = vmatprep.mubr.f32.mxu0 0.0
        %854 = vmatmul.mubr.f32.gmra.mxu0 %v724
        %v855 = vpop.f32.mrf.mxu0
        %v856 = vadd.f32 0.0, %v855
        %v857 = vpop.f32.mrf.mxu0
        %858 = vmatprep.mubr.f32.mxu0 0.0
        %859 = vmatmul.mubr.f32.gmra.mxu0 %v727
        %v860 = vpop.f32.mrf.mxu0
        %v861 = vadd.f32 0.0, %v860
        %v862 = vpop.f32.mrf.mxu0
        %863 = vmatprep.mubr.f32.mxu0 0.0
        %864 = vmatmul.mubr.f32.gmra.mxu0 %v730
        %v865 = vpop.f32.mrf.mxu0
        %v866 = vadd.f32 0.0, %v865
        %v867 = vpop.f32.mrf.mxu0
        %868 = vmatprep.mubr.f32.mxu0 0.0
        %869 = vmatmul.mubr.f32.gmra.mxu0 %v733
        %v870 = vpop.f32.mrf.mxu0
        %v871 = vadd.f32 0.0, %v870
        %v872 = vpop.f32.mrf.mxu0
        %873 = vmatprep.mubr.f32.mxu0 0.0
        %874 = vmatmul.mubr.f32.gmra.mxu0 %v736
        %v875 = vpop.f32.mrf.mxu0
        %v876 = vadd.f32 0.0, %v875
        %v877 = vpop.f32.mrf.mxu0
        %878 = vmatprep.mubr.f32.mxu0 0.0
        %879 = vmatmul.mubr.f32.gmra.mxu0 %v739
        %v880 = vpop.f32.mrf.mxu0
        %v881 = vadd.f32 0.0, %v880
        %v882 = vpop.f32.mrf.mxu0
        %883 = vmatprep.mubr.f32.mxu0 0.0
        %884 = vmatmul.mubr.f32.gmra.mxu0 %v742
        %v885 = vpop.f32.mrf.mxu0
        %v886 = vadd.f32 0.0, %v885
        %v887 = vpop.f32.mrf.mxu0
        %888 = vdwg.mxu0
        %889 = vset.pattern.permute.xlu0 2
        %890 = vperm.xlu0 %889, %v289
        %v891 = vpop.permute.xlu0 %890
        %892 = vset.pattern.permute.xlu0 2
        %893 = vperm.xlu0 %892, %v290
        %v894 = vpop.permute.xlu0 %893
        %895 = vset.pattern.permute.xlu0 2
        %896 = vperm.xlu0 %895, %v291
        %v897 = vpop.permute.xlu0 %896
        %898 = vset.pattern.permute.xlu0 2
        %899 = vperm.xlu0 %898, %v292
        %v900 = vpop.permute.xlu0 %899
        %901 = vset.pattern.permute.xlu0 2
        %902 = vperm.xlu0 %901, %v293
        %v903 = vpop.permute.xlu0 %902
        %904 = vset.pattern.permute.xlu0 2
        %905 = vperm.xlu0 %904, %v294
        %v906 = vpop.permute.xlu0 %905
        %907 = vset.pattern.permute.xlu0 2
        %908 = vperm.xlu0 %907, %v295
        %v909 = vpop.permute.xlu0 %908
        %910 = vset.pattern.permute.xlu0 2
        %911 = vperm.xlu0 %910, %v296
        %v912 = vpop.permute.xlu0 %911
        %913 = vset.pattern.permute.xlu0 2
        %914 = vperm.xlu0 %913, %v297
        %v915 = vpop.permute.xlu0 %914
        %916 = vset.pattern.permute.xlu0 2
        %917 = vperm.xlu0 %916, %v298
        %v918 = vpop.permute.xlu0 %917
        %919 = vset.pattern.permute.xlu0 2
        %920 = vperm.xlu0 %919, %v299
        %v921 = vpop.permute.xlu0 %920
        %922 = vset.pattern.permute.xlu0 2
        %923 = vperm.xlu0 %922, %v300
        %v924 = vpop.permute.xlu0 %923
        %925 = vset.pattern.permute.xlu0 2
        %926 = vperm.xlu0 %925, %v301
        %v927 = vpop.permute.xlu0 %926
        %928 = vset.pattern.permute.xlu0 2
        %929 = vperm.xlu0 %928, %v302
        %v930 = vpop.permute.xlu0 %929
        %931 = vset.pattern.permute.xlu0 2
        %932 = vperm.xlu0 %931, %v303
        %v933 = vpop.permute.xlu0 %932
        %934 = vset.pattern.permute.xlu0 2
        %935 = vperm.xlu0 %934, %v304
        %v936 = vpop.permute.xlu0 %935
        %vm937 = vcmp.eq.s32.totalorder %v288, %v891
        %vm938 = vcmp.eq.s32.totalorder %v288, %v894
        %vm939 = vcmp.eq.s32.totalorder %v288, %v897
        %vm940 = vcmp.eq.s32.totalorder %v288, %v900
        %vm941 = vcmp.eq.s32.totalorder %v288, %v903
        %vm942 = vcmp.eq.s32.totalorder %v288, %v906
        %vm943 = vcmp.eq.s32.totalorder %v288, %v909
        %vm944 = vcmp.eq.s32.totalorder %v288, %v912
        %vm945 = vcmp.eq.s32.totalorder %v288, %v915
        %vm946 = vcmp.eq.s32.totalorder %v288, %v918
        %vm947 = vcmp.eq.s32.totalorder %v288, %v921
        %vm948 = vcmp.eq.s32.totalorder %v288, %v924
        %vm949 = vcmp.eq.s32.totalorder %v288, %v927
        %vm950 = vcmp.eq.s32.totalorder %v288, %v930
        %vm951 = vcmp.eq.s32.totalorder %v288, %v933
        %vm952 = vcmp.eq.s32.totalorder %v288, %v936
        %v953 = vsel %vm937, 1, 0
        %v954 = vsel %vm938, 1, 0
        %v955 = vsel %vm939, 1, 0
        %v956 = vsel %vm940, 1, 0
        %v957 = vsel %vm941, 1, 0
        %v958 = vsel %vm942, 1, 0
        %v959 = vsel %vm943, 1, 0
        %v960 = vsel %vm944, 1, 0
        %v961 = vsel %vm945, 1, 0
        %v962 = vsel %vm946, 1, 0
        %v963 = vsel %vm947, 1, 0
        %v964 = vsel %vm948, 1, 0
        %v965 = vsel %vm949, 1, 0
        %v966 = vsel %vm950, 1, 0
        %v967 = vsel %vm951, 1, 0
        %v968 = vsel %vm952, 1, 0
        %v969 = vcvt.s32.f32 %v953
        %v970 = vcvt.s32.f32 %v954
        %v971 = vcvt.s32.f32 %v955
        %v972 = vcvt.s32.f32 %v956
        %v973 = vcvt.s32.f32 %v957
        %v974 = vcvt.s32.f32 %v958
        %v975 = vcvt.s32.f32 %v959
        %v976 = vcvt.s32.f32 %v960
        %v977 = vcvt.s32.f32 %v961
        %v978 = vcvt.s32.f32 %v962
        %v979 = vcvt.s32.f32 %v963
        %v980 = vcvt.s32.f32 %v964
        %v981 = vcvt.s32.f32 %v965
        %v982 = vcvt.s32.f32 %v966
        %v983 = vcvt.s32.f32 %v967
        %v984 = vcvt.s32.f32 %v968
        %s985 = scalar_lea.vmem %s1, 32
        %v986 = vld [vmem:[%s985] sm:$0xff]
        %v987 = vld [vmem:[%s985 + $0x8] sm:$0xff]
        %v989 = vsel %vm403, %v969, 0
        %v992 = vsel %vm403, %v970, 0
        %v995 = vsel %vm403, %v971, 0
        %v998 = vsel %vm403, %v972, 0
        %v1001 = vsel %vm403, %v973, 0
        %v1004 = vsel %vm403, %v974, 0
        %v1007 = vsel %vm403, %v975, 0
        %v1010 = vsel %vm403, %v976, 0
        %v1013 = vsel %vm403, %v977, 0
        %v1016 = vsel %vm403, %v978, 0
        %v1019 = vsel %vm403, %v979, 0
        %v1022 = vsel %vm403, %v980, 0
        %v1025 = vsel %vm403, %v981, 0
        %v1028 = vsel %vm403, %v982, 0
        %v1031 = vsel %vm403, %v983, 0
        %v1034 = vsel %vm403, %v984, 0
        %1036 = vmatprep.subr.mxu0 0.0
        %1037 = vmatpush1.msra.mxu0 0.0
        %1038 = vmatprep.subr.mxu0 0.0
        %1039 = vmatpush1.msra.mxu0 0.0
        %1040 = vmatprep.subr.mxu0 0.0
        %1041 = vmatpush1.msra.mxu0 0.0
        %1042 = vmatprep.subr.mxu0 0.0
        %1043 = vmatpush1.msra.mxu0 0.0
        %1044 = vmatprep.subr.mxu0 0.0
        %1045 = vmatpush1.msra.mxu0 0.0
        %1046 = vmatprep.subr.mxu0 0.0
        %1047 = vmatpush1.msra.mxu0 0.0
        %1048 = vmatprep.subr.mxu0 0.0
        %1049 = vmatpush1.msra.mxu0 0.0
        %1050 = vmatprep.subr.mxu0 0.0
        %1051 = vmatpush1.msra.mxu0 0.0
        %1052 = vmatprep.subr.mxu0 0.0
        %1053 = vmatpush1.msra.mxu0 0.0
        %1054 = vmatprep.subr.mxu0 0.0
        %1055 = vmatpush1.msra.mxu0 0.0
        %1056 = vmatprep.subr.mxu0 0.0
        %1057 = vmatpush1.msra.mxu0 0.0
        %1058 = vmatprep.subr.mxu0 0.0
        %1059 = vmatpush1.msra.mxu0 0.0
        %1060 = vmatprep.subr.mxu0 0.0
        %1061 = vmatpush1.msra.mxu0 0.0
        %1062 = vmatprep.subr.mxu0 0.0
        %1063 = vmatpush1.msra.mxu0 0.0
        %1064 = vmatprep.subr.mxu0 0.0
        %1065 = vmatpush1.msra.mxu0 %v987
        %1066 = vmatprep.subr.mxu0 0.0
        %1067 = vmatpush1.msra.mxu0 %v986
        %1068 = vmatprep.subr.mxu0 0.0
        %1069 = vmatpush2.msra.mxu0 0.0
        %1070 = vmatprep.subr.mxu0 0.0
        %1071 = vmatpush2.msra.mxu0 0.0
        %1072 = vmatprep.subr.mxu0 0.0
        %1073 = vmatpush2.msra.mxu0 0.0
        %1074 = vmatprep.subr.mxu0 0.0
        %1075 = vmatpush2.msra.mxu0 0.0
        %1076 = vmatprep.subr.mxu0 0.0
        %1077 = vmatpush2.msra.mxu0 0.0
        %1078 = vmatprep.subr.mxu0 0.0
        %1079 = vmatpush2.msra.mxu0 0.0
        %1080 = vmatprep.subr.mxu0 0.0
        %1081 = vmatpush2.msra.mxu0 0.0
        %1082 = vmatprep.subr.mxu0 0.0
        %1083 = vmatpush2.msra.mxu0 0.0
        %1084 = vmatprep.subr.mxu0 0.0
        %1085 = vmatpush2.msra.mxu0 0.0
        %1086 = vmatprep.subr.mxu0 0.0
        %1087 = vmatpush2.msra.mxu0 0.0
        %1088 = vmatprep.subr.mxu0 0.0
        %1089 = vmatpush2.msra.mxu0 0.0
        %1090 = vmatprep.subr.mxu0 0.0
        %1091 = vmatpush2.msra.mxu0 0.0
        %1092 = vmatprep.subr.mxu0 0.0
        %1093 = vmatpush2.msra.mxu0 0.0
        %1094 = vmatprep.subr.mxu0 0.0
        %1095 = vmatpush2.msra.mxu0 0.0
        %1096 = vmatprep.subr.mxu0 0.0
        %1097 = vmatpush2.msra.mxu0 0.0
        %1098 = vmatprep.subr.mxu0 0.0
        %1099 = vmatpush2.msra.mxu0 0.0
        %1100 = vmatprep.mubr.f32.mxu0 0.0
        %1101 = vmatmul.mubr.f32.gmra.mxu0 %v989
        %v1102 = vpop.f32.mrf.mxu0
        %v1103 = vadd.f32 0.0, %v1102
        %v1104 = vpop.f32.mrf.mxu0
        %1105 = vmatprep.mubr.f32.mxu0 0.0
        %1106 = vmatmul.mubr.f32.gmra.mxu0 %v992
        %v1107 = vpop.f32.mrf.mxu0
        %v1108 = vadd.f32 0.0, %v1107
        %v1109 = vpop.f32.mrf.mxu0
        %1110 = vmatprep.mubr.f32.mxu0 0.0
        %1111 = vmatmul.mubr.f32.gmra.mxu0 %v995
        %v1112 = vpop.f32.mrf.mxu0
        %v1113 = vadd.f32 0.0, %v1112
        %v1114 = vpop.f32.mrf.mxu0
        %1115 = vmatprep.mubr.f32.mxu0 0.0
        %1116 = vmatmul.mubr.f32.gmra.mxu0 %v998
        %v1117 = vpop.f32.mrf.mxu0
        %v1118 = vadd.f32 0.0, %v1117
        %v1119 = vpop.f32.mrf.mxu0
        %1120 = vmatprep.mubr.f32.mxu0 0.0
        %1121 = vmatmul.mubr.f32.gmra.mxu0 %v1001
        %v1122 = vpop.f32.mrf.mxu0
        %v1123 = vadd.f32 0.0, %v1122
        %v1124 = vpop.f32.mrf.mxu0
        %1125 = vmatprep.mubr.f32.mxu0 0.0
        %1126 = vmatmul.mubr.f32.gmra.mxu0 %v1004
        %v1127 = vpop.f32.mrf.mxu0
        %v1128 = vadd.f32 0.0, %v1127
        %v1129 = vpop.f32.mrf.mxu0
        %1130 = vmatprep.mubr.f32.mxu0 0.0
        %1131 = vmatmul.mubr.f32.gmra.mxu0 %v1007
        %v1132 = vpop.f32.mrf.mxu0
        %v1133 = vadd.f32 0.0, %v1132
        %v1134 = vpop.f32.mrf.mxu0
        %1135 = vmatprep.mubr.f32.mxu0 0.0
        %1136 = vmatmul.mubr.f32.gmra.mxu0 %v1010
        %v1137 = vpop.f32.mrf.mxu0
        %v1138 = vadd.f32 0.0, %v1137
        %v1139 = vpop.f32.mrf.mxu0
        %1140 = vmatprep.mubr.f32.mxu0 0.0
        %1141 = vmatmul.mubr.f32.gmra.mxu0 %v1013
        %v1142 = vpop.f32.mrf.mxu0
        %v1143 = vadd.f32 0.0, %v1142
        %v1144 = vpop.f32.mrf.mxu0
        %1145 = vmatprep.mubr.f32.mxu0 0.0
        %1146 = vmatmul.mubr.f32.gmra.mxu0 %v1016
        %v1147 = vpop.f32.mrf.mxu0
        %v1148 = vadd.f32 0.0, %v1147
        %v1149 = vpop.f32.mrf.mxu0
        %1150 = vmatprep.mubr.f32.mxu0 0.0
        %1151 = vmatmul.mubr.f32.gmra.mxu0 %v1019
        %v1152 = vpop.f32.mrf.mxu0
        %v1153 = vadd.f32 0.0, %v1152
        %v1154 = vpop.f32.mrf.mxu0
        %1155 = vmatprep.mubr.f32.mxu0 0.0
        %1156 = vmatmul.mubr.f32.gmra.mxu0 %v1022
        %v1157 = vpop.f32.mrf.mxu0
        %v1158 = vadd.f32 0.0, %v1157
        %v1159 = vpop.f32.mrf.mxu0
        %1160 = vmatprep.mubr.f32.mxu0 0.0
        %1161 = vmatmul.mubr.f32.gmra.mxu0 %v1025
        %v1162 = vpop.f32.mrf.mxu0
        %v1163 = vadd.f32 0.0, %v1162
        %v1164 = vpop.f32.mrf.mxu0
        %1165 = vmatprep.mubr.f32.mxu0 0.0
        %1166 = vmatmul.mubr.f32.gmra.mxu0 %v1028
        %v1167 = vpop.f32.mrf.mxu0
        %v1168 = vadd.f32 0.0, %v1167
        %v1169 = vpop.f32.mrf.mxu0
        %1170 = vmatprep.mubr.f32.mxu0 0.0
        %1171 = vmatmul.mubr.f32.gmra.mxu0 %v1031
        %v1172 = vpop.f32.mrf.mxu0
        %v1173 = vadd.f32 0.0, %v1172
        %v1174 = vpop.f32.mrf.mxu0
        %1175 = vmatprep.mubr.f32.mxu0 0.0
        %1176 = vmatmul.mubr.f32.gmra.mxu0 %v1034
        %v1177 = vpop.f32.mrf.mxu0
        %v1178 = vadd.f32 0.0, %v1177
        %v1179 = vpop.f32.mrf.mxu0
        %1180 = vdwg.mxu0
        %1197 = vrot.lane.b32.xlu0 %v811, 32
        %v1198 = vpop.permute.xlu0 %1197
        %1199 = vrot.lane.b32.xlu0 %v816, 32
        %v1200 = vpop.permute.xlu0 %1199
        %1201 = vrot.lane.b32.xlu0 %v821, 32
        %v1202 = vpop.permute.xlu0 %1201
        %1203 = vrot.lane.b32.xlu0 %v826, 32
        %v1204 = vpop.permute.xlu0 %1203
        %1205 = vrot.lane.b32.xlu0 %v831, 32
        %v1206 = vpop.permute.xlu0 %1205
        %1207 = vrot.lane.b32.xlu0 %v836, 32
        %v1208 = vpop.permute.xlu0 %1207
        %1209 = vrot.lane.b32.xlu0 %v841, 32
        %v1210 = vpop.permute.xlu0 %1209
        %1211 = vrot.lane.b32.xlu0 %v846, 32
        %v1212 = vpop.permute.xlu0 %1211
        %1213 = vrot.lane.b32.xlu0 %v851, 32
        %v1214 = vpop.permute.xlu0 %1213
        %1215 = vrot.lane.b32.xlu0 %v856, 32
        %v1216 = vpop.permute.xlu0 %1215
        %1217 = vrot.lane.b32.xlu0 %v861, 32
        %v1218 = vpop.permute.xlu0 %1217
        %1219 = vrot.lane.b32.xlu0 %v866, 32
        %v1220 = vpop.permute.xlu0 %1219
        %1221 = vrot.lane.b32.xlu0 %v871, 32
        %v1222 = vpop.permute.xlu0 %1221
        %1223 = vrot.lane.b32.xlu0 %v876, 32
        %v1224 = vpop.permute.xlu0 %1223
        %1225 = vrot.lane.b32.xlu0 %v881, 32
        %v1226 = vpop.permute.xlu0 %1225
        %1227 = vrot.lane.b32.xlu0 %v886, 32
        %v1228 = vpop.permute.xlu0 %1227
        %1261 = vrot.lane.b32.xlu0 %v1103, 64
        %v1262 = vpop.permute.xlu0 %1261
        %1263 = vrot.lane.b32.xlu0 %v1108, 64
        %v1264 = vpop.permute.xlu0 %1263
        %1265 = vrot.lane.b32.xlu0 %v1113, 64
        %v1266 = vpop.permute.xlu0 %1265
        %1267 = vrot.lane.b32.xlu0 %v1118, 64
        %v1268 = vpop.permute.xlu0 %1267
        %1269 = vrot.lane.b32.xlu0 %v1123, 64
        %v1270 = vpop.permute.xlu0 %1269
        %1271 = vrot.lane.b32.xlu0 %v1128, 64
        %v1272 = vpop.permute.xlu0 %1271
        %1273 = vrot.lane.b32.xlu0 %v1133, 64
        %v1274 = vpop.permute.xlu0 %1273
        %1275 = vrot.lane.b32.xlu0 %v1138, 64
        %v1276 = vpop.permute.xlu0 %1275
        %1277 = vrot.lane.b32.xlu0 %v1143, 64
        %v1278 = vpop.permute.xlu0 %1277
        %1279 = vrot.lane.b32.xlu0 %v1148, 64
        %v1280 = vpop.permute.xlu0 %1279
        %1281 = vrot.lane.b32.xlu0 %v1153, 64
        %v1282 = vpop.permute.xlu0 %1281
        %1283 = vrot.lane.b32.xlu0 %v1158, 64
        %v1284 = vpop.permute.xlu0 %1283
        %1285 = vrot.lane.b32.xlu0 %v1163, 64
        %v1286 = vpop.permute.xlu0 %1285
        %1287 = vrot.lane.b32.xlu0 %v1168, 64
        %v1288 = vpop.permute.xlu0 %1287
        %1289 = vrot.lane.b32.xlu0 %v1173, 64
        %v1290 = vpop.permute.xlu0 %1289
        %1291 = vrot.lane.b32.xlu0 %v1178, 64
        %v1292 = vpop.permute.xlu0 %1291
        %vm1309 = vcmask 261120
        %v1310 = vsel %vm1309, %v519, %v1198
        %v1311 = vsel %vm1309, %v524, %v1200
        %v1312 = vsel %vm1309, %v529, %v1202
        %v1313 = vsel %vm1309, %v534, %v1204
        %v1314 = vsel %vm1309, %v539, %v1206
        %v1315 = vsel %vm1309, %v544, %v1208
        %v1316 = vsel %vm1309, %v549, %v1210
        %v1317 = vsel %vm1309, %v554, %v1212
        %v1318 = vsel %vm1309, %v559, %v1214
        %v1319 = vsel %vm1309, %v564, %v1216
        %v1320 = vsel %vm1309, %v569, %v1218
        %v1321 = vsel %vm1309, %v574, %v1220
        %v1322 = vsel %vm1309, %v579, %v1222
        %v1323 = vsel %vm1309, %v584, %v1224
        %v1324 = vsel %vm1309, %v589, %v1226
        %v1325 = vsel %vm1309, %v594, %v1228
        %vm1326 = vcmask 523264
        %v1327 = vsel %vm1326, %v1310, %v1262
        %v1328 = vsel %vm1326, %v1311, %v1264
        %v1329 = vsel %vm1326, %v1312, %v1266
        %v1330 = vsel %vm1326, %v1313, %v1268
        %v1331 = vsel %vm1326, %v1314, %v1270
        %v1332 = vsel %vm1326, %v1315, %v1272
        %v1333 = vsel %vm1326, %v1316, %v1274
        %v1334 = vsel %vm1326, %v1317, %v1276
        %v1335 = vsel %vm1326, %v1318, %v1278
        %v1336 = vsel %vm1326, %v1319, %v1280
        %v1337 = vsel %vm1326, %v1320, %v1282
        %v1338 = vsel %vm1326, %v1321, %v1284
        %v1339 = vsel %vm1326, %v1322, %v1286
        %v1340 = vsel %vm1326, %v1323, %v1288
        %v1341 = vsel %vm1326, %v1324, %v1290
        %v1342 = vsel %vm1326, %v1325, %v1292
        %vm1343 = vcmask 785408
        %v1344 = vsel %vm1343, %v1327, 0.0
        %v1345 = vsel %vm1343, %v1328, 0.0
        %v1346 = vsel %vm1343, %v1329, 0.0
        %v1347 = vsel %vm1343, %v1330, 0.0
        %v1348 = vsel %vm1343, %v1331, 0.0
        %v1349 = vsel %vm1343, %v1332, 0.0
        %v1350 = vsel %vm1343, %v1333, 0.0
        %v1351 = vsel %vm1343, %v1334, 0.0
        %v1352 = vsel %vm1343, %v1335, 0.0
        %v1353 = vsel %vm1343, %v1336, 0.0
        %v1354 = vsel %vm1343, %v1337, 0.0
        %v1355 = vsel %vm1343, %v1338, 0.0
        %v1356 = vsel %vm1343, %v1339, 0.0
        %v1357 = vsel %vm1343, %v1340, 0.0
        %v1358 = vsel %vm1343, %v1341, 0.0
        %v1359 = vsel %vm1343, %v1342, 0.0
        %1360 = vst [vmem:[%s265] sm:$0xff] %v1344
        %1361 = vst [vmem:[%s265 + $0x8] sm:$0xff] %v1345
        %1362 = vst [vmem:[%s265 + $0x10] sm:$0xff] %v1346
        %1363 = vst [vmem:[%s265 + $0x18] sm:$0xff] %v1347
        %1364 = vst [vmem:[%s265 + $0x20] sm:$0xff] %v1348
        %1365 = vst [vmem:[%s265 + $0x28] sm:$0xff] %v1349
        %1366 = vst [vmem:[%s265 + $0x30] sm:$0xff] %v1350
        %1367 = vst [vmem:[%s265 + $0x38] sm:$0xff] %v1351
        %1368 = vst [vmem:[%s265 + $0x40] sm:$0xff] %v1352
        %1369 = vst [vmem:[%s265 + $0x48] sm:$0xff] %v1353
        %1370 = vst [vmem:[%s265 + $0x50] sm:$0xff] %v1354
        %1371 = vst [vmem:[%s265 + $0x58] sm:$0xff] %v1355
        %1372 = vst [vmem:[%s265 + $0x60] sm:$0xff] %v1356
        %1373 = vst [vmem:[%s265 + $0x68] sm:$0xff] %v1357
        %1374 = vst [vmem:[%s265 + $0x70] sm:$0xff] %v1358
        %1375 = vst [vmem:[%s265 + $0x78] sm:$0xff] %v1359
        %v1376 = vld [vmem:[%s283] sm:$0xff]
        %v1377 = vld [vmem:[%s283 + $0x8] sm:$0xff]
        %v1378 = vld [vmem:[%s283 + $0x10] sm:$0xff]
        %v1379 = vld [vmem:[%s283 + $0x18] sm:$0xff]
        %v1380 = vld [vmem:[%s283 + $0x20] sm:$0xff]
        %v1381 = vld [vmem:[%s283 + $0x28] sm:$0xff]
        %v1382 = vld [vmem:[%s283 + $0x30] sm:$0xff]
        %v1383 = vld [vmem:[%s283 + $0x38] sm:$0xff]
        %v1384 = vld [vmem:[%s283 + $0x40] sm:$0xff]
        %v1385 = vld [vmem:[%s283 + $0x48] sm:$0xff]
        %v1386 = vld [vmem:[%s283 + $0x50] sm:$0xff]
        %v1387 = vld [vmem:[%s283 + $0x58] sm:$0xff]
        %v1388 = vld [vmem:[%s283 + $0x60] sm:$0xff]
        %v1389 = vld [vmem:[%s283 + $0x68] sm:$0xff]
        %v1390 = vld [vmem:[%s283 + $0x70] sm:$0xff]
        %v1391 = vld [vmem:[%s283 + $0x78] sm:$0xff]
        %v1392 = vld [vmem:[%s3] sm:$0x1]
        %1394 = vset.pattern.permute.xlu0 0
        %1395 = vperm.xlu0 %1394, %v1376
        %v1396 = vpop.permute.xlu0 %1395
        %1399 = vset.pattern.permute.xlu0 0
        %1400 = vperm.xlu0 %1399, %v1377
        %v1401 = vpop.permute.xlu0 %1400
        %1404 = vset.pattern.permute.xlu0 0
        %1405 = vperm.xlu0 %1404, %v1378
        %v1406 = vpop.permute.xlu0 %1405
        %1409 = vset.pattern.permute.xlu0 0
        %1410 = vperm.xlu0 %1409, %v1379
        %v1411 = vpop.permute.xlu0 %1410
        %1414 = vset.pattern.permute.xlu0 0
        %1415 = vperm.xlu0 %1414, %v1380
        %v1416 = vpop.permute.xlu0 %1415
        %1419 = vset.pattern.permute.xlu0 0
        %1420 = vperm.xlu0 %1419, %v1381
        %v1421 = vpop.permute.xlu0 %1420
        %1424 = vset.pattern.permute.xlu0 0
        %1425 = vperm.xlu0 %1424, %v1382
        %v1426 = vpop.permute.xlu0 %1425
        %1429 = vset.pattern.permute.xlu0 0
        %1430 = vperm.xlu0 %1429, %v1383
        %v1431 = vpop.permute.xlu0 %1430
        %1434 = vset.pattern.permute.xlu0 0
        %1435 = vperm.xlu0 %1434, %v1384
        %v1436 = vpop.permute.xlu0 %1435
        %1439 = vset.pattern.permute.xlu0 0
        %1440 = vperm.xlu0 %1439, %v1385
        %v1441 = vpop.permute.xlu0 %1440
        %1444 = vset.pattern.permute.xlu0 0
        %1445 = vperm.xlu0 %1444, %v1386
        %v1446 = vpop.permute.xlu0 %1445
        %1449 = vset.pattern.permute.xlu0 0
        %1450 = vperm.xlu0 %1449, %v1387
        %v1451 = vpop.permute.xlu0 %1450
        %1454 = vset.pattern.permute.xlu0 0
        %1455 = vperm.xlu0 %1454, %v1388
        %v1456 = vpop.permute.xlu0 %1455
        %1459 = vset.pattern.permute.xlu0 0
        %1460 = vperm.xlu0 %1459, %v1389
        %v1461 = vpop.permute.xlu0 %1460
        %1464 = vset.pattern.permute.xlu0 0
        %1465 = vperm.xlu0 %1464, %v1390
        %v1466 = vpop.permute.xlu0 %1465
        %1469 = vset.pattern.permute.xlu0 0
        %1470 = vperm.xlu0 %1469, %v1391
        %v1471 = vpop.permute.xlu0 %1470
        %v1473 = vlaneseq
        %v1474 = vshrl.u32 %v1473, 7
        %v1475 = vsub.s32 0, %v1474
        %v1476 = vrot.slane %v1392, %v1475
        %v1477 = vmul.f32 %v1396, %v1476
        %v1478 = vmul.f32 %v1401, %v1476
        %v1479 = vmul.f32 %v1406, %v1476
        %v1480 = vmul.f32 %v1411, %v1476
        %v1481 = vmul.f32 %v1416, %v1476
        %v1482 = vmul.f32 %v1421, %v1476
        %v1483 = vmul.f32 %v1426, %v1476
        %v1484 = vmul.f32 %v1431, %v1476
        %v1485 = vmul.f32 %v1436, %v1476
        %v1486 = vmul.f32 %v1441, %v1476
        %v1487 = vmul.f32 %v1446, %v1476
        %v1488 = vmul.f32 %v1451, %v1476
        %v1489 = vmul.f32 %v1456, %v1476
        %v1490 = vmul.f32 %v1461, %v1476
        %v1491 = vmul.f32 %v1466, %v1476
        %v1492 = vmul.f32 %v1471, %v1476
        %v1493 = vld [vmem:[%s4] sm:$0x1]
        %v1494 = vlaneseq
        %v1495 = vshrl.u32 %v1494, 7
        %v1496 = vsub.s32 0, %v1495
        %v1497 = vrot.slane %v1493, %v1496
        %v1498 = vadd.f32 %v1477, %v1497
        %v1499 = vadd.f32 %v1478, %v1497
        %v1500 = vadd.f32 %v1479, %v1497
        %v1501 = vadd.f32 %v1480, %v1497
        %v1502 = vadd.f32 %v1481, %v1497
        %v1503 = vadd.f32 %v1482, %v1497
        %v1504 = vadd.f32 %v1483, %v1497
        %v1505 = vadd.f32 %v1484, %v1497
        %v1506 = vadd.f32 %v1485, %v1497
        %v1507 = vadd.f32 %v1486, %v1497
        %v1508 = vadd.f32 %v1487, %v1497
        %v1509 = vadd.f32 %v1488, %v1497
        %v1510 = vadd.f32 %v1489, %v1497
        %v1511 = vadd.f32 %v1490, %v1497
        %v1512 = vadd.f32 %v1491, %v1497
        %v1513 = vadd.f32 %v1492, %v1497
        %v1514 = vld [vmem:[%s3 + $0x1] sm:$0x1]
        %1515 = vset.pattern.permute.xlu0 1
        %1516 = vperm.xlu0 %1515, %v1376
        %v1517 = vpop.permute.xlu0 %1516
        %1519 = vset.pattern.permute.xlu0 1
        %1520 = vperm.xlu0 %1519, %v1377
        %v1521 = vpop.permute.xlu0 %1520
        %1523 = vset.pattern.permute.xlu0 1
        %1524 = vperm.xlu0 %1523, %v1378
        %v1525 = vpop.permute.xlu0 %1524
        %1527 = vset.pattern.permute.xlu0 1
        %1528 = vperm.xlu0 %1527, %v1379
        %v1529 = vpop.permute.xlu0 %1528
        %1531 = vset.pattern.permute.xlu0 1
        %1532 = vperm.xlu0 %1531, %v1380
        %v1533 = vpop.permute.xlu0 %1532
        %1535 = vset.pattern.permute.xlu0 1
        %1536 = vperm.xlu0 %1535, %v1381
        %v1537 = vpop.permute.xlu0 %1536
        %1539 = vset.pattern.permute.xlu0 1
        %1540 = vperm.xlu0 %1539, %v1382
        %v1541 = vpop.permute.xlu0 %1540
        %1543 = vset.pattern.permute.xlu0 1
        %1544 = vperm.xlu0 %1543, %v1383
        %v1545 = vpop.permute.xlu0 %1544
        %1547 = vset.pattern.permute.xlu0 1
        %1548 = vperm.xlu0 %1547, %v1384
        %v1549 = vpop.permute.xlu0 %1548
        %1551 = vset.pattern.permute.xlu0 1
        %1552 = vperm.xlu0 %1551, %v1385
        %v1553 = vpop.permute.xlu0 %1552
        %1555 = vset.pattern.permute.xlu0 1
        %1556 = vperm.xlu0 %1555, %v1386
        %v1557 = vpop.permute.xlu0 %1556
        %1559 = vset.pattern.permute.xlu0 1
        %1560 = vperm.xlu0 %1559, %v1387
        %v1561 = vpop.permute.xlu0 %1560
        %1563 = vset.pattern.permute.xlu0 1
        %1564 = vperm.xlu0 %1563, %v1388
        %v1565 = vpop.permute.xlu0 %1564
        %1567 = vset.pattern.permute.xlu0 1
        %1568 = vperm.xlu0 %1567, %v1389
        %v1569 = vpop.permute.xlu0 %1568
        %1571 = vset.pattern.permute.xlu0 1
        %1572 = vperm.xlu0 %1571, %v1390
        %v1573 = vpop.permute.xlu0 %1572
        %1575 = vset.pattern.permute.xlu0 1
        %1576 = vperm.xlu0 %1575, %v1391
        %v1577 = vpop.permute.xlu0 %1576
        %v1579 = vlaneseq
        %v1580 = vshrl.u32 %v1579, 7
        %v1581 = vsub.s32 0, %v1580
        %v1582 = vrot.slane %v1514, %v1581
        %v1583 = vmul.f32 %v1517, %v1582
        %v1584 = vmul.f32 %v1521, %v1582
        %v1585 = vmul.f32 %v1525, %v1582
        %v1586 = vmul.f32 %v1529, %v1582
        %v1587 = vmul.f32 %v1533, %v1582
        %v1588 = vmul.f32 %v1537, %v1582
        %v1589 = vmul.f32 %v1541, %v1582
        %v1590 = vmul.f32 %v1545, %v1582
        %v1591 = vmul.f32 %v1549, %v1582
        %v1592 = vmul.f32 %v1553, %v1582
        %v1593 = vmul.f32 %v1557, %v1582
        %v1594 = vmul.f32 %v1561, %v1582
        %v1595 = vmul.f32 %v1565, %v1582
        %v1596 = vmul.f32 %v1569, %v1582
        %v1597 = vmul.f32 %v1573, %v1582
        %v1598 = vmul.f32 %v1577, %v1582
        %v1599 = vld [vmem:[%s4 + $0x1] sm:$0x1]
        %v1600 = vlaneseq
        %v1601 = vshrl.u32 %v1600, 7
        %v1602 = vsub.s32 0, %v1601
        %v1603 = vrot.slane %v1599, %v1602
        %v1604 = vadd.f32 %v1583, %v1603
        %v1605 = vadd.f32 %v1584, %v1603
        %v1606 = vadd.f32 %v1585, %v1603
        %v1607 = vadd.f32 %v1586, %v1603
        %v1608 = vadd.f32 %v1587, %v1603
        %v1609 = vadd.f32 %v1588, %v1603
        %v1610 = vadd.f32 %v1589, %v1603
        %v1611 = vadd.f32 %v1590, %v1603
        %v1612 = vadd.f32 %v1591, %v1603
        %v1613 = vadd.f32 %v1592, %v1603
        %v1614 = vadd.f32 %v1593, %v1603
        %v1615 = vadd.f32 %v1594, %v1603
        %v1616 = vadd.f32 %v1595, %v1603
        %v1617 = vadd.f32 %v1596, %v1603
        %v1618 = vadd.f32 %v1597, %v1603
        %v1619 = vadd.f32 %v1598, %v1603
        %v1620 = vld [vmem:[%s3 + $0x2] sm:$0x1]
        %1621 = vset.pattern.permute.xlu0 2
        %1622 = vperm.xlu0 %1621, %v1376
        %v1623 = vpop.permute.xlu0 %1622
        %1625 = vset.pattern.permute.xlu0 2
        %1626 = vperm.xlu0 %1625, %v1377
        %v1627 = vpop.permute.xlu0 %1626
        %1629 = vset.pattern.permute.xlu0 2
        %1630 = vperm.xlu0 %1629, %v1378
        %v1631 = vpop.permute.xlu0 %1630
        %1633 = vset.pattern.permute.xlu0 2
        %1634 = vperm.xlu0 %1633, %v1379
        %v1635 = vpop.permute.xlu0 %1634
        %1637 = vset.pattern.permute.xlu0 2
        %1638 = vperm.xlu0 %1637, %v1380
        %v1639 = vpop.permute.xlu0 %1638
        %1641 = vset.pattern.permute.xlu0 2
        %1642 = vperm.xlu0 %1641, %v1381
        %v1643 = vpop.permute.xlu0 %1642
        %1645 = vset.pattern.permute.xlu0 2
        %1646 = vperm.xlu0 %1645, %v1382
        %v1647 = vpop.permute.xlu0 %1646
        %1649 = vset.pattern.permute.xlu0 2
        %1650 = vperm.xlu0 %1649, %v1383
        %v1651 = vpop.permute.xlu0 %1650
        %1653 = vset.pattern.permute.xlu0 2
        %1654 = vperm.xlu0 %1653, %v1384
        %v1655 = vpop.permute.xlu0 %1654
        %1657 = vset.pattern.permute.xlu0 2
        %1658 = vperm.xlu0 %1657, %v1385
        %v1659 = vpop.permute.xlu0 %1658
        %1661 = vset.pattern.permute.xlu0 2
        %1662 = vperm.xlu0 %1661, %v1386
        %v1663 = vpop.permute.xlu0 %1662
        %1665 = vset.pattern.permute.xlu0 2
        %1666 = vperm.xlu0 %1665, %v1387
        %v1667 = vpop.permute.xlu0 %1666
        %1669 = vset.pattern.permute.xlu0 2
        %1670 = vperm.xlu0 %1669, %v1388
        %v1671 = vpop.permute.xlu0 %1670
        %1673 = vset.pattern.permute.xlu0 2
        %1674 = vperm.xlu0 %1673, %v1389
        %v1675 = vpop.permute.xlu0 %1674
        %1677 = vset.pattern.permute.xlu0 2
        %1678 = vperm.xlu0 %1677, %v1390
        %v1679 = vpop.permute.xlu0 %1678
        %1681 = vset.pattern.permute.xlu0 2
        %1682 = vperm.xlu0 %1681, %v1391
        %v1683 = vpop.permute.xlu0 %1682
        %v1685 = vlaneseq
        %v1686 = vshrl.u32 %v1685, 7
        %v1687 = vsub.s32 0, %v1686
        %v1688 = vrot.slane %v1620, %v1687
        %v1689 = vmul.f32 %v1623, %v1688
        %v1690 = vmul.f32 %v1627, %v1688
        %v1691 = vmul.f32 %v1631, %v1688
        %v1692 = vmul.f32 %v1635, %v1688
        %v1693 = vmul.f32 %v1639, %v1688
        %v1694 = vmul.f32 %v1643, %v1688
        %v1695 = vmul.f32 %v1647, %v1688
        %v1696 = vmul.f32 %v1651, %v1688
        %v1697 = vmul.f32 %v1655, %v1688
        %v1698 = vmul.f32 %v1659, %v1688
        %v1699 = vmul.f32 %v1663, %v1688
        %v1700 = vmul.f32 %v1667, %v1688
        %v1701 = vmul.f32 %v1671, %v1688
        %v1702 = vmul.f32 %v1675, %v1688
        %v1703 = vmul.f32 %v1679, %v1688
        %v1704 = vmul.f32 %v1683, %v1688
        %v1705 = vld [vmem:[%s4 + $0x2] sm:$0x1]
        %v1706 = vlaneseq
        %v1707 = vshrl.u32 %v1706, 7
        %v1708 = vsub.s32 0, %v1707
        %v1709 = vrot.slane %v1705, %v1708
        %v1710 = vadd.f32 %v1689, %v1709
        %v1711 = vadd.f32 %v1690, %v1709
        %v1712 = vadd.f32 %v1691, %v1709
        %v1713 = vadd.f32 %v1692, %v1709
        %v1714 = vadd.f32 %v1693, %v1709
        %v1715 = vadd.f32 %v1694, %v1709
        %v1716 = vadd.f32 %v1695, %v1709
        %v1717 = vadd.f32 %v1696, %v1709
        %v1718 = vadd.f32 %v1697, %v1709
        %v1719 = vadd.f32 %v1698, %v1709
        %v1720 = vadd.f32 %v1699, %v1709
        %v1721 = vadd.f32 %v1700, %v1709
        %v1722 = vadd.f32 %v1701, %v1709
        %v1723 = vadd.f32 %v1702, %v1709
        %v1724 = vadd.f32 %v1703, %v1709
        %v1725 = vadd.f32 %v1704, %v1709
        %v1726 = vld [vmem:[%s3 + $0x3] sm:$0x1]
        %1727 = vset.pattern.permute.xlu0 3
        %1728 = vperm.xlu0 %1727, %v1376
        %v1729 = vpop.permute.xlu0 %1728
        %1731 = vset.pattern.permute.xlu0 3
        %1732 = vperm.xlu0 %1731, %v1377
        %v1733 = vpop.permute.xlu0 %1732
        %1735 = vset.pattern.permute.xlu0 3
        %1736 = vperm.xlu0 %1735, %v1378
        %v1737 = vpop.permute.xlu0 %1736
        %1739 = vset.pattern.permute.xlu0 3
        %1740 = vperm.xlu0 %1739, %v1379
        %v1741 = vpop.permute.xlu0 %1740
        %1743 = vset.pattern.permute.xlu0 3
        %1744 = vperm.xlu0 %1743, %v1380
        %v1745 = vpop.permute.xlu0 %1744
        %1747 = vset.pattern.permute.xlu0 3
        %1748 = vperm.xlu0 %1747, %v1381
        %v1749 = vpop.permute.xlu0 %1748
        %1751 = vset.pattern.permute.xlu0 3
        %1752 = vperm.xlu0 %1751, %v1382
        %v1753 = vpop.permute.xlu0 %1752
        %1755 = vset.pattern.permute.xlu0 3
        %1756 = vperm.xlu0 %1755, %v1383
        %v1757 = vpop.permute.xlu0 %1756
        %1759 = vset.pattern.permute.xlu0 3
        %1760 = vperm.xlu0 %1759, %v1384
        %v1761 = vpop.permute.xlu0 %1760
        %1763 = vset.pattern.permute.xlu0 3
        %1764 = vperm.xlu0 %1763, %v1385
        %v1765 = vpop.permute.xlu0 %1764
        %1767 = vset.pattern.permute.xlu0 3
        %1768 = vperm.xlu0 %1767, %v1386
        %v1769 = vpop.permute.xlu0 %1768
        %1771 = vset.pattern.permute.xlu0 3
        %1772 = vperm.xlu0 %1771, %v1387
        %v1773 = vpop.permute.xlu0 %1772
        %1775 = vset.pattern.permute.xlu0 3
        %1776 = vperm.xlu0 %1775, %v1388
        %v1777 = vpop.permute.xlu0 %1776
        %1779 = vset.pattern.permute.xlu0 3
        %1780 = vperm.xlu0 %1779, %v1389
        %v1781 = vpop.permute.xlu0 %1780
        %1783 = vset.pattern.permute.xlu0 3
        %1784 = vperm.xlu0 %1783, %v1390
        %v1785 = vpop.permute.xlu0 %1784
        %1787 = vset.pattern.permute.xlu0 3
        %1788 = vperm.xlu0 %1787, %v1391
        %v1789 = vpop.permute.xlu0 %1788
        %v1791 = vlaneseq
        %v1792 = vshrl.u32 %v1791, 7
        %v1793 = vsub.s32 0, %v1792
        %v1794 = vrot.slane %v1726, %v1793
        %v1795 = vmul.f32 %v1729, %v1794
        %v1796 = vmul.f32 %v1733, %v1794
        %v1797 = vmul.f32 %v1737, %v1794
        %v1798 = vmul.f32 %v1741, %v1794
        %v1799 = vmul.f32 %v1745, %v1794
        %v1800 = vmul.f32 %v1749, %v1794
        %v1801 = vmul.f32 %v1753, %v1794
        %v1802 = vmul.f32 %v1757, %v1794
        %v1803 = vmul.f32 %v1761, %v1794
        %v1804 = vmul.f32 %v1765, %v1794
        %v1805 = vmul.f32 %v1769, %v1794
        %v1806 = vmul.f32 %v1773, %v1794
        %v1807 = vmul.f32 %v1777, %v1794
        %v1808 = vmul.f32 %v1781, %v1794
        %v1809 = vmul.f32 %v1785, %v1794
        %v1810 = vmul.f32 %v1789, %v1794
        %v1811 = vld [vmem:[%s4 + $0x3] sm:$0x1]
        %v1812 = vlaneseq
        %v1813 = vshrl.u32 %v1812, 7
        %v1814 = vsub.s32 0, %v1813
        %v1815 = vrot.slane %v1811, %v1814
        %v1816 = vadd.f32 %v1795, %v1815
        %v1817 = vadd.f32 %v1796, %v1815
        %v1818 = vadd.f32 %v1797, %v1815
        %v1819 = vadd.f32 %v1798, %v1815
        %v1820 = vadd.f32 %v1799, %v1815
        %v1821 = vadd.f32 %v1800, %v1815
        %v1822 = vadd.f32 %v1801, %v1815
        %v1823 = vadd.f32 %v1802, %v1815
        %v1824 = vadd.f32 %v1803, %v1815
        %v1825 = vadd.f32 %v1804, %v1815
        %v1826 = vadd.f32 %v1805, %v1815
        %v1827 = vadd.f32 %v1806, %v1815
        %v1828 = vadd.f32 %v1807, %v1815
        %v1829 = vadd.f32 %v1808, %v1815
        %v1830 = vadd.f32 %v1809, %v1815
        %v1831 = vadd.f32 %v1810, %v1815
        %1848 = vrot.lane.b32.xlu0 %v1604, 32
        %v1849 = vpop.permute.xlu0 %1848
        %1850 = vrot.lane.b32.xlu0 %v1605, 32
        %v1851 = vpop.permute.xlu0 %1850
        %1852 = vrot.lane.b32.xlu0 %v1606, 32
        %v1853 = vpop.permute.xlu0 %1852
        %1854 = vrot.lane.b32.xlu0 %v1607, 32
        %v1855 = vpop.permute.xlu0 %1854
        %1856 = vrot.lane.b32.xlu0 %v1608, 32
        %v1857 = vpop.permute.xlu0 %1856
        %1858 = vrot.lane.b32.xlu0 %v1609, 32
        %v1859 = vpop.permute.xlu0 %1858
        %1860 = vrot.lane.b32.xlu0 %v1610, 32
        %v1861 = vpop.permute.xlu0 %1860
        %1862 = vrot.lane.b32.xlu0 %v1611, 32
        %v1863 = vpop.permute.xlu0 %1862
        %1864 = vrot.lane.b32.xlu0 %v1612, 32
        %v1865 = vpop.permute.xlu0 %1864
        %1866 = vrot.lane.b32.xlu0 %v1613, 32
        %v1867 = vpop.permute.xlu0 %1866
        %1868 = vrot.lane.b32.xlu0 %v1614, 32
        %v1869 = vpop.permute.xlu0 %1868
        %1870 = vrot.lane.b32.xlu0 %v1615, 32
        %v1871 = vpop.permute.xlu0 %1870
        %1872 = vrot.lane.b32.xlu0 %v1616, 32
        %v1873 = vpop.permute.xlu0 %1872
        %1874 = vrot.lane.b32.xlu0 %v1617, 32
        %v1875 = vpop.permute.xlu0 %1874
        %1876 = vrot.lane.b32.xlu0 %v1618, 32
        %v1877 = vpop.permute.xlu0 %1876
        %1878 = vrot.lane.b32.xlu0 %v1619, 32
        %v1879 = vpop.permute.xlu0 %1878
        %1912 = vrot.lane.b32.xlu0 %v1710, 64
        %v1913 = vpop.permute.xlu0 %1912
        %1914 = vrot.lane.b32.xlu0 %v1711, 64
        %v1915 = vpop.permute.xlu0 %1914
        %1916 = vrot.lane.b32.xlu0 %v1712, 64
        %v1917 = vpop.permute.xlu0 %1916
        %1918 = vrot.lane.b32.xlu0 %v1713, 64
        %v1919 = vpop.permute.xlu0 %1918
        %1920 = vrot.lane.b32.xlu0 %v1714, 64
        %v1921 = vpop.permute.xlu0 %1920
        %1922 = vrot.lane.b32.xlu0 %v1715, 64
        %v1923 = vpop.permute.xlu0 %1922
        %1924 = vrot.lane.b32.xlu0 %v1716, 64
        %v1925 = vpop.permute.xlu0 %1924
        %1926 = vrot.lane.b32.xlu0 %v1717, 64
        %v1927 = vpop.permute.xlu0 %1926
        %1928 = vrot.lane.b32.xlu0 %v1718, 64
        %v1929 = vpop.permute.xlu0 %1928
        %1930 = vrot.lane.b32.xlu0 %v1719, 64
        %v1931 = vpop.permute.xlu0 %1930
        %1932 = vrot.lane.b32.xlu0 %v1720, 64
        %v1933 = vpop.permute.xlu0 %1932
        %1934 = vrot.lane.b32.xlu0 %v1721, 64
        %v1935 = vpop.permute.xlu0 %1934
        %1936 = vrot.lane.b32.xlu0 %v1722, 64
        %v1937 = vpop.permute.xlu0 %1936
        %1938 = vrot.lane.b32.xlu0 %v1723, 64
        %v1939 = vpop.permute.xlu0 %1938
        %1940 = vrot.lane.b32.xlu0 %v1724, 64
        %v1941 = vpop.permute.xlu0 %1940
        %1942 = vrot.lane.b32.xlu0 %v1725, 64
        %v1943 = vpop.permute.xlu0 %1942
        %1976 = vrot.lane.b32.xlu0 %v1816, 96
        %v1977 = vpop.permute.xlu0 %1976
        %1978 = vrot.lane.b32.xlu0 %v1817, 96
        %v1979 = vpop.permute.xlu0 %1978
        %1980 = vrot.lane.b32.xlu0 %v1818, 96
        %v1981 = vpop.permute.xlu0 %1980
        %1982 = vrot.lane.b32.xlu0 %v1819, 96
        %v1983 = vpop.permute.xlu0 %1982
        %1984 = vrot.lane.b32.xlu0 %v1820, 96
        %v1985 = vpop.permute.xlu0 %1984
        %1986 = vrot.lane.b32.xlu0 %v1821, 96
        %v1987 = vpop.permute.xlu0 %1986
        %1988 = vrot.lane.b32.xlu0 %v1822, 96
        %v1989 = vpop.permute.xlu0 %1988
        %1990 = vrot.lane.b32.xlu0 %v1823, 96
        %v1991 = vpop.permute.xlu0 %1990
        %1992 = vrot.lane.b32.xlu0 %v1824, 96
        %v1993 = vpop.permute.xlu0 %1992
        %1994 = vrot.lane.b32.xlu0 %v1825, 96
        %v1995 = vpop.permute.xlu0 %1994
        %1996 = vrot.lane.b32.xlu0 %v1826, 96
        %v1997 = vpop.permute.xlu0 %1996
        %1998 = vrot.lane.b32.xlu0 %v1827, 96
        %v1999 = vpop.permute.xlu0 %1998
        %2000 = vrot.lane.b32.xlu0 %v1828, 96
        %v2001 = vpop.permute.xlu0 %2000
        %2002 = vrot.lane.b32.xlu0 %v1829, 96
        %v2003 = vpop.permute.xlu0 %2002
        %2004 = vrot.lane.b32.xlu0 %v1830, 96
        %v2005 = vpop.permute.xlu0 %2004
        %2006 = vrot.lane.b32.xlu0 %v1831, 96
        %v2007 = vpop.permute.xlu0 %2006
        %v2024 = vsel %vm1309, %v1498, %v1849
        %v2025 = vsel %vm1309, %v1499, %v1851
        %v2026 = vsel %vm1309, %v1500, %v1853
        %v2027 = vsel %vm1309, %v1501, %v1855
        %v2028 = vsel %vm1309, %v1502, %v1857
        %v2029 = vsel %vm1309, %v1503, %v1859
        %v2030 = vsel %vm1309, %v1504, %v1861
        %v2031 = vsel %vm1309, %v1505, %v1863
        %v2032 = vsel %vm1309, %v1506, %v1865
        %v2033 = vsel %vm1309, %v1507, %v1867
        %v2034 = vsel %vm1309, %v1508, %v1869
        %v2035 = vsel %vm1309, %v1509, %v1871
        %v2036 = vsel %vm1309, %v1510, %v1873
        %v2037 = vsel %vm1309, %v1511, %v1875
        %v2038 = vsel %vm1309, %v1512, %v1877
        %v2039 = vsel %vm1309, %v1513, %v1879
        %v2040 = vsel %vm1326, %v2024, %v1913
        %v2041 = vsel %vm1326, %v2025, %v1915
        %v2042 = vsel %vm1326, %v2026, %v1917
        %v2043 = vsel %vm1326, %v2027, %v1919
        %v2044 = vsel %vm1326, %v2028, %v1921
        %v2045 = vsel %vm1326, %v2029, %v1923
        %v2046 = vsel %vm1326, %v2030, %v1925
        %v2047 = vsel %vm1326, %v2031, %v1927
        %v2048 = vsel %vm1326, %v2032, %v1929
        %v2049 = vsel %vm1326, %v2033, %v1931
        %v2050 = vsel %vm1326, %v2034, %v1933
        %v2051 = vsel %vm1326, %v2035, %v1935
        %v2052 = vsel %vm1326, %v2036, %v1937
        %v2053 = vsel %vm1326, %v2037, %v1939
        %v2054 = vsel %vm1326, %v2038, %v1941
        %v2055 = vsel %vm1326, %v2039, %v1943
        %v2056 = vsel %vm1343, %v2040, %v1977
        %v2057 = vsel %vm1343, %v2041, %v1979
        %v2058 = vsel %vm1343, %v2042, %v1981
        %v2059 = vsel %vm1343, %v2043, %v1983
        %v2060 = vsel %vm1343, %v2044, %v1985
        %v2061 = vsel %vm1343, %v2045, %v1987
        %v2062 = vsel %vm1343, %v2046, %v1989
        %v2063 = vsel %vm1343, %v2047, %v1991
        %v2064 = vsel %vm1343, %v2048, %v1993
        %v2065 = vsel %vm1343, %v2049, %v1995
        %v2066 = vsel %vm1343, %v2050, %v1997
        %v2067 = vsel %vm1343, %v2051, %v1999
        %v2068 = vsel %vm1343, %v2052, %v2001
        %v2069 = vsel %vm1343, %v2053, %v2003
        %v2070 = vsel %vm1343, %v2054, %v2005
        %v2071 = vsel %vm1343, %v2055, %v2007
        %2072 = vst [vmem:[%s272] sm:$0xff] %v2056
        %2073 = vst [vmem:[%s272 + $0x8] sm:$0xff] %v2057
        %2074 = vst [vmem:[%s272 + $0x10] sm:$0xff] %v2058
        %2075 = vst [vmem:[%s272 + $0x18] sm:$0xff] %v2059
        %2076 = vst [vmem:[%s272 + $0x20] sm:$0xff] %v2060
        %2077 = vst [vmem:[%s272 + $0x28] sm:$0xff] %v2061
        %2078 = vst [vmem:[%s272 + $0x30] sm:$0xff] %v2062
        %2079 = vst [vmem:[%s272 + $0x38] sm:$0xff] %v2063
        %2080 = vst [vmem:[%s272 + $0x40] sm:$0xff] %v2064
        %2081 = vst [vmem:[%s272 + $0x48] sm:$0xff] %v2065
        %2082 = vst [vmem:[%s272 + $0x50] sm:$0xff] %v2066
        %2083 = vst [vmem:[%s272 + $0x58] sm:$0xff] %v2067
        %2084 = vst [vmem:[%s272 + $0x60] sm:$0xff] %v2068
        %2085 = vst [vmem:[%s272 + $0x68] sm:$0xff] %v2069
        %2086 = vst [vmem:[%s272 + $0x70] sm:$0xff] %v2070
        %2087 = vst [vmem:[%s272 + $0x78] sm:$0xff] %v2071
        %s2088 = sand.u32 %s147, 1
        %s2089 = scalar_lea.sflag [#allocation3], %s2088
        %s2090 = sand.u32 %s147, 1
        %s2091 = smul.addr %s2090, 128
        %s2092 = scalar_lea.vmem [#allocation2], %s2091
        %s2093 = sand.u32 %s173, 1
        %s2094 = scalar_lea.sflag [#allocation5], %s2093
        %s2095 = sand.u32 %s173, 1
        %s2096 = smul.addr %s2095, 128
        %s2097 = scalar_lea.vmem [#allocation4], %s2096
        // Predicated region
        $region41: #{tpu_custom_call.1} parent=39 // pred_check
          %p2098 = pneg %p157
        $region42: #{tpu_custom_call.1} parent=39 // pred_check_branch
          %2100 = sbr.rel (%p2098) target = $region44
        $region43: #{tpu_custom_call.1} parent=39 // pred_region
          %s2101 = smul.u32 16, %s24
          %s2103 = ssub.s32 2048, 2048
          %2104 = vsyncadd %s2089, %s2103
          %s2105 = smul.addr %s2101, 128
          %s2106 = scalar_lea.hbm %s5, %s2105
          %s2107 = sshll.u32 %s2092, 4
          %s2108 = int_to_ptr.vmem [resolvable:$true] %s2107
          %2113 = dma.vmem_to_hbm [thread:$0]  %s2108, 2048, %s2106, %s2089, 128, 128, 8
        $region44: #{tpu_custom_call.1} parent=39 // pred_fallthru
          _
        // Predicated region
        $region45: #{tpu_custom_call.1} parent=39 // pred_check
          %p2114 = pneg %p183
        $region46: #{tpu_custom_call.1} parent=39 // pred_check_branch
          %2116 = sbr.rel (%p2114) target = $region48
        $region47: #{tpu_custom_call.1} parent=39 // pred_region
          %s2117 = smul.u32 16, %s24
          %s2119 = ssub.s32 2048, 2048
          %2120 = vsyncadd %s2094, %s2119
          %s2121 = smul.addr %s2117, 128
          %s2122 = scalar_lea.hbm %s6, %s2121
          %s2123 = sshll.u32 %s2097, 4
          %s2124 = int_to_ptr.vmem [resolvable:$true] %s2123
          %2129 = dma.vmem_to_hbm [thread:$0]  %s2124, 2048, %s2122, %s2094, 128, 128, 8
        $region48: #{tpu_custom_call.1} parent=39 // pred_fallthru
          _
      $region40: #{tpu_custom_call.1} parent=5 // pred_fallthru
        _
      %p2130 = scmp.le.s32.totalorder 2, %s19
      // Predicated region
      $region49: #{tpu_custom_call.1} parent=5 // pred_check
        %p2131 = pneg %p2130
      $region50: #{tpu_custom_call.1} parent=5 // pred_check_branch
        %2133 = sbr.rel (%p2131) target = $region52
      $region51: #{tpu_custom_call.1} parent=5 // pred_region
        %s2134 = ssub.s32 %s19, 2
        // Predicated region
        $region53: #{tpu_custom_call.1} parent=51 // pred_check
          %p2135 = pneg %p163
        $region54: #{tpu_custom_call.1} parent=51 // pred_check_branch
          %2137 = sbr.rel (%p2135) target = $region56
        $region55: #{tpu_custom_call.1} parent=51 // pred_region
          %s2138 = sand.u32 %s148, 1
          %s2139 = scalar_lea.sflag [#allocation3], %s2138
          %s2140 = sand.u32 %s148, 1
          %s2141 = smul.addr %s2140, 128
          %s2142 = scalar_lea.vmem [#allocation2], %s2141
          %2143 = dma.done %s2139, 2048
        $region56: #{tpu_custom_call.1} parent=51 // pred_fallthru
          _
        // Predicated region
        $region57: #{tpu_custom_call.1} parent=51 // pred_check
          %p2144 = pneg %p189
        $region58: #{tpu_custom_call.1} parent=51 // pred_check_branch
          %2146 = sbr.rel (%p2144) target = $region60
        $region59: #{tpu_custom_call.1} parent=51 // pred_region
          %s2147 = sand.u32 %s174, 1
          %s2148 = scalar_lea.sflag [#allocation5], %s2147
          %s2149 = sand.u32 %s174, 1
          %s2150 = smul.addr %s2149, 128
          %s2151 = scalar_lea.vmem [#allocation4], %s2150
          %2152 = dma.done %s2148, 2048
        $region60: #{tpu_custom_call.1} parent=51 // pred_fallthru
          _
      $region52: #{tpu_custom_call.1} parent=5 // pred_fallthru
        _
    $region6: #{tpu_custom_call.1} parent=1 // loop_footer
      %s23 = sadd.s32 1, %s19
    $region7: #{tpu_custom_call.1} parent=1 // loop_footer_branch
      %18 = sbr.rel target = $region3
    $region8: #{tpu_custom_call.1} parent=1 // loop_exit
      _
    %2153 = vsyncpa [#allocation3], 1
    %s2154 = scalar_lea.sflag [#allocation3], 1
    %2155 = vsyncpa %s2154, 1
    %2156 = vsyncpa [#allocation5], 1
    %s2157 = scalar_lea.sflag [#allocation5], 1
    %2158 = vsyncpa %s2157, 1

</llo_original>
